<compile_context>
chip_gen: v6e
topology: v6e:2x2x1
jax: 0.10.0
libtpu: 0.0.40
codegen_flags: <defaults>
</compile_context>

<pallas_src>
import functools
import math

import jax
import jax.numpy as jnp
from jax.experimental import pallas as pl
from jax.experimental.pallas import tpu as pltpu


# ----------------------------------------------------------------------------
# Fused kernel: all six UniReconstructNet MLPs in one invocation.
# ----------------------------------------------------------------------------
def _multi_reconstruct_kernel(x_ref, w1_ref, b1_ref, w2_ref, b2_ref,
                              w3m_ref, b3m_ref, w3t_ref, b3t_ref,
                              w3l_ref, b3l_ref,
                              om_ref, ot_ref, ol_ref):
    """Compute all six nets.

    x_ref  : (6, B, Din)   stacked inputs, net order [m, t, l, x, x, x]
    w1_ref : (6, Din, 512) layer-1 weights (BN1 folded, pre-transposed)
    b1_ref : (6, 1, 512)
    w2_ref : (6, 512, 256) layer-2 weights (BN2 folded)
    b2_ref : (6, 1, 256)
    w3*_ref: (2, 256, T*D) layer-3 weights per modality, [rec, fused]
    b3*_ref: (2, 1, T*D)
    o*_ref : (2, B, T*D)   outputs per modality, [rec, fused]
    """
    # Shared trunk shape (Din->512->256) for all six nets; static loop fully
    # unrolled, every intermediate stays in vregs / VMEM.
    hidden = []
    for n in range(6):
        h = jnp.dot(x_ref[n], w1_ref[n], preferred_element_type=jnp.float32)
        h = jnp.maximum(h + b1_ref[n], 0.0)
        h = jnp.dot(h, w2_ref[n], preferred_element_type=jnp.float32)
        h = jnp.maximum(h + b2_ref[n], 0.0)
        hidden.append(h)

    # Heads: nets (0, 3) -> metric, (1, 4) -> trace, (2, 5) -> log.
    for i_rec, i_fused, w3, b3, o_ref in (
            (0, 3, w3m_ref, b3m_ref, om_ref),
            (1, 4, w3t_ref, b3t_ref, ot_ref),
            (2, 5, w3l_ref, b3l_ref, ol_ref)):
        o_ref[0] = jnp.maximum(
            jnp.dot(hidden[i_rec], w3[0], preferred_element_type=jnp.float32)
            + b3[0], 0.0)
        o_ref[1] = jnp.maximum(
            jnp.dot(hidden[i_fused], w3[1], preferred_element_type=jnp.float32)
            + b3[1], 0.0)


# ----------------------------------------------------------------------------
# Parameters (PyTorch-like init) and host-side BN folding
# ----------------------------------------------------------------------------
def _fold_bn(w, b, gamma, beta, mean, var, eps=1e-5):
    """Fold eval-mode BatchNorm1d into the preceding Linear (w: (in, out))."""
    scale = gamma * jax.lax.rsqrt(var + eps)
    return w * scale[None, :], (b - mean) * scale + beta


def init_uni_params(key, input_dim, output_dim, seq_len):
    ks = jax.random.split(key, 5)

    def lin(k, fin, fout):
        bound = 1.0 / math.sqrt(fin)
        kw, kb = jax.random.split(k)
        w = jax.random.uniform(kw, (fin, fout), jnp.float32, -bound, bound)
        b = jax.random.uniform(kb, (fout,), jnp.float32, -bound, bound)
        return w, b

    def bn(k, n):
        kg, kb, km, kv = jax.random.split(k, 4)
        return dict(
            gamma=(1.0 + 0.1 * jax.random.normal(kg, (n,))).astype(jnp.float32),
            beta=(0.1 * jax.random.normal(kb, (n,))).astype(jnp.float32),
            mean=(0.1 * jax.random.normal(km, (n,))).astype(jnp.float32),
            var=(1.0 + 0.1 * jax.random.uniform(kv, (n,))).astype(jnp.float32))

    w1, b1 = lin(ks[0], input_dim, 512)
    w2, b2 = lin(ks[1], 512, 256)
    w3, b3 = lin(ks[2], 256, output_dim * seq_len)
    return dict(w1=w1, b1=b1, bn1=bn(ks[3], 512),
                w2=w2, b2=b2, bn2=bn(ks[4], 256),
                w3=w3, b3=b3)


# ----------------------------------------------------------------------------
# Forward wrapper (one pallas_call for the whole MultiReconstructNet)
# ----------------------------------------------------------------------------
def multi_reconstruct_forward(params, x, m, t, l, *, window_size,
                              metric_dim, log_event_num, trace_dim):
    bs, _ = x.shape
    order = ("m_rec", "t_rec", "l_rec",
             "fused_m_rec", "fused_t_rec", "fused_l_rec")

    w1s, b1s, w2s, b2s = [], [], [], []
    for name in order:
        p = params[name]
        w1, b1 = _fold_bn(p["w1"], p["b1"], **p["bn1"])
        w2, b2 = _fold_bn(p["w2"], p["b2"], **p["bn2"])
        w1s.append(w1); b1s.append(b1[None, :])
        w2s.append(w2); b2s.append(b2[None, :])
    w1_all = jnp.stack(w1s); b1_all = jnp.stack(b1s)
    w2_all = jnp.stack(w2s); b2_all = jnp.stack(b2s)

    def head(rec, fused):
        w3 = jnp.stack([params[rec]["w3"], params[fused]["w3"]])
        b3 = jnp.stack([params[rec]["b3"][None, :],
                        params[fused]["b3"][None, :]])
        return w3, b3

    w3m, b3m = head("m_rec", "fused_m_rec")
    w3t, b3t = head("t_rec", "fused_t_rec")
    w3l, b3l = head("l_rec", "fused_l_rec")

    # Stacked inputs matching the net order above.
    x_all = jnp.stack([m, t, l, x, x, x]).astype(jnp.float32)   # (6, B, Din)

    vmem = functools.partial(pl.BlockSpec,
                             memory_space=pltpu.MemorySpace.VMEM)
    out_m, out_t, out_l = pl.pallas_call(
        _multi_reconstruct_kernel,
        out_shape=(
            jax.ShapeDtypeStruct((2, bs, window_size * metric_dim),
                                 jnp.float32),
            jax.ShapeDtypeStruct((2, bs, window_size * trace_dim),
                                 jnp.float32),
            jax.ShapeDtypeStruct((2, bs, window_size * log_event_num),
                                 jnp.float32),
        ),
        in_specs=[vmem()] * 11,
        out_specs=(vmem(), vmem(), vmem()),
    )(x_all, w1_all, b1_all, w2_all, b2_all, w3m, b3m, w3t, b3t, w3l, b3l)

    def split(o, dout):
        return (o[0].reshape(bs, window_size, dout),
                o[1].reshape(bs, window_size, dout))

    rec_m, fused_rec_m = split(out_m, metric_dim)
    rec_t, fused_rec_t = split(out_t, trace_dim)
    rec_l, fused_rec_l = split(out_l, log_event_num)
    return rec_m, rec_t, rec_l, fused_rec_m, fused_rec_t, fused_rec_l


# ----------------------------------------------------------------------------
# Pure-JAX reference (eval-mode BN) for a correctness smoke check
# ----------------------------------------------------------------------------
def _uni_reference(p, inp, output_dim, seq_len):
    def bn(h, d):
        return ((h - d["mean"]) * jax.lax.rsqrt(d["var"] + 1e-5)
                * d["gamma"] + d["beta"])
    h = jnp.maximum(bn(inp @ p["w1"] + p["b1"], p["bn1"]), 0.0)
    h = jnp.maximum(bn(h @ p["w2"] + p["b2"], p["bn2"]), 0.0)
    h = jnp.maximum(h @ p["w3"] + p["b3"], 0.0)
    return h.reshape(-1, seq_len, output_dim)


if __name__ == "__main__":
    batch = 8
    input_dim = 64
    window_size = 16
    metric_dim = 8        # -> head width 128 (lane dense)
    log_embed_dim = 32    # unused by forward (kept for parity with __init__)
    log_event_num = 16    # -> head width 256 (lane dense)
    trace_dim = 8         # -> head width 128 (lane dense)

    key = jax.random.PRNGKey(0)
    k_par, k_x, k_m, k_t, k_l = jax.random.split(key, 5)
    pk = jax.random.split(k_par, 6)
    params = {
        "m_rec": init_uni_params(pk[0], input_dim, metric_dim, window_size),
        "t_rec": init_uni_params(pk[1], input_dim, trace_dim, window_size),
        "l_rec": init_uni_params(pk[2], input_dim, log_event_num, window_size),
        "fused_m_rec": init_uni_params(pk[3], input_dim, metric_dim,
                                       window_size),
        "fused_t_rec": init_uni_params(pk[4], input_dim, trace_dim,
                                       window_size),
        "fused_l_rec": init_uni_params(pk[5], input_dim, log_event_num,
                                       window_size),
    }
    x = jax.random.normal(k_x, (batch, input_dim), dtype=jnp.float32)
    m = jax.random.normal(k_m, (batch, input_dim), dtype=jnp.float32)
    t = jax.random.normal(k_t, (batch, input_dim), dtype=jnp.float32)
    l = jax.random.normal(k_l, (batch, input_dim), dtype=jnp.float32)

    outs = multi_reconstruct_forward(params, x, m, t, l,
                                     window_size=window_size,
                                     metric_dim=metric_dim,
                                     log_event_num=log_event_num,
                                     trace_dim=trace_dim)
    outs = jax.block_until_ready(outs)
    rec_m, rec_t, rec_l, fused_rec_m, fused_rec_t, fused_rec_l = outs

    assert rec_m.shape == (batch, window_size, metric_dim)
    assert rec_t.shape == (batch, window_size, trace_dim)
    assert rec_l.shape == (batch, window_size, log_event_num)
    assert fused_rec_m.shape == rec_m.shape
    assert fused_rec_t.shape == rec_t.shape
    assert fused_rec_l.shape == rec_l.shape
    assert all(bool(jnp.all(jnp.isfinite(o))) for o in outs)

    # Smoke check vs. pure-JAX reference (loose tol: MXU f32 matmul passes).
    refs = (
        _uni_reference(params["m_rec"], m, metric_dim, window_size),
        _uni_reference(params["t_rec"], t, trace_dim, window_size),
        _uni_reference(params["l_rec"], l, log_event_num, window_size),
        _uni_reference(params["fused_m_rec"], x, metric_dim, window_size),
        _uni_reference(params["fused_t_rec"], x, trace_dim, window_size),
        _uni_reference(params["fused_l_rec"], x, log_event_num, window_size),
    )
    for got, ref in zip(outs, refs):
        assert bool(jnp.allclose(got, ref, rtol=1e-1, atol=5e-2)), \
            float(jnp.max(jnp.abs(got - ref)))

    print("KERNEL_OK")
</pallas_src>

<mosaic_0001>
module attributes {stable_mosaic.version = 11 : i64} {
  func.func @_multi_reconstruct_kernel(%arg0: memref<6x8x64xf32, #tpu.memory_space<vmem>>, %arg1: memref<6x64x512xf32, #tpu.memory_space<vmem>>, %arg2: memref<6x1x512xf32, #tpu.memory_space<vmem>>, %arg3: memref<6x512x256xf32, #tpu.memory_space<vmem>>, %arg4: memref<6x1x256xf32, #tpu.memory_space<vmem>>, %arg5: memref<2x256x128xf32, #tpu.memory_space<vmem>>, %arg6: memref<2x1x128xf32, #tpu.memory_space<vmem>>, %arg7: memref<2x256x128xf32, #tpu.memory_space<vmem>>, %arg8: memref<2x1x128xf32, #tpu.memory_space<vmem>>, %arg9: memref<2x256x256xf32, #tpu.memory_space<vmem>>, %arg10: memref<2x1x256xf32, #tpu.memory_space<vmem>>, %arg11: memref<2x8x128xf32, #tpu.memory_space<vmem>>, %arg12: memref<2x8x128xf32, #tpu.memory_space<vmem>>, %arg13: memref<2x8x256xf32, #tpu.memory_space<vmem>>) attributes {dimension_semantics = [], scalar_prefetch = 0 : i64, scratch_operands = 0 : i64, tpu.core_type = #tpu.core_type<tc>} {
    %c0 = arith.constant 0 : index
    %c0_0 = arith.constant 0 : index
    %c0_1 = arith.constant 0 : index
    %0 = vector.load %arg0[%c0, %c0_0, %c0_1] : memref<6x8x64xf32, #tpu.memory_space<vmem>>, vector<1x8x64xf32>
    %1 = vector.shape_cast %0 : vector<1x8x64xf32> to vector<8x64xf32>
    %c0_2 = arith.constant 0 : index
    %c0_3 = arith.constant 0 : index
    %c0_4 = arith.constant 0 : index
    %2 = vector.load %arg1[%c0_2, %c0_3, %c0_4] : memref<6x64x512xf32, #tpu.memory_space<vmem>>, vector<1x64x512xf32>
    %3 = vector.shape_cast %2 : vector<1x64x512xf32> to vector<64x512xf32>
    %cst = arith.constant dense<0.000000e+00> : vector<8x512xf32>
    %4 = tpu.matmul %1, %3, %cst {dimension_numbers = #tpu.dot_dimension_numbers<[1], [0], [0], [1], [0, 0, 1, 1], [], []>} : vector<8x64xf32>, vector<64x512xf32>, vector<8x512xf32> -> vector<8x512xf32>
    %c0_5 = arith.constant 0 : index
    %c0_6 = arith.constant 0 : index
    %c0_7 = arith.constant 0 : index
    %5 = vector.load %arg2[%c0_5, %c0_6, %c0_7] : memref<6x1x512xf32, #tpu.memory_space<vmem>>, vector<1x1x512xf32>
    %6 = vector.shape_cast %5 : vector<1x1x512xf32> to vector<1x512xf32>
    %7 = vector.broadcast %6 : vector<1x512xf32> to vector<8x512xf32>
    %8 = arith.addf %4, %7 : vector<8x512xf32>
    %cst_8 = arith.constant 0.000000e+00 : f32
    %9 = vector.broadcast %cst_8 : f32 to vector<8x512xf32>
    %10 = arith.maximumf %8, %9 : vector<8x512xf32>
    %c0_9 = arith.constant 0 : index
    %c0_10 = arith.constant 0 : index
    %c0_11 = arith.constant 0 : index
    %11 = vector.load %arg3[%c0_9, %c0_10, %c0_11] : memref<6x512x256xf32, #tpu.memory_space<vmem>>, vector<1x512x256xf32>
    %12 = vector.shape_cast %11 : vector<1x512x256xf32> to vector<512x256xf32>
    %cst_12 = arith.constant dense<0.000000e+00> : vector<8x256xf32>
    %13 = tpu.matmul %10, %12, %cst_12 {dimension_numbers = #tpu.dot_dimension_numbers<[1], [0], [0], [1], [0, 0, 1, 1], [], []>} : vector<8x512xf32>, vector<512x256xf32>, vector<8x256xf32> -> vector<8x256xf32>
    %c0_13 = arith.constant 0 : index
    %c0_14 = arith.constant 0 : index
    %c0_15 = arith.constant 0 : index
    %14 = vector.load %arg4[%c0_13, %c0_14, %c0_15] : memref<6x1x256xf32, #tpu.memory_space<vmem>>, vector<1x1x256xf32>
    %15 = vector.shape_cast %14 : vector<1x1x256xf32> to vector<1x256xf32>
    %16 = vector.broadcast %15 : vector<1x256xf32> to vector<8x256xf32>
    %17 = arith.addf %13, %16 : vector<8x256xf32>
    %cst_16 = arith.constant 0.000000e+00 : f32
    %18 = vector.broadcast %cst_16 : f32 to vector<8x256xf32>
    %19 = arith.maximumf %17, %18 : vector<8x256xf32>
    %c1 = arith.constant 1 : index
    %c0_17 = arith.constant 0 : index
    %c0_18 = arith.constant 0 : index
    %20 = vector.load %arg0[%c1, %c0_17, %c0_18] : memref<6x8x64xf32, #tpu.memory_space<vmem>>, vector<1x8x64xf32>
    %21 = vector.shape_cast %20 : vector<1x8x64xf32> to vector<8x64xf32>
    %c1_19 = arith.constant 1 : index
    %c0_20 = arith.constant 0 : index
    %c0_21 = arith.constant 0 : index
    %22 = vector.load %arg1[%c1_19, %c0_20, %c0_21] : memref<6x64x512xf32, #tpu.memory_space<vmem>>, vector<1x64x512xf32>
    %23 = vector.shape_cast %22 : vector<1x64x512xf32> to vector<64x512xf32>
    %cst_22 = arith.constant dense<0.000000e+00> : vector<8x512xf32>
    %24 = tpu.matmul %21, %23, %cst_22 {dimension_numbers = #tpu.dot_dimension_numbers<[1], [0], [0], [1], [0, 0, 1, 1], [], []>} : vector<8x64xf32>, vector<64x512xf32>, vector<8x512xf32> -> vector<8x512xf32>
    %c1_23 = arith.constant 1 : index
    %c0_24 = arith.constant 0 : index
    %c0_25 = arith.constant 0 : index
    %25 = vector.load %arg2[%c1_23, %c0_24, %c0_25] : memref<6x1x512xf32, #tpu.memory_space<vmem>>, vector<1x1x512xf32>
    %26 = vector.shape_cast %25 : vector<1x1x512xf32> to vector<1x512xf32>
    %27 = vector.broadcast %26 : vector<1x512xf32> to vector<8x512xf32>
    %28 = arith.addf %24, %27 : vector<8x512xf32>
    %cst_26 = arith.constant 0.000000e+00 : f32
    %29 = vector.broadcast %cst_26 : f32 to vector<8x512xf32>
    %30 = arith.maximumf %28, %29 : vector<8x512xf32>
    %c1_27 = arith.constant 1 : index
    %c0_28 = arith.constant 0 : index
    %c0_29 = arith.constant 0 : index
    %31 = vector.load %arg3[%c1_27, %c0_28, %c0_29] : memref<6x512x256xf32, #tpu.memory_space<vmem>>, vector<1x512x256xf32>
    %32 = vector.shape_cast %31 : vector<1x512x256xf32> to vector<512x256xf32>
    %cst_30 = arith.constant dense<0.000000e+00> : vector<8x256xf32>
    %33 = tpu.matmul %30, %32, %cst_30 {dimension_numbers = #tpu.dot_dimension_numbers<[1], [0], [0], [1], [0, 0, 1, 1], [], []>} : vector<8x512xf32>, vector<512x256xf32>, vector<8x256xf32> -> vector<8x256xf32>
    %c1_31 = arith.constant 1 : index
    %c0_32 = arith.constant 0 : index
    %c0_33 = arith.constant 0 : index
    %34 = vector.load %arg4[%c1_31, %c0_32, %c0_33] : memref<6x1x256xf32, #tpu.memory_space<vmem>>, vector<1x1x256xf32>
    %35 = vector.shape_cast %34 : vector<1x1x256xf32> to vector<1x256xf32>
    %36 = vector.broadcast %35 : vector<1x256xf32> to vector<8x256xf32>
    %37 = arith.addf %33, %36 : vector<8x256xf32>
    %cst_34 = arith.constant 0.000000e+00 : f32
    %38 = vector.broadcast %cst_34 : f32 to vector<8x256xf32>
    %39 = arith.maximumf %37, %38 : vector<8x256xf32>
    %c2 = arith.constant 2 : index
    %c0_35 = arith.constant 0 : index
    %c0_36 = arith.constant 0 : index
    %40 = vector.load %arg0[%c2, %c0_35, %c0_36] : memref<6x8x64xf32, #tpu.memory_space<vmem>>, vector<1x8x64xf32>
    %41 = vector.shape_cast %40 : vector<1x8x64xf32> to vector<8x64xf32>
    %c2_37 = arith.constant 2 : index
    %c0_38 = arith.constant 0 : index
    %c0_39 = arith.constant 0 : index
    %42 = vector.load %arg1[%c2_37, %c0_38, %c0_39] : memref<6x64x512xf32, #tpu.memory_space<vmem>>, vector<1x64x512xf32>
    %43 = vector.shape_cast %42 : vector<1x64x512xf32> to vector<64x512xf32>
    %cst_40 = arith.constant dense<0.000000e+00> : vector<8x512xf32>
    %44 = tpu.matmul %41, %43, %cst_40 {dimension_numbers = #tpu.dot_dimension_numbers<[1], [0], [0], [1], [0, 0, 1, 1], [], []>} : vector<8x64xf32>, vector<64x512xf32>, vector<8x512xf32> -> vector<8x512xf32>
    %c2_41 = arith.constant 2 : index
    %c0_42 = arith.constant 0 : index
    %c0_43 = arith.constant 0 : index
    %45 = vector.load %arg2[%c2_41, %c0_42, %c0_43] : memref<6x1x512xf32, #tpu.memory_space<vmem>>, vector<1x1x512xf32>
    %46 = vector.shape_cast %45 : vector<1x1x512xf32> to vector<1x512xf32>
    %47 = vector.broadcast %46 : vector<1x512xf32> to vector<8x512xf32>
    %48 = arith.addf %44, %47 : vector<8x512xf32>
    %cst_44 = arith.constant 0.000000e+00 : f32
    %49 = vector.broadcast %cst_44 : f32 to vector<8x512xf32>
    %50 = arith.maximumf %48, %49 : vector<8x512xf32>
    %c2_45 = arith.constant 2 : index
    %c0_46 = arith.constant 0 : index
    %c0_47 = arith.constant 0 : index
    %51 = vector.load %arg3[%c2_45, %c0_46, %c0_47] : memref<6x512x256xf32, #tpu.memory_space<vmem>>, vector<1x512x256xf32>
    %52 = vector.shape_cast %51 : vector<1x512x256xf32> to vector<512x256xf32>
    %cst_48 = arith.constant dense<0.000000e+00> : vector<8x256xf32>
    %53 = tpu.matmul %50, %52, %cst_48 {dimension_numbers = #tpu.dot_dimension_numbers<[1], [0], [0], [1], [0, 0, 1, 1], [], []>} : vector<8x512xf32>, vector<512x256xf32>, vector<8x256xf32> -> vector<8x256xf32>
    %c2_49 = arith.constant 2 : index
    %c0_50 = arith.constant 0 : index
    %c0_51 = arith.constant 0 : index
    %54 = vector.load %arg4[%c2_49, %c0_50, %c0_51] : memref<6x1x256xf32, #tpu.memory_space<vmem>>, vector<1x1x256xf32>
    %55 = vector.shape_cast %54 : vector<1x1x256xf32> to vector<1x256xf32>
    %56 = vector.broadcast %55 : vector<1x256xf32> to vector<8x256xf32>
    %57 = arith.addf %53, %56 : vector<8x256xf32>
    %cst_52 = arith.constant 0.000000e+00 : f32
    %58 = vector.broadcast %cst_52 : f32 to vector<8x256xf32>
    %59 = arith.maximumf %57, %58 : vector<8x256xf32>
    %c3 = arith.constant 3 : index
    %c0_53 = arith.constant 0 : index
    %c0_54 = arith.constant 0 : index
    %60 = vector.load %arg0[%c3, %c0_53, %c0_54] : memref<6x8x64xf32, #tpu.memory_space<vmem>>, vector<1x8x64xf32>
    %61 = vector.shape_cast %60 : vector<1x8x64xf32> to vector<8x64xf32>
    %c3_55 = arith.constant 3 : index
    %c0_56 = arith.constant 0 : index
    %c0_57 = arith.constant 0 : index
    %62 = vector.load %arg1[%c3_55, %c0_56, %c0_57] : memref<6x64x512xf32, #tpu.memory_space<vmem>>, vector<1x64x512xf32>
    %63 = vector.shape_cast %62 : vector<1x64x512xf32> to vector<64x512xf32>
    %cst_58 = arith.constant dense<0.000000e+00> : vector<8x512xf32>
    %64 = tpu.matmul %61, %63, %cst_58 {dimension_numbers = #tpu.dot_dimension_numbers<[1], [0], [0], [1], [0, 0, 1, 1], [], []>} : vector<8x64xf32>, vector<64x512xf32>, vector<8x512xf32> -> vector<8x512xf32>
    %c3_59 = arith.constant 3 : index
    %c0_60 = arith.constant 0 : index
    %c0_61 = arith.constant 0 : index
    %65 = vector.load %arg2[%c3_59, %c0_60, %c0_61] : memref<6x1x512xf32, #tpu.memory_space<vmem>>, vector<1x1x512xf32>
    %66 = vector.shape_cast %65 : vector<1x1x512xf32> to vector<1x512xf32>
    %67 = vector.broadcast %66 : vector<1x512xf32> to vector<8x512xf32>
    %68 = arith.addf %64, %67 : vector<8x512xf32>
    %cst_62 = arith.constant 0.000000e+00 : f32
    %69 = vector.broadcast %cst_62 : f32 to vector<8x512xf32>
    %70 = arith.maximumf %68, %69 : vector<8x512xf32>
    %c3_63 = arith.constant 3 : index
    %c0_64 = arith.constant 0 : index
    %c0_65 = arith.constant 0 : index
    %71 = vector.load %arg3[%c3_63, %c0_64, %c0_65] : memref<6x512x256xf32, #tpu.memory_space<vmem>>, vector<1x512x256xf32>
    %72 = vector.shape_cast %71 : vector<1x512x256xf32> to vector<512x256xf32>
    %cst_66 = arith.constant dense<0.000000e+00> : vector<8x256xf32>
    %73 = tpu.matmul %70, %72, %cst_66 {dimension_numbers = #tpu.dot_dimension_numbers<[1], [0], [0], [1], [0, 0, 1, 1], [], []>} : vector<8x512xf32>, vector<512x256xf32>, vector<8x256xf32> -> vector<8x256xf32>
    %c3_67 = arith.constant 3 : index
    %c0_68 = arith.constant 0 : index
    %c0_69 = arith.constant 0 : index
    %74 = vector.load %arg4[%c3_67, %c0_68, %c0_69] : memref<6x1x256xf32, #tpu.memory_space<vmem>>, vector<1x1x256xf32>
    %75 = vector.shape_cast %74 : vector<1x1x256xf32> to vector<1x256xf32>
    %76 = vector.broadcast %75 : vector<1x256xf32> to vector<8x256xf32>
    %77 = arith.addf %73, %76 : vector<8x256xf32>
    %cst_70 = arith.constant 0.000000e+00 : f32
    %78 = vector.broadcast %cst_70 : f32 to vector<8x256xf32>
    %79 = arith.maximumf %77, %78 : vector<8x256xf32>
    %c4 = arith.constant 4 : index
    %c0_71 = arith.constant 0 : index
    %c0_72 = arith.constant 0 : index
    %80 = vector.load %arg0[%c4, %c0_71, %c0_72] : memref<6x8x64xf32, #tpu.memory_space<vmem>>, vector<1x8x64xf32>
    %81 = vector.shape_cast %80 : vector<1x8x64xf32> to vector<8x64xf32>
    %c4_73 = arith.constant 4 : index
    %c0_74 = arith.constant 0 : index
    %c0_75 = arith.constant 0 : index
    %82 = vector.load %arg1[%c4_73, %c0_74, %c0_75] : memref<6x64x512xf32, #tpu.memory_space<vmem>>, vector<1x64x512xf32>
    %83 = vector.shape_cast %82 : vector<1x64x512xf32> to vector<64x512xf32>
    %cst_76 = arith.constant dense<0.000000e+00> : vector<8x512xf32>
    %84 = tpu.matmul %81, %83, %cst_76 {dimension_numbers = #tpu.dot_dimension_numbers<[1], [0], [0], [1], [0, 0, 1, 1], [], []>} : vector<8x64xf32>, vector<64x512xf32>, vector<8x512xf32> -> vector<8x512xf32>
    %c4_77 = arith.constant 4 : index
    %c0_78 = arith.constant 0 : index
    %c0_79 = arith.constant 0 : index
    %85 = vector.load %arg2[%c4_77, %c0_78, %c0_79] : memref<6x1x512xf32, #tpu.memory_space<vmem>>, vector<1x1x512xf32>
    %86 = vector.shape_cast %85 : vector<1x1x512xf32> to vector<1x512xf32>
    %87 = vector.broadcast %86 : vector<1x512xf32> to vector<8x512xf32>
    %88 = arith.addf %84, %87 : vector<8x512xf32>
    %cst_80 = arith.constant 0.000000e+00 : f32
    %89 = vector.broadcast %cst_80 : f32 to vector<8x512xf32>
    %90 = arith.maximumf %88, %89 : vector<8x512xf32>
    %c4_81 = arith.constant 4 : index
    %c0_82 = arith.constant 0 : index
    %c0_83 = arith.constant 0 : index
    %91 = vector.load %arg3[%c4_81, %c0_82, %c0_83] : memref<6x512x256xf32, #tpu.memory_space<vmem>>, vector<1x512x256xf32>
    %92 = vector.shape_cast %91 : vector<1x512x256xf32> to vector<512x256xf32>
    %cst_84 = arith.constant dense<0.000000e+00> : vector<8x256xf32>
    %93 = tpu.matmul %90, %92, %cst_84 {dimension_numbers = #tpu.dot_dimension_numbers<[1], [0], [0], [1], [0, 0, 1, 1], [], []>} : vector<8x512xf32>, vector<512x256xf32>, vector<8x256xf32> -> vector<8x256xf32>
    %c4_85 = arith.constant 4 : index
    %c0_86 = arith.constant 0 : index
    %c0_87 = arith.constant 0 : index
    %94 = vector.load %arg4[%c4_85, %c0_86, %c0_87] : memref<6x1x256xf32, #tpu.memory_space<vmem>>, vector<1x1x256xf32>
    %95 = vector.shape_cast %94 : vector<1x1x256xf32> to vector<1x256xf32>
    %96 = vector.broadcast %95 : vector<1x256xf32> to vector<8x256xf32>
    %97 = arith.addf %93, %96 : vector<8x256xf32>
    %cst_88 = arith.constant 0.000000e+00 : f32
    %98 = vector.broadcast %cst_88 : f32 to vector<8x256xf32>
    %99 = arith.maximumf %97, %98 : vector<8x256xf32>
    %c5 = arith.constant 5 : index
    %c0_89 = arith.constant 0 : index
    %c0_90 = arith.constant 0 : index
    %100 = vector.load %arg0[%c5, %c0_89, %c0_90] : memref<6x8x64xf32, #tpu.memory_space<vmem>>, vector<1x8x64xf32>
    %101 = vector.shape_cast %100 : vector<1x8x64xf32> to vector<8x64xf32>
    %c5_91 = arith.constant 5 : index
    %c0_92 = arith.constant 0 : index
    %c0_93 = arith.constant 0 : index
    %102 = vector.load %arg1[%c5_91, %c0_92, %c0_93] : memref<6x64x512xf32, #tpu.memory_space<vmem>>, vector<1x64x512xf32>
    %103 = vector.shape_cast %102 : vector<1x64x512xf32> to vector<64x512xf32>
    %cst_94 = arith.constant dense<0.000000e+00> : vector<8x512xf32>
    %104 = tpu.matmul %101, %103, %cst_94 {dimension_numbers = #tpu.dot_dimension_numbers<[1], [0], [0], [1], [0, 0, 1, 1], [], []>} : vector<8x64xf32>, vector<64x512xf32>, vector<8x512xf32> -> vector<8x512xf32>
    %c5_95 = arith.constant 5 : index
    %c0_96 = arith.constant 0 : index
    %c0_97 = arith.constant 0 : index
    %105 = vector.load %arg2[%c5_95, %c0_96, %c0_97] : memref<6x1x512xf32, #tpu.memory_space<vmem>>, vector<1x1x512xf32>
    %106 = vector.shape_cast %105 : vector<1x1x512xf32> to vector<1x512xf32>
    %107 = vector.broadcast %106 : vector<1x512xf32> to vector<8x512xf32>
    %108 = arith.addf %104, %107 : vector<8x512xf32>
    %cst_98 = arith.constant 0.000000e+00 : f32
    %109 = vector.broadcast %cst_98 : f32 to vector<8x512xf32>
    %110 = arith.maximumf %108, %109 : vector<8x512xf32>
    %c5_99 = arith.constant 5 : index
    %c0_100 = arith.constant 0 : index
    %c0_101 = arith.constant 0 : index
    %111 = vector.load %arg3[%c5_99, %c0_100, %c0_101] : memref<6x512x256xf32, #tpu.memory_space<vmem>>, vector<1x512x256xf32>
    %112 = vector.shape_cast %111 : vector<1x512x256xf32> to vector<512x256xf32>
    %cst_102 = arith.constant dense<0.000000e+00> : vector<8x256xf32>
    %113 = tpu.matmul %110, %112, %cst_102 {dimension_numbers = #tpu.dot_dimension_numbers<[1], [0], [0], [1], [0, 0, 1, 1], [], []>} : vector<8x512xf32>, vector<512x256xf32>, vector<8x256xf32> -> vector<8x256xf32>
    %c5_103 = arith.constant 5 : index
    %c0_104 = arith.constant 0 : index
    %c0_105 = arith.constant 0 : index
    %114 = vector.load %arg4[%c5_103, %c0_104, %c0_105] : memref<6x1x256xf32, #tpu.memory_space<vmem>>, vector<1x1x256xf32>
    %115 = vector.shape_cast %114 : vector<1x1x256xf32> to vector<1x256xf32>
    %116 = vector.broadcast %115 : vector<1x256xf32> to vector<8x256xf32>
    %117 = arith.addf %113, %116 : vector<8x256xf32>
    %cst_106 = arith.constant 0.000000e+00 : f32
    %118 = vector.broadcast %cst_106 : f32 to vector<8x256xf32>
    %119 = arith.maximumf %117, %118 : vector<8x256xf32>
    %c0_107 = arith.constant 0 : index
    %c0_108 = arith.constant 0 : index
    %c0_109 = arith.constant 0 : index
    %120 = vector.load %arg5[%c0_107, %c0_108, %c0_109] : memref<2x256x128xf32, #tpu.memory_space<vmem>>, vector<1x256x128xf32>
    %121 = vector.shape_cast %120 : vector<1x256x128xf32> to vector<256x128xf32>
    %cst_110 = arith.constant dense<0.000000e+00> : vector<8x128xf32>
    %122 = tpu.matmul %19, %121, %cst_110 {dimension_numbers = #tpu.dot_dimension_numbers<[1], [0], [0], [1], [0, 0, 1, 1], [], []>} : vector<8x256xf32>, vector<256x128xf32>, vector<8x128xf32> -> vector<8x128xf32>
    %c0_111 = arith.constant 0 : index
    %c0_112 = arith.constant 0 : index
    %c0_113 = arith.constant 0 : index
    %123 = vector.load %arg6[%c0_111, %c0_112, %c0_113] : memref<2x1x128xf32, #tpu.memory_space<vmem>>, vector<1x1x128xf32>
    %124 = vector.shape_cast %123 : vector<1x1x128xf32> to vector<1x128xf32>
    %125 = vector.broadcast %124 : vector<1x128xf32> to vector<8x128xf32>
    %126 = arith.addf %122, %125 : vector<8x128xf32>
    %cst_114 = arith.constant 0.000000e+00 : f32
    %127 = vector.broadcast %cst_114 : f32 to vector<8x128xf32>
    %128 = arith.maximumf %126, %127 : vector<8x128xf32>
    %c0_115 = arith.constant 0 : index
    %c0_116 = arith.constant 0 : index
    %c0_117 = arith.constant 0 : index
    %129 = vector.load %arg11[%c0_115, %c0_116, %c0_117] : memref<2x8x128xf32, #tpu.memory_space<vmem>>, vector<1x8x128xf32>
    %130 = vector.shape_cast %129 : vector<1x8x128xf32> to vector<8x128xf32>
    %131 = vector.shape_cast %128 : vector<8x128xf32> to vector<1x8x128xf32>
    tpu.vector_store %arg11[%c0_115, %c0_116, %c0_117], %131 {strides = array<i32>} : memref<2x8x128xf32, #tpu.memory_space<vmem>>, vector<1x8x128xf32>,
    %c1_118 = arith.constant 1 : index
    %c0_119 = arith.constant 0 : index
    %c0_120 = arith.constant 0 : index
    %132 = vector.load %arg5[%c1_118, %c0_119, %c0_120] : memref<2x256x128xf32, #tpu.memory_space<vmem>>, vector<1x256x128xf32>
    %133 = vector.shape_cast %132 : vector<1x256x128xf32> to vector<256x128xf32>
    %cst_121 = arith.constant dense<0.000000e+00> : vector<8x128xf32>
    %134 = tpu.matmul %79, %133, %cst_121 {dimension_numbers = #tpu.dot_dimension_numbers<[1], [0], [0], [1], [0, 0, 1, 1], [], []>} : vector<8x256xf32>, vector<256x128xf32>, vector<8x128xf32> -> vector<8x128xf32>
    %c1_122 = arith.constant 1 : index
    %c0_123 = arith.constant 0 : index
    %c0_124 = arith.constant 0 : index
    %135 = vector.load %arg6[%c1_122, %c0_123, %c0_124] : memref<2x1x128xf32, #tpu.memory_space<vmem>>, vector<1x1x128xf32>
    %136 = vector.shape_cast %135 : vector<1x1x128xf32> to vector<1x128xf32>
    %137 = vector.broadcast %136 : vector<1x128xf32> to vector<8x128xf32>
    %138 = arith.addf %134, %137 : vector<8x128xf32>
    %cst_125 = arith.constant 0.000000e+00 : f32
    %139 = vector.broadcast %cst_125 : f32 to vector<8x128xf32>
    %140 = arith.maximumf %138, %139 : vector<8x128xf32>
    %c1_126 = arith.constant 1 : index
    %c0_127 = arith.constant 0 : index
    %c0_128 = arith.constant 0 : index
    %141 = vector.load %arg11[%c1_126, %c0_127, %c0_128] : memref<2x8x128xf32, #tpu.memory_space<vmem>>, vector<1x8x128xf32>
    %142 = vector.shape_cast %141 : vector<1x8x128xf32> to vector<8x128xf32>
    %143 = vector.shape_cast %140 : vector<8x128xf32> to vector<1x8x128xf32>
    tpu.vector_store %arg11[%c1_126, %c0_127, %c0_128], %143 {strides = array<i32>} : memref<2x8x128xf32, #tpu.memory_space<vmem>>, vector<1x8x128xf32>,
    %c0_129 = arith.constant 0 : index
    %c0_130 = arith.constant 0 : index
    %c0_131 = arith.constant 0 : index
    %144 = vector.load %arg7[%c0_129, %c0_130, %c0_131] : memref<2x256x128xf32, #tpu.memory_space<vmem>>, vector<1x256x128xf32>
    %145 = vector.shape_cast %144 : vector<1x256x128xf32> to vector<256x128xf32>
    %cst_132 = arith.constant dense<0.000000e+00> : vector<8x128xf32>
    %146 = tpu.matmul %39, %145, %cst_132 {dimension_numbers = #tpu.dot_dimension_numbers<[1], [0], [0], [1], [0, 0, 1, 1], [], []>} : vector<8x256xf32>, vector<256x128xf32>, vector<8x128xf32> -> vector<8x128xf32>
    %c0_133 = arith.constant 0 : index
    %c0_134 = arith.constant 0 : index
    %c0_135 = arith.constant 0 : index
    %147 = vector.load %arg8[%c0_133, %c0_134, %c0_135] : memref<2x1x128xf32, #tpu.memory_space<vmem>>, vector<1x1x128xf32>
    %148 = vector.shape_cast %147 : vector<1x1x128xf32> to vector<1x128xf32>
    %149 = vector.broadcast %148 : vector<1x128xf32> to vector<8x128xf32>
    %150 = arith.addf %146, %149 : vector<8x128xf32>
    %cst_136 = arith.constant 0.000000e+00 : f32
    %151 = vector.broadcast %cst_136 : f32 to vector<8x128xf32>
    %152 = arith.maximumf %150, %151 : vector<8x128xf32>
    %c0_137 = arith.constant 0 : index
    %c0_138 = arith.constant 0 : index
    %c0_139 = arith.constant 0 : index
    %153 = vector.load %arg12[%c0_137, %c0_138, %c0_139] : memref<2x8x128xf32, #tpu.memory_space<vmem>>, vector<1x8x128xf32>
    %154 = vector.shape_cast %153 : vector<1x8x128xf32> to vector<8x128xf32>
    %155 = vector.shape_cast %152 : vector<8x128xf32> to vector<1x8x128xf32>
    tpu.vector_store %arg12[%c0_137, %c0_138, %c0_139], %155 {strides = array<i32>} : memref<2x8x128xf32, #tpu.memory_space<vmem>>, vector<1x8x128xf32>,
    %c1_140 = arith.constant 1 : index
    %c0_141 = arith.constant 0 : index
    %c0_142 = arith.constant 0 : index
    %156 = vector.load %arg7[%c1_140, %c0_141, %c0_142] : memref<2x256x128xf32, #tpu.memory_space<vmem>>, vector<1x256x128xf32>
    %157 = vector.shape_cast %156 : vector<1x256x128xf32> to vector<256x128xf32>
    %cst_143 = arith.constant dense<0.000000e+00> : vector<8x128xf32>
    %158 = tpu.matmul %99, %157, %cst_143 {dimension_numbers = #tpu.dot_dimension_numbers<[1], [0], [0], [1], [0, 0, 1, 1], [], []>} : vector<8x256xf32>, vector<256x128xf32>, vector<8x128xf32> -> vector<8x128xf32>
    %c1_144 = arith.constant 1 : index
    %c0_145 = arith.constant 0 : index
    %c0_146 = arith.constant 0 : index
    %159 = vector.load %arg8[%c1_144, %c0_145, %c0_146] : memref<2x1x128xf32, #tpu.memory_space<vmem>>, vector<1x1x128xf32>
    %160 = vector.shape_cast %159 : vector<1x1x128xf32> to vector<1x128xf32>
    %161 = vector.broadcast %160 : vector<1x128xf32> to vector<8x128xf32>
    %162 = arith.addf %158, %161 : vector<8x128xf32>
    %cst_147 = arith.constant 0.000000e+00 : f32
    %163 = vector.broadcast %cst_147 : f32 to vector<8x128xf32>
    %164 = arith.maximumf %162, %163 : vector<8x128xf32>
    %c1_148 = arith.constant 1 : index
    %c0_149 = arith.constant 0 : index
    %c0_150 = arith.constant 0 : index
    %165 = vector.load %arg12[%c1_148, %c0_149, %c0_150] : memref<2x8x128xf32, #tpu.memory_space<vmem>>, vector<1x8x128xf32>
    %166 = vector.shape_cast %165 : vector<1x8x128xf32> to vector<8x128xf32>
    %167 = vector.shape_cast %164 : vector<8x128xf32> to vector<1x8x128xf32>
    tpu.vector_store %arg12[%c1_148, %c0_149, %c0_150], %167 {strides = array<i32>} : memref<2x8x128xf32, #tpu.memory_space<vmem>>, vector<1x8x128xf32>,
    %c0_151 = arith.constant 0 : index
    %c0_152 = arith.constant 0 : index
    %c0_153 = arith.constant 0 : index
    %168 = vector.load %arg9[%c0_151, %c0_152, %c0_153] : memref<2x256x256xf32, #tpu.memory_space<vmem>>, vector<1x256x256xf32>
    %169 = vector.shape_cast %168 : vector<1x256x256xf32> to vector<256x256xf32>
    %cst_154 = arith.constant dense<0.000000e+00> : vector<8x256xf32>
    %170 = tpu.matmul %59, %169, %cst_154 {dimension_numbers = #tpu.dot_dimension_numbers<[1], [0], [0], [1], [0, 0, 1, 1], [], []>} : vector<8x256xf32>, vector<256x256xf32>, vector<8x256xf32> -> vector<8x256xf32>
    %c0_155 = arith.constant 0 : index
    %c0_156 = arith.constant 0 : index
    %c0_157 = arith.constant 0 : index
    %171 = vector.load %arg10[%c0_155, %c0_156, %c0_157] : memref<2x1x256xf32, #tpu.memory_space<vmem>>, vector<1x1x256xf32>
    %172 = vector.shape_cast %171 : vector<1x1x256xf32> to vector<1x256xf32>
    %173 = vector.broadcast %172 : vector<1x256xf32> to vector<8x256xf32>
    %174 = arith.addf %170, %173 : vector<8x256xf32>
    %cst_158 = arith.constant 0.000000e+00 : f32
    %175 = vector.broadcast %cst_158 : f32 to vector<8x256xf32>
    %176 = arith.maximumf %174, %175 : vector<8x256xf32>
    %c0_159 = arith.constant 0 : index
    %c0_160 = arith.constant 0 : index
    %c0_161 = arith.constant 0 : index
    %177 = vector.load %arg13[%c0_159, %c0_160, %c0_161] : memref<2x8x256xf32, #tpu.memory_space<vmem>>, vector<1x8x256xf32>
    %178 = vector.shape_cast %177 : vector<1x8x256xf32> to vector<8x256xf32>
    %179 = vector.shape_cast %176 : vector<8x256xf32> to vector<1x8x256xf32>
    tpu.vector_store %arg13[%c0_159, %c0_160, %c0_161], %179 {strides = array<i32>} : memref<2x8x256xf32, #tpu.memory_space<vmem>>, vector<1x8x256xf32>,
    %c1_162 = arith.constant 1 : index
    %c0_163 = arith.constant 0 : index
    %c0_164 = arith.constant 0 : index
    %180 = vector.load %arg9[%c1_162, %c0_163, %c0_164] : memref<2x256x256xf32, #tpu.memory_space<vmem>>, vector<1x256x256xf32>
    %181 = vector.shape_cast %180 : vector<1x256x256xf32> to vector<256x256xf32>
    %cst_165 = arith.constant dense<0.000000e+00> : vector<8x256xf32>
    %182 = tpu.matmul %119, %181, %cst_165 {dimension_numbers = #tpu.dot_dimension_numbers<[1], [0], [0], [1], [0, 0, 1, 1], [], []>} : vector<8x256xf32>, vector<256x256xf32>, vector<8x256xf32> -> vector<8x256xf32>
    %c1_166 = arith.constant 1 : index
    %c0_167 = arith.constant 0 : index
    %c0_168 = arith.constant 0 : index
    %183 = vector.load %arg10[%c1_166, %c0_167, %c0_168] : memref<2x1x256xf32, #tpu.memory_space<vmem>>, vector<1x1x256xf32>
    %184 = vector.shape_cast %183 : vector<1x1x256xf32> to vector<1x256xf32>
    %185 = vector.broadcast %184 : vector<1x256xf32> to vector<8x256xf32>
    %186 = arith.addf %182, %185 : vector<8x256xf32>
    %cst_169 = arith.constant 0.000000e+00 : f32
    %187 = vector.broadcast %cst_169 : f32 to vector<8x256xf32>
    %188 = arith.maximumf %186, %187 : vector<8x256xf32>
    %c1_170 = arith.constant 1 : index
    %c0_171 = arith.constant 0 : index
    %c0_172 = arith.constant 0 : index
    %189 = vector.load %arg13[%c1_170, %c0_171, %c0_172] : memref<2x8x256xf32, #tpu.memory_space<vmem>>, vector<1x8x256xf32>
    %190 = vector.shape_cast %189 : vector<1x8x256xf32> to vector<8x256xf32>
    %191 = vector.shape_cast %188 : vector<8x256xf32> to vector<1x8x256xf32>
    tpu.vector_store %arg13[%c1_170, %c0_171, %c0_172], %191 {strides = array<i32>} : memref<2x8x256xf32, #tpu.memory_space<vmem>>, vector<1x8x256xf32>,
    return
  }
}

</mosaic_0001>

<llo_original>
// kernel: tpu_custom_call.1
$region0: #{tpu_custom_call.1}
  #allocation0 [shape = 'u32[]', space=smem, size = 0x4, offset = 0x4, fixed_abs, tag = 'smem constant byte address 0x4 - core index']
  #allocation1 [shape = 'u32[144,128]{1,0:T(1,128)}', space=vmem, size = 0x12000, scoped, tag = 'internal scratch']
  %s0 = inlined_call_operand.hbm [shape: f32[6,8,64], index: 0, kind: input, shape index: {}]
  %s1 = inlined_call_operand.hbm [shape: f32[6,64,512], index: 1, kind: input, shape index: {}]
  %s2 = inlined_call_operand.hbm [shape: f32[6,1,512], index: 2, kind: input, shape index: {}]
  %s3 = inlined_call_operand.hbm [shape: f32[6,512,256], index: 3, kind: input, shape index: {}]
  %s4 = inlined_call_operand.hbm [shape: f32[6,1,256], index: 4, kind: input, shape index: {}]
  %s5 = inlined_call_operand.hbm [shape: f32[2,256,128], index: 5, kind: input, shape index: {}]
  %s6 = inlined_call_operand.hbm [shape: f32[2,1,128], index: 6, kind: input, shape index: {}]
  %s7 = inlined_call_operand.hbm [shape: f32[2,256,128], index: 7, kind: input, shape index: {}]
  %s8 = inlined_call_operand.hbm [shape: f32[2,1,128], index: 8, kind: input, shape index: {}]
  %s9 = inlined_call_operand.hbm [shape: f32[2,256,256], index: 9, kind: input, shape index: {}]
  %s10 = inlined_call_operand.hbm [shape: f32[2,1,256], index: 10, kind: input, shape index: {}]
  %s11 = inlined_call_operand.hbm [shape: f32[2,8,128], index: 11, kind: output, shape index: {0}]
  %s12 = inlined_call_operand.hbm [shape: f32[2,8,128], index: 12, kind: output, shape index: {1}]
  %s13 = inlined_call_operand.hbm [shape: f32[2,8,256], index: 13, kind: output, shape index: {2}]
  %14 = xla_tuple %s11, %s12, %s13
  %s15 = sld [smem:[#allocation0]]
  $region114: #{tpu_custom_call.1} parent=0
    _
  %s17 = ssub.s32 1, %s15
  %s18 = scalar_select 0, %s17, %s15
  $region1: #{tpu_custom_call.1} parent=0
    #allocation2 [shape = 'u8[24576]{0}', space=vmem, size = 0x6000, scoped, tag = 'input window, operand 0, single buffered']
    #allocation3 [shape = 's32[1]{0}', space=sflag, size = 0x4, scoped, tag = 'scoped memory for tpu_custom_call.1']
    #allocation4 [shape = 's32[1]{0}', space=sflag, size = 0x4, scoped, tag = 'scoped memory for tpu_custom_call.1']
    #allocation5 [shape = 'u8[786432]{0}', space=vmem, size = 0xc0000, scoped, tag = 'input window, operand 1, single buffered']
    #allocation6 [shape = 's32[1]{0}', space=sflag, size = 0x4, scoped, tag = 'scoped memory for tpu_custom_call.1']
    #allocation7 [shape = 'u8[12288]{0}', space=vmem, size = 0x3000, scoped, tag = 'input window, operand 2, single buffered']
    #allocation8 [shape = 'u8[3145728]{0}', space=vmem, size = 0x300000, scoped, tag = 'input window, operand 3, single buffered']
    #allocation9 [shape = 's32[1]{0}', space=sflag, size = 0x4, scoped, tag = 'scoped memory for tpu_custom_call.1']
    #allocation10 [shape = 'u8[6144]{0}', space=vmem, size = 0x1800, scoped, tag = 'input window, operand 4, single buffered']
    #allocation11 [shape = 'u8[262144]{0}', space=vmem, size = 0x40000, scoped, tag = 'input window, operand 5, single buffered']
    #allocation12 [shape = 's32[1]{0}', space=sflag, size = 0x4, scoped, tag = 'scoped memory for tpu_custom_call.1']
    #allocation13 [shape = 'u8[1024]{0}', space=vmem, size = 0x400, scoped, tag = 'input window, operand 6, single buffered']
    #allocation14 [shape = 'u8[262144]{0}', space=vmem, size = 0x40000, scoped, tag = 'input window, operand 7, single buffered']
    #allocation15 [shape = 's32[1]{0}', space=sflag, size = 0x4, scoped, tag = 'scoped memory for tpu_custom_call.1']
    #allocation16 [shape = 'u8[1024]{0}', space=vmem, size = 0x400, scoped, tag = 'input window, operand 8, single buffered']
    #allocation17 [shape = 'u8[524288]{0}', space=vmem, size = 0x80000, scoped, tag = 'input window, operand 9, single buffered']
    #allocation18 [shape = 's32[1]{0}', space=sflag, size = 0x4, scoped, tag = 'scoped memory for tpu_custom_call.1']
    #allocation19 [shape = 'u8[2048]{0}', space=vmem, size = 0x800, scoped, tag = 'input window, operand 10, single buffered']
    #allocation20 [shape = 'u8[8192]{0}', space=vmem, size = 0x2000, scoped, tag = 'output window, operand 0, single buffered']
    #allocation21 [shape = 'u8[8192]{0}', space=vmem, size = 0x2000, scoped, tag = 'output window, operand 1, single buffered']
    #allocation22 [shape = 's32[1]{0}', space=sflag, size = 0x4, scoped, tag = 'scoped memory for tpu_custom_call.1']
    #allocation23 [shape = 'u8[16384]{0}', space=vmem, size = 0x4000, scoped, tag = 'output window, operand 2, single buffered']
    %19 = vsyncpa [#allocation3], 0
    %20 = vsyncpa [#allocation6], 0
    %21 = vsyncpa [#allocation9], 0
    %22 = vsyncpa [#allocation12], 0
    %23 = vsyncpa [#allocation15], 0
    %24 = vsyncpa [#allocation18], 0
    %25 = vsyncpa [#allocation4], 0
    %26 = vsyncpa [#allocation22], 0
    // Predicated region
    $region2: #{tpu_custom_call.1} parent=1 // pred_check
      _
    $region3: #{tpu_custom_call.1} parent=1 // pred_check_branch
      %28 = sbr.rel (0) target = $region5
    $region4: #{tpu_custom_call.1} parent=1 // pred_region
      %s30 = ssub.s32 768, 768
      %31 = vsyncadd [#allocation3], %s30
      %s32 = sshll.u32 [#allocation2], 4
      %s33 = int_to_ptr.vmem [resolvable:$true] %s32
      %38 = dma.hbm_to_vmem [thread:$0]  %s0, 768, %s33, [#allocation3], 128, 128, 8
    $region5: #{tpu_custom_call.1} parent=1 // pred_fallthru
      _
    // Predicated region
    $region6: #{tpu_custom_call.1} parent=1 // pred_check
      _
    $region7: #{tpu_custom_call.1} parent=1 // pred_check_branch
      %40 = sbr.rel (0) target = $region9
    $region8: #{tpu_custom_call.1} parent=1 // pred_region
      %s42 = ssub.s32 24576, 24576
      %43 = vsyncadd [#allocation6], %s42
      %s44 = sshll.u32 [#allocation5], 4
      %s45 = int_to_ptr.vmem [resolvable:$true] %s44
      %50 = dma.hbm_to_vmem [thread:$0]  %s1, 24576, %s45, [#allocation6], 512, 512, 32
    $region9: #{tpu_custom_call.1} parent=1 // pred_fallthru
      _
    // Predicated region
    $region10: #{tpu_custom_call.1} parent=1 // pred_check
      _
    $region11: #{tpu_custom_call.1} parent=1 // pred_check_branch
      %52 = sbr.rel (0) target = $region13
    $region12: #{tpu_custom_call.1} parent=1 // pred_region
      %s54 = ssub.s32 384, 384
      %55 = vsyncadd [#allocation6], %s54
      %s56 = sshll.u32 [#allocation7], 4
      %s57 = int_to_ptr.vmem [resolvable:$true] %s56
      %62 = dma.hbm_to_vmem [thread:$0]  %s2, 384, %s57, [#allocation6], 64, 64, 4
    $region13: #{tpu_custom_call.1} parent=1 // pred_fallthru
      _
    // Predicated region
    $region14: #{tpu_custom_call.1} parent=1 // pred_check
      _
    $region15: #{tpu_custom_call.1} parent=1 // pred_check_branch
      %64 = sbr.rel (0) target = $region17
    $region16: #{tpu_custom_call.1} parent=1 // pred_region
      %s66 = ssub.s32 98304, 98304
      %67 = vsyncadd [#allocation9], %s66
      %s68 = sshll.u32 [#allocation8], 4
      %s69 = int_to_ptr.vmem [resolvable:$true] %s68
      %74 = dma.hbm_to_vmem [thread:$0]  %s3, 98304, %s69, [#allocation9], 256, 256, 16
    $region17: #{tpu_custom_call.1} parent=1 // pred_fallthru
      _
    // Predicated region
    $region18: #{tpu_custom_call.1} parent=1 // pred_check
      _
    $region19: #{tpu_custom_call.1} parent=1 // pred_check_branch
      %76 = sbr.rel (0) target = $region21
    $region20: #{tpu_custom_call.1} parent=1 // pred_region
      %s78 = ssub.s32 192, 192
      %79 = vsyncadd [#allocation9], %s78
      %s80 = sshll.u32 [#allocation10], 4
      %s81 = int_to_ptr.vmem [resolvable:$true] %s80
      %86 = dma.hbm_to_vmem [thread:$0]  %s4, 192, %s81, [#allocation9], 32, 32, 2
    $region21: #{tpu_custom_call.1} parent=1 // pred_fallthru
      _
    // Predicated region
    $region22: #{tpu_custom_call.1} parent=1 // pred_check
      _
    $region23: #{tpu_custom_call.1} parent=1 // pred_check_branch
      %88 = sbr.rel (0) target = $region25
    $region24: #{tpu_custom_call.1} parent=1 // pred_region
      %s90 = ssub.s32 8192, 8192
      %91 = vsyncadd [#allocation12], %s90
      %s92 = sshll.u32 [#allocation11], 4
      %s93 = int_to_ptr.vmem [resolvable:$true] %s92
      %98 = dma.hbm_to_vmem [thread:$0]  %s5, 8192, %s93, [#allocation12], 128, 128, 8
    $region25: #{tpu_custom_call.1} parent=1 // pred_fallthru
      _
    // Predicated region
    $region26: #{tpu_custom_call.1} parent=1 // pred_check
      _
    $region27: #{tpu_custom_call.1} parent=1 // pred_check_branch
      %100 = sbr.rel (0) target = $region29
    $region28: #{tpu_custom_call.1} parent=1 // pred_region
      %s102 = ssub.s32 32, 32
      %103 = vsyncadd [#allocation12], %s102
      %s104 = sshll.u32 [#allocation13], 4
      %s105 = int_to_ptr.vmem [resolvable:$true] %s104
      %110 = dma.hbm_to_vmem [thread:$0]  %s6, 32, %s105, [#allocation12], 16, 16, 1
    $region29: #{tpu_custom_call.1} parent=1 // pred_fallthru
      _
    // Predicated region
    $region30: #{tpu_custom_call.1} parent=1 // pred_check
      _
    $region31: #{tpu_custom_call.1} parent=1 // pred_check_branch
      %112 = sbr.rel (0) target = $region33
    $region32: #{tpu_custom_call.1} parent=1 // pred_region
      %s114 = ssub.s32 8192, 8192
      %115 = vsyncadd [#allocation15], %s114
      %s116 = sshll.u32 [#allocation14], 4
      %s117 = int_to_ptr.vmem [resolvable:$true] %s116
      %122 = dma.hbm_to_vmem [thread:$0]  %s7, 8192, %s117, [#allocation15], 128, 128, 8
    $region33: #{tpu_custom_call.1} parent=1 // pred_fallthru
      _
    // Predicated region
    $region34: #{tpu_custom_call.1} parent=1 // pred_check
      _
    $region35: #{tpu_custom_call.1} parent=1 // pred_check_branch
      %124 = sbr.rel (0) target = $region37
    $region36: #{tpu_custom_call.1} parent=1 // pred_region
      %s126 = ssub.s32 32, 32
      %127 = vsyncadd [#allocation15], %s126
      %s128 = sshll.u32 [#allocation16], 4
      %s129 = int_to_ptr.vmem [resolvable:$true] %s128
      %134 = dma.hbm_to_vmem [thread:$0]  %s8, 32, %s129, [#allocation15], 16, 16, 1
    $region37: #{tpu_custom_call.1} parent=1 // pred_fallthru
      _
    // Predicated region
    $region38: #{tpu_custom_call.1} parent=1 // pred_check
      _
    $region39: #{tpu_custom_call.1} parent=1 // pred_check_branch
      %136 = sbr.rel (0) target = $region41
    $region40: #{tpu_custom_call.1} parent=1 // pred_region
      %s138 = ssub.s32 16384, 16384
      %139 = vsyncadd [#allocation18], %s138
      %s140 = sshll.u32 [#allocation17], 4
      %s141 = int_to_ptr.vmem [resolvable:$true] %s140
      %146 = dma.hbm_to_vmem [thread:$0]  %s9, 16384, %s141, [#allocation18], 256, 256, 16
    $region41: #{tpu_custom_call.1} parent=1 // pred_fallthru
      _
    // Predicated region
    $region42: #{tpu_custom_call.1} parent=1 // pred_check
      _
    $region43: #{tpu_custom_call.1} parent=1 // pred_check_branch
      %148 = sbr.rel (0) target = $region45
    $region44: #{tpu_custom_call.1} parent=1 // pred_region
      %s150 = ssub.s32 64, 64
      %151 = vsyncadd [#allocation18], %s150
      %s152 = sshll.u32 [#allocation19], 4
      %s153 = int_to_ptr.vmem [resolvable:$true] %s152
      %158 = dma.hbm_to_vmem [thread:$0]  %s10, 64, %s153, [#allocation18], 32, 32, 2
    $region45: #{tpu_custom_call.1} parent=1 // pred_fallthru
      _
    // Predicated region
    $region46: #{tpu_custom_call.1} parent=1 // pred_check
      _
    $region47: #{tpu_custom_call.1} parent=1 // pred_check_branch
      %160 = sbr.rel (0) target = $region49
    $region48: #{tpu_custom_call.1} parent=1 // pred_region
      %161 = dma.done [#allocation3], 768
    $region49: #{tpu_custom_call.1} parent=1 // pred_fallthru
      _
    // Predicated region
    $region50: #{tpu_custom_call.1} parent=1 // pred_check
      _
    $region51: #{tpu_custom_call.1} parent=1 // pred_check_branch
      %163 = sbr.rel (0) target = $region53
    $region52: #{tpu_custom_call.1} parent=1 // pred_region
      %164 = dma.done [#allocation6], 24576
    $region53: #{tpu_custom_call.1} parent=1 // pred_fallthru
      _
    // Predicated region
    $region54: #{tpu_custom_call.1} parent=1 // pred_check
      _
    $region55: #{tpu_custom_call.1} parent=1 // pred_check_branch
      %166 = sbr.rel (0) target = $region57
    $region56: #{tpu_custom_call.1} parent=1 // pred_region
      %167 = dma.done [#allocation6], 384
    $region57: #{tpu_custom_call.1} parent=1 // pred_fallthru
      _
    // Predicated region
    $region58: #{tpu_custom_call.1} parent=1 // pred_check
      _
    $region59: #{tpu_custom_call.1} parent=1 // pred_check_branch
      %169 = sbr.rel (0) target = $region61
    $region60: #{tpu_custom_call.1} parent=1 // pred_region
      %170 = dma.done [#allocation9], 98304
    $region61: #{tpu_custom_call.1} parent=1 // pred_fallthru
      _
    // Predicated region
    $region62: #{tpu_custom_call.1} parent=1 // pred_check
      _
    $region63: #{tpu_custom_call.1} parent=1 // pred_check_branch
      %172 = sbr.rel (0) target = $region65
    $region64: #{tpu_custom_call.1} parent=1 // pred_region
      %173 = dma.done [#allocation9], 192
    $region65: #{tpu_custom_call.1} parent=1 // pred_fallthru
      _
    // Predicated region
    $region66: #{tpu_custom_call.1} parent=1 // pred_check
      _
    $region67: #{tpu_custom_call.1} parent=1 // pred_check_branch
      %175 = sbr.rel (0) target = $region69
    $region68: #{tpu_custom_call.1} parent=1 // pred_region
      %176 = dma.done [#allocation12], 8192
    $region69: #{tpu_custom_call.1} parent=1 // pred_fallthru
      _
    // Predicated region
    $region70: #{tpu_custom_call.1} parent=1 // pred_check
      _
    $region71: #{tpu_custom_call.1} parent=1 // pred_check_branch
      %178 = sbr.rel (0) target = $region73
    $region72: #{tpu_custom_call.1} parent=1 // pred_region
      %179 = dma.done [#allocation12], 32
    $region73: #{tpu_custom_call.1} parent=1 // pred_fallthru
      _
    // Predicated region
    $region74: #{tpu_custom_call.1} parent=1 // pred_check
      _
    $region75: #{tpu_custom_call.1} parent=1 // pred_check_branch
      %181 = sbr.rel (0) target = $region77
    $region76: #{tpu_custom_call.1} parent=1 // pred_region
      %182 = dma.done [#allocation15], 8192
    $region77: #{tpu_custom_call.1} parent=1 // pred_fallthru
      _
    // Predicated region
    $region78: #{tpu_custom_call.1} parent=1 // pred_check
      _
    $region79: #{tpu_custom_call.1} parent=1 // pred_check_branch
      %184 = sbr.rel (0) target = $region81
    $region80: #{tpu_custom_call.1} parent=1 // pred_region
      %185 = dma.done [#allocation15], 32
    $region81: #{tpu_custom_call.1} parent=1 // pred_fallthru
      _
    // Predicated region
    $region82: #{tpu_custom_call.1} parent=1 // pred_check
      _
    $region83: #{tpu_custom_call.1} parent=1 // pred_check_branch
      %187 = sbr.rel (0) target = $region85
    $region84: #{tpu_custom_call.1} parent=1 // pred_region
      %188 = dma.done [#allocation18], 16384
    $region85: #{tpu_custom_call.1} parent=1 // pred_fallthru
      _
    // Predicated region
    $region86: #{tpu_custom_call.1} parent=1 // pred_check
      _
    $region87: #{tpu_custom_call.1} parent=1 // pred_check_branch
      %190 = sbr.rel (0) target = $region89
    $region88: #{tpu_custom_call.1} parent=1 // pred_region
      %191 = dma.done [#allocation18], 64
    $region89: #{tpu_custom_call.1} parent=1 // pred_fallthru
      _
    %v192 = vld [vmem:[#allocation2] sm:$0xff]
    %v193 = vld [vmem:[#allocation5] sm:$0xff]
    %v194 = vld [vmem:[#allocation5 + $0x8] sm:$0xff]
    %v195 = vld [vmem:[#allocation5 + $0x10] sm:$0xff]
    %v196 = vld [vmem:[#allocation5 + $0x18] sm:$0xff]
    %v197 = vld [vmem:[#allocation5 + $0x20] sm:$0xff]
    %v198 = vld [vmem:[#allocation5 + $0x28] sm:$0xff]
    %v199 = vld [vmem:[#allocation5 + $0x30] sm:$0xff]
    %v200 = vld [vmem:[#allocation5 + $0x38] sm:$0xff]
    %v201 = vld [vmem:[#allocation5 + $0x40] sm:$0xff]
    %v202 = vld [vmem:[#allocation5 + $0x48] sm:$0xff]
    %v203 = vld [vmem:[#allocation5 + $0x50] sm:$0xff]
    %v204 = vld [vmem:[#allocation5 + $0x58] sm:$0xff]
    %v205 = vld [vmem:[#allocation5 + $0x60] sm:$0xff]
    %v206 = vld [vmem:[#allocation5 + $0x68] sm:$0xff]
    %v207 = vld [vmem:[#allocation5 + $0x70] sm:$0xff]
    %v208 = vld [vmem:[#allocation5 + $0x78] sm:$0xff]
    %v209 = vld [vmem:[#allocation5 + $0x80] sm:$0xff]
    %v210 = vld [vmem:[#allocation5 + $0x88] sm:$0xff]
    %v211 = vld [vmem:[#allocation5 + $0x90] sm:$0xff]
    %v212 = vld [vmem:[#allocation5 + $0x98] sm:$0xff]
    %v213 = vld [vmem:[#allocation5 + $0xa0] sm:$0xff]
    %v214 = vld [vmem:[#allocation5 + $0xa8] sm:$0xff]
    %v215 = vld [vmem:[#allocation5 + $0xb0] sm:$0xff]
    %v216 = vld [vmem:[#allocation5 + $0xb8] sm:$0xff]
    %v217 = vld [vmem:[#allocation5 + $0xc0] sm:$0xff]
    %v218 = vld [vmem:[#allocation5 + $0xc8] sm:$0xff]
    %v219 = vld [vmem:[#allocation5 + $0xd0] sm:$0xff]
    %v220 = vld [vmem:[#allocation5 + $0xd8] sm:$0xff]
    %v221 = vld [vmem:[#allocation5 + $0xe0] sm:$0xff]
    %v222 = vld [vmem:[#allocation5 + $0xe8] sm:$0xff]
    %v223 = vld [vmem:[#allocation5 + $0xf0] sm:$0xff]
    %v224 = vld [vmem:[#allocation5 + $0xf8] sm:$0xff]
    %v225 = vld [vmem:[#allocation7] sm:$0xf]
    %v227 = vlaneseq
    %v228 = vshrl.u32 %v227, 7
    %v229 = vsub.s32 0, %v228
    %v230 = vrot.slane %v225, %v229
    %v231 = vlaneseq
    %v232 = vshrl.u32 %v231, 7
    %v233 = vsub.s32 1, %v232
    %v234 = vrot.slane %v225, %v233
    %v235 = vlaneseq
    %v236 = vshrl.u32 %v235, 7
    %v237 = vsub.s32 2, %v236
    %v238 = vrot.slane %v225, %v237
    %v239 = vlaneseq
    %v240 = vshrl.u32 %v239, 7
    %v241 = vsub.s32 3, %v240
    %v242 = vrot.slane %v225, %v241
    %vm247 = vcmask 523264
    %v249 = vsel %vm247, %v192, 0
    %251 = vmatprep.subr.mxu0 0.0
    %252 = vmatpush1.msra.mxu0 0.0
    %253 = vmatprep.subr.mxu0 0.0
    %254 = vmatpush1.msra.mxu0 0.0
    %255 = vmatprep.subr.mxu0 0.0
    %256 = vmatpush1.msra.mxu0 0.0
    %257 = vmatprep.subr.mxu0 0.0
    %258 = vmatpush1.msra.mxu0 0.0
    %259 = vmatprep.subr.mxu0 0.0
    %260 = vmatpush1.msra.mxu0 0.0
    %261 = vmatprep.subr.mxu0 0.0
    %262 = vmatpush1.msra.mxu0 0.0
    %263 = vmatprep.subr.mxu0 0.0
    %264 = vmatpush1.msra.mxu0 0.0
    %265 = vmatprep.subr.mxu0 0.0
    %266 = vmatpush1.msra.mxu0 0.0
    %267 = vmatprep.subr.mxu0 %v222
    %268 = vmatpush1.msra.mxu0 %v221
    %269 = vmatprep.subr.mxu0 %v218
    %270 = vmatpush1.msra.mxu0 %v217
    %271 = vmatprep.subr.mxu0 %v214
    %272 = vmatpush1.msra.mxu0 %v213
    %273 = vmatprep.subr.mxu0 %v210
    %274 = vmatpush1.msra.mxu0 %v209
    %275 = vmatprep.subr.mxu0 %v206
    %276 = vmatpush1.msra.mxu0 %v205
    %277 = vmatprep.subr.mxu0 %v202
    %278 = vmatpush1.msra.mxu0 %v201
    %279 = vmatprep.subr.mxu0 %v198
    %280 = vmatpush1.msra.mxu0 %v197
    %281 = vmatprep.subr.mxu0 %v194
    %282 = vmatpush1.msra.mxu0 %v193
    %283 = vmatprep.subr.mxu0 0.0
    %284 = vmatpush2.msra.mxu0 0.0
    %285 = vmatprep.subr.mxu0 0.0
    %286 = vmatpush2.msra.mxu0 0.0
    %287 = vmatprep.subr.mxu0 0.0
    %288 = vmatpush2.msra.mxu0 0.0
    %289 = vmatprep.subr.mxu0 0.0
    %290 = vmatpush2.msra.mxu0 0.0
    %291 = vmatprep.subr.mxu0 0.0
    %292 = vmatpush2.msra.mxu0 0.0
    %293 = vmatprep.subr.mxu0 0.0
    %294 = vmatpush2.msra.mxu0 0.0
    %295 = vmatprep.subr.mxu0 0.0
    %296 = vmatpush2.msra.mxu0 0.0
    %297 = vmatprep.subr.mxu0 0.0
    %298 = vmatpush2.msra.mxu0 0.0
    %299 = vmatprep.subr.mxu0 0.0
    %300 = vmatpush2.msra.mxu0 0.0
    %301 = vmatprep.subr.mxu0 0.0
    %302 = vmatpush2.msra.mxu0 0.0
    %303 = vmatprep.subr.mxu0 0.0
    %304 = vmatpush2.msra.mxu0 0.0
    %305 = vmatprep.subr.mxu0 0.0
    %306 = vmatpush2.msra.mxu0 0.0
    %307 = vmatprep.subr.mxu0 0.0
    %308 = vmatpush2.msra.mxu0 0.0
    %309 = vmatprep.subr.mxu0 0.0
    %310 = vmatpush2.msra.mxu0 0.0
    %311 = vmatprep.subr.mxu0 0.0
    %312 = vmatpush2.msra.mxu0 0.0
    %313 = vmatprep.subr.mxu0 0.0
    %314 = vmatpush2.msra.mxu0 0.0
    %315 = vmatprep.mubr.f32.mxu0 0.0
    %316 = vmatmul.mubr.f32.gmra.mxu0 %v249
    %v317 = vpop.f32.mrf.mxu0
    %v318 = vadd.f32 %v230, %v317
    %v319 = vpop.f32.mrf.mxu0
    %v320 = vadd.f32 %v234, %v319
    %321 = vdwg.mxu0
    %322 = vmatprep.subr.mxu0 0.0
    %323 = vmatpush1.msra.mxu0 0.0
    %324 = vmatprep.subr.mxu0 0.0
    %325 = vmatpush1.msra.mxu0 0.0
    %326 = vmatprep.subr.mxu0 0.0
    %327 = vmatpush1.msra.mxu0 0.0
    %328 = vmatprep.subr.mxu0 0.0
    %329 = vmatpush1.msra.mxu0 0.0
    %330 = vmatprep.subr.mxu0 0.0
    %331 = vmatpush1.msra.mxu0 0.0
    %332 = vmatprep.subr.mxu0 0.0
    %333 = vmatpush1.msra.mxu0 0.0
    %334 = vmatprep.subr.mxu0 0.0
    %335 = vmatpush1.msra.mxu0 0.0
    %336 = vmatprep.subr.mxu0 0.0
    %337 = vmatpush1.msra.mxu0 0.0
    %338 = vmatprep.subr.mxu0 %v224
    %339 = vmatpush1.msra.mxu0 %v223
    %340 = vmatprep.subr.mxu0 %v220
    %341 = vmatpush1.msra.mxu0 %v219
    %342 = vmatprep.subr.mxu0 %v216
    %343 = vmatpush1.msra.mxu0 %v215
    %344 = vmatprep.subr.mxu0 %v212
    %345 = vmatpush1.msra.mxu0 %v211
    %346 = vmatprep.subr.mxu0 %v208
    %347 = vmatpush1.msra.mxu0 %v207
    %348 = vmatprep.subr.mxu0 %v204
    %349 = vmatpush1.msra.mxu0 %v203
    %350 = vmatprep.subr.mxu0 %v200
    %351 = vmatpush1.msra.mxu0 %v199
    %352 = vmatprep.subr.mxu0 %v196
    %353 = vmatpush1.msra.mxu0 %v195
    %354 = vmatprep.subr.mxu0 0.0
    %355 = vmatpush2.msra.mxu0 0.0
    %356 = vmatprep.subr.mxu0 0.0
    %357 = vmatpush2.msra.mxu0 0.0
    %358 = vmatprep.subr.mxu0 0.0
    %359 = vmatpush2.msra.mxu0 0.0
    %360 = vmatprep.subr.mxu0 0.0
    %361 = vmatpush2.msra.mxu0 0.0
    %362 = vmatprep.subr.mxu0 0.0
    %363 = vmatpush2.msra.mxu0 0.0
    %364 = vmatprep.subr.mxu0 0.0
    %365 = vmatpush2.msra.mxu0 0.0
    %366 = vmatprep.subr.mxu0 0.0
    %367 = vmatpush2.msra.mxu0 0.0
    %368 = vmatprep.subr.mxu0 0.0
    %369 = vmatpush2.msra.mxu0 0.0
    %370 = vmatprep.subr.mxu0 0.0
    %371 = vmatpush2.msra.mxu0 0.0
    %372 = vmatprep.subr.mxu0 0.0
    %373 = vmatpush2.msra.mxu0 0.0
    %374 = vmatprep.subr.mxu0 0.0
    %375 = vmatpush2.msra.mxu0 0.0
    %376 = vmatprep.subr.mxu0 0.0
    %377 = vmatpush2.msra.mxu0 0.0
    %378 = vmatprep.subr.mxu0 0.0
    %379 = vmatpush2.msra.mxu0 0.0
    %380 = vmatprep.subr.mxu0 0.0
    %381 = vmatpush2.msra.mxu0 0.0
    %382 = vmatprep.subr.mxu0 0.0
    %383 = vmatpush2.msra.mxu0 0.0
    %384 = vmatprep.subr.mxu0 0.0
    %385 = vmatpush2.msra.mxu0 0.0
    %386 = vmatprep.mubr.f32.mxu0 0.0
    %387 = vmatmul.mubr.f32.gmra.mxu0 %v249
    %v388 = vpop.f32.mrf.mxu0
    %v389 = vadd.f32 %v238, %v388
    %v390 = vpop.f32.mrf.mxu0
    %v391 = vadd.f32 %v242, %v390
    %392 = vdwg.mxu0
    %v393 = vmax.f32 %v318, 0.0
    %v394 = vmax.f32 %v320, 0.0
    %v395 = vmax.f32 %v389, 0.0
    %v396 = vmax.f32 %v391, 0.0
    %v397 = vld [vmem:[#allocation8] sm:$0xff]
    %v398 = vld [vmem:[#allocation8 + $0x8] sm:$0xff]
    %v399 = vld [vmem:[#allocation8 + $0x10] sm:$0xff]
    %v400 = vld [vmem:[#allocation8 + $0x18] sm:$0xff]
    %v401 = vld [vmem:[#allocation8 + $0x20] sm:$0xff]
    %v402 = vld [vmem:[#allocation8 + $0x28] sm:$0xff]
    %v403 = vld [vmem:[#allocation8 + $0x30] sm:$0xff]
    %v404 = vld [vmem:[#allocation8 + $0x38] sm:$0xff]
    %v405 = vld [vmem:[#allocation8 + $0x40] sm:$0xff]
    %v406 = vld [vmem:[#allocation8 + $0x48] sm:$0xff]
    %v407 = vld [vmem:[#allocation8 + $0x50] sm:$0xff]
    %v408 = vld [vmem:[#allocation8 + $0x58] sm:$0xff]
    %v409 = vld [vmem:[#allocation8 + $0x60] sm:$0xff]
    %v410 = vld [vmem:[#allocation8 + $0x68] sm:$0xff]
    %v411 = vld [vmem:[#allocation8 + $0x70] sm:$0xff]
    %v412 = vld [vmem:[#allocation8 + $0x78] sm:$0xff]
    %v413 = vld [vmem:[#allocation8 + $0x80] sm:$0xff]
    %v414 = vld [vmem:[#allocation8 + $0x88] sm:$0xff]
    %v415 = vld [vmem:[#allocation8 + $0x90] sm:$0xff]
    %v416 = vld [vmem:[#allocation8 + $0x98] sm:$0xff]
    %v417 = vld [vmem:[#allocation8 + $0xa0] sm:$0xff]
    %v418 = vld [vmem:[#allocation8 + $0xa8] sm:$0xff]
    %v419 = vld [vmem:[#allocation8 + $0xb0] sm:$0xff]
    %v420 = vld [vmem:[#allocation8 + $0xb8] sm:$0xff]
    %v421 = vld [vmem:[#allocation8 + $0xc0] sm:$0xff]
    %v422 = vld [vmem:[#allocation8 + $0xc8] sm:$0xff]
    %v423 = vld [vmem:[#allocation8 + $0xd0] sm:$0xff]
    %v424 = vld [vmem:[#allocation8 + $0xd8] sm:$0xff]
    %v425 = vld [vmem:[#allocation8 + $0xe0] sm:$0xff]
    %v426 = vld [vmem:[#allocation8 + $0xe8] sm:$0xff]
    %v427 = vld [vmem:[#allocation8 + $0xf0] sm:$0xff]
    %v428 = vld [vmem:[#allocation8 + $0xf8] sm:$0xff]
    %v429 = vld [vmem:[#allocation8 + $0x100] sm:$0xff]
    %v430 = vld [vmem:[#allocation8 + $0x108] sm:$0xff]
    %v431 = vld [vmem:[#allocation8 + $0x110] sm:$0xff]
    %v432 = vld [vmem:[#allocation8 + $0x118] sm:$0xff]
    %v433 = vld [vmem:[#allocation8 + $0x120] sm:$0xff]
    %v434 = vld [vmem:[#allocation8 + $0x128] sm:$0xff]
    %v435 = vld [vmem:[#allocation8 + $0x130] sm:$0xff]
    %v436 = vld [vmem:[#allocation8 + $0x138] sm:$0xff]
    %v437 = vld [vmem:[#allocation8 + $0x140] sm:$0xff]
    %v438 = vld [vmem:[#allocation8 + $0x148] sm:$0xff]
    %v439 = vld [vmem:[#allocation8 + $0x150] sm:$0xff]
    %v440 = vld [vmem:[#allocation8 + $0x158] sm:$0xff]
    %v441 = vld [vmem:[#allocation8 + $0x160] sm:$0xff]
    %v442 = vld [vmem:[#allocation8 + $0x168] sm:$0xff]
    %v443 = vld [vmem:[#allocation8 + $0x170] sm:$0xff]
    %v444 = vld [vmem:[#allocation8 + $0x178] sm:$0xff]
    %v445 = vld [vmem:[#allocation8 + $0x180] sm:$0xff]
    %v446 = vld [vmem:[#allocation8 + $0x188] sm:$0xff]
    %v447 = vld [vmem:[#allocation8 + $0x190] sm:$0xff]
    %v448 = vld [vmem:[#allocation8 + $0x198] sm:$0xff]
    %v449 = vld [vmem:[#allocation8 + $0x1a0] sm:$0xff]
    %v450 = vld [vmem:[#allocation8 + $0x1a8] sm:$0xff]
    %v451 = vld [vmem:[#allocation8 + $0x1b0] sm:$0xff]
    %v452 = vld [vmem:[#allocation8 + $0x1b8] sm:$0xff]
    %v453 = vld [vmem:[#allocation8 + $0x1c0] sm:$0xff]
    %v454 = vld [vmem:[#allocation8 + $0x1c8] sm:$0xff]
    %v455 = vld [vmem:[#allocation8 + $0x1d0] sm:$0xff]
    %v456 = vld [vmem:[#allocation8 + $0x1d8] sm:$0xff]
    %v457 = vld [vmem:[#allocation8 + $0x1e0] sm:$0xff]
    %v458 = vld [vmem:[#allocation8 + $0x1e8] sm:$0xff]
    %v459 = vld [vmem:[#allocation8 + $0x1f0] sm:$0xff]
    %v460 = vld [vmem:[#allocation8 + $0x1f8] sm:$0xff]
    %v461 = vld [vmem:[#allocation8 + $0x200] sm:$0xff]
    %v462 = vld [vmem:[#allocation8 + $0x208] sm:$0xff]
    %v463 = vld [vmem:[#allocation8 + $0x210] sm:$0xff]
    %v464 = vld [vmem:[#allocation8 + $0x218] sm:$0xff]
    %v465 = vld [vmem:[#allocation8 + $0x220] sm:$0xff]
    %v466 = vld [vmem:[#allocation8 + $0x228] sm:$0xff]
    %v467 = vld [vmem:[#allocation8 + $0x230] sm:$0xff]
    %v468 = vld [vmem:[#allocation8 + $0x238] sm:$0xff]
    %v469 = vld [vmem:[#allocation8 + $0x240] sm:$0xff]
    %v470 = vld [vmem:[#allocation8 + $0x248] sm:$0xff]
    %v471 = vld [vmem:[#allocation8 + $0x250] sm:$0xff]
    %v472 = vld [vmem:[#allocation8 + $0x258] sm:$0xff]
    %v473 = vld [vmem:[#allocation8 + $0x260] sm:$0xff]
    %v474 = vld [vmem:[#allocation8 + $0x268] sm:$0xff]
    %v475 = vld [vmem:[#allocation8 + $0x270] sm:$0xff]
    %v476 = vld [vmem:[#allocation8 + $0x278] sm:$0xff]
    %v477 = vld [vmem:[#allocation8 + $0x280] sm:$0xff]
    %v478 = vld [vmem:[#allocation8 + $0x288] sm:$0xff]
    %v479 = vld [vmem:[#allocation8 + $0x290] sm:$0xff]
    %v480 = vld [vmem:[#allocation8 + $0x298] sm:$0xff]
    %v481 = vld [vmem:[#allocation8 + $0x2a0] sm:$0xff]
    %v482 = vld [vmem:[#allocation8 + $0x2a8] sm:$0xff]
    %v483 = vld [vmem:[#allocation8 + $0x2b0] sm:$0xff]
    %v484 = vld [vmem:[#allocation8 + $0x2b8] sm:$0xff]
    %v485 = vld [vmem:[#allocation8 + $0x2c0] sm:$0xff]
    %v486 = vld [vmem:[#allocation8 + $0x2c8] sm:$0xff]
    %v487 = vld [vmem:[#allocation8 + $0x2d0] sm:$0xff]
    %v488 = vld [vmem:[#allocation8 + $0x2d8] sm:$0xff]
    %v489 = vld [vmem:[#allocation8 + $0x2e0] sm:$0xff]
    %v490 = vld [vmem:[#allocation8 + $0x2e8] sm:$0xff]
    %v491 = vld [vmem:[#allocation8 + $0x2f0] sm:$0xff]
    %v492 = vld [vmem:[#allocation8 + $0x2f8] sm:$0xff]
    %v493 = vld [vmem:[#allocation8 + $0x300] sm:$0xff]
    %v494 = vld [vmem:[#allocation8 + $0x308] sm:$0xff]
    %v495 = vld [vmem:[#allocation8 + $0x310] sm:$0xff]
    %v496 = vld [vmem:[#allocation8 + $0x318] sm:$0xff]
    %v497 = vld [vmem:[#allocation8 + $0x320] sm:$0xff]
    %v498 = vld [vmem:[#allocation8 + $0x328] sm:$0xff]
    %v499 = vld [vmem:[#allocation8 + $0x330] sm:$0xff]
    %v500 = vld [vmem:[#allocation8 + $0x338] sm:$0xff]
    %v501 = vld [vmem:[#allocation8 + $0x340] sm:$0xff]
    %v502 = vld [vmem:[#allocation8 + $0x348] sm:$0xff]
    %v503 = vld [vmem:[#allocation8 + $0x350] sm:$0xff]
    %v504 = vld [vmem:[#allocation8 + $0x358] sm:$0xff]
    %v505 = vld [vmem:[#allocation8 + $0x360] sm:$0xff]
    %v506 = vld [vmem:[#allocation8 + $0x368] sm:$0xff]
    %v507 = vld [vmem:[#allocation8 + $0x370] sm:$0xff]
    %v508 = vld [vmem:[#allocation8 + $0x378] sm:$0xff]
    %v509 = vld [vmem:[#allocation8 + $0x380] sm:$0xff]
    %v510 = vld [vmem:[#allocation8 + $0x388] sm:$0xff]
    %v511 = vld [vmem:[#allocation8 + $0x390] sm:$0xff]
    %v512 = vld [vmem:[#allocation8 + $0x398] sm:$0xff]
    %v513 = vld [vmem:[#allocation8 + $0x3a0] sm:$0xff]
    %v514 = vld [vmem:[#allocation8 + $0x3a8] sm:$0xff]
    %v515 = vld [vmem:[#allocation8 + $0x3b0] sm:$0xff]
    %v516 = vld [vmem:[#allocation8 + $0x3b8] sm:$0xff]
    %v517 = vld [vmem:[#allocation8 + $0x3c0] sm:$0xff]
    %v518 = vld [vmem:[#allocation8 + $0x3c8] sm:$0xff]
    %v519 = vld [vmem:[#allocation8 + $0x3d0] sm:$0xff]
    %v520 = vld [vmem:[#allocation8 + $0x3d8] sm:$0xff]
    %v521 = vld [vmem:[#allocation8 + $0x3e0] sm:$0xff]
    %v522 = vld [vmem:[#allocation8 + $0x3e8] sm:$0xff]
    %v523 = vld [vmem:[#allocation8 + $0x3f0] sm:$0xff]
    %v524 = vld [vmem:[#allocation8 + $0x3f8] sm:$0xff]
    %v525 = vld [vmem:[#allocation10] sm:$0x3]
    %v527 = vlaneseq
    %v528 = vshrl.u32 %v527, 7
    %v529 = vsub.s32 0, %v528
    %v530 = vrot.slane %v525, %v529
    %v531 = vlaneseq
    %v532 = vshrl.u32 %v531, 7
    %v533 = vsub.s32 1, %v532
    %v534 = vrot.slane %v525, %v533
    %537 = vmatprep.subr.mxu0 %v428
    %538 = vmatpush1.msra.mxu0 %v427
    %539 = vmatprep.subr.mxu0 %v426
    %540 = vmatpush1.msra.mxu0 %v425
    %541 = vmatprep.subr.mxu0 %v424
    %542 = vmatpush1.msra.mxu0 %v423
    %543 = vmatprep.subr.mxu0 %v422
    %544 = vmatpush1.msra.mxu0 %v421
    %545 = vmatprep.subr.mxu0 %v420
    %546 = vmatpush1.msra.mxu0 %v419
    %547 = vmatprep.subr.mxu0 %v418
    %548 = vmatpush1.msra.mxu0 %v417
    %549 = vmatprep.subr.mxu0 %v416
    %550 = vmatpush1.msra.mxu0 %v415
    %551 = vmatprep.subr.mxu0 %v414
    %552 = vmatpush1.msra.mxu0 %v413
    %553 = vmatprep.subr.mxu0 %v412
    %554 = vmatpush1.msra.mxu0 %v411
    %555 = vmatprep.subr.mxu0 %v410
    %556 = vmatpush1.msra.mxu0 %v409
    %557 = vmatprep.subr.mxu0 %v408
    %558 = vmatpush1.msra.mxu0 %v407
    %559 = vmatprep.subr.mxu0 %v406
    %560 = vmatpush1.msra.mxu0 %v405
    %561 = vmatprep.subr.mxu0 %v404
    %562 = vmatpush1.msra.mxu0 %v403
    %563 = vmatprep.subr.mxu0 %v402
    %564 = vmatpush1.msra.mxu0 %v401
    %565 = vmatprep.subr.mxu0 %v400
    %566 = vmatpush1.msra.mxu0 %v399
    %567 = vmatprep.subr.mxu0 %v398
    %568 = vmatpush1.msra.mxu0 %v397
    %569 = vmatprep.subr.mxu0 %v460
    %570 = vmatpush2.msra.mxu0 %v459
    %571 = vmatprep.subr.mxu0 %v458
    %572 = vmatpush2.msra.mxu0 %v457
    %573 = vmatprep.subr.mxu0 %v456
    %574 = vmatpush2.msra.mxu0 %v455
    %575 = vmatprep.subr.mxu0 %v454
    %576 = vmatpush2.msra.mxu0 %v453
    %577 = vmatprep.subr.mxu0 %v452
    %578 = vmatpush2.msra.mxu0 %v451
    %579 = vmatprep.subr.mxu0 %v450
    %580 = vmatpush2.msra.mxu0 %v449
    %581 = vmatprep.subr.mxu0 %v448
    %582 = vmatpush2.msra.mxu0 %v447
    %583 = vmatprep.subr.mxu0 %v446
    %584 = vmatpush2.msra.mxu0 %v445
    %585 = vmatprep.subr.mxu0 %v444
    %586 = vmatpush2.msra.mxu0 %v443
    %587 = vmatprep.subr.mxu0 %v442
    %588 = vmatpush2.msra.mxu0 %v441
    %589 = vmatprep.subr.mxu0 %v440
    %590 = vmatpush2.msra.mxu0 %v439
    %591 = vmatprep.subr.mxu0 %v438
    %592 = vmatpush2.msra.mxu0 %v437
    %593 = vmatprep.subr.mxu0 %v436
    %594 = vmatpush2.msra.mxu0 %v435
    %595 = vmatprep.subr.mxu0 %v434
    %596 = vmatpush2.msra.mxu0 %v433
    %597 = vmatprep.subr.mxu0 %v432
    %598 = vmatpush2.msra.mxu0 %v431
    %599 = vmatprep.subr.mxu0 %v430
    %600 = vmatpush2.msra.mxu0 %v429
    %601 = vmatprep.mubr.f32.mxu0 %v394
    %602 = vmatmul.mubr.f32.gmra.mxu0 %v393
    %v603 = vpop.f32.mrf.mxu0
    %v604 = vadd.f32 %v530, %v603
    %v605 = vpop.f32.mrf.mxu0
    %v606 = vadd.f32 %v534, %v605
    %607 = vdwg.mxu0
    %608 = vmatprep.subr.mxu0 %v492
    %609 = vmatpush1.msra.mxu0 %v491
    %610 = vmatprep.subr.mxu0 %v490
    %611 = vmatpush1.msra.mxu0 %v489
    %612 = vmatprep.subr.mxu0 %v488
    %613 = vmatpush1.msra.mxu0 %v487
    %614 = vmatprep.subr.mxu0 %v486
    %615 = vmatpush1.msra.mxu0 %v485
    %616 = vmatprep.subr.mxu0 %v484
    %617 = vmatpush1.msra.mxu0 %v483
    %618 = vmatprep.subr.mxu0 %v482
    %619 = vmatpush1.msra.mxu0 %v481
    %620 = vmatprep.subr.mxu0 %v480
    %621 = vmatpush1.msra.mxu0 %v479
    %622 = vmatprep.subr.mxu0 %v478
    %623 = vmatpush1.msra.mxu0 %v477
    %624 = vmatprep.subr.mxu0 %v476
    %625 = vmatpush1.msra.mxu0 %v475
    %626 = vmatprep.subr.mxu0 %v474
    %627 = vmatpush1.msra.mxu0 %v473
    %628 = vmatprep.subr.mxu0 %v472
    %629 = vmatpush1.msra.mxu0 %v471
    %630 = vmatprep.subr.mxu0 %v470
    %631 = vmatpush1.msra.mxu0 %v469
    %632 = vmatprep.subr.mxu0 %v468
    %633 = vmatpush1.msra.mxu0 %v467
    %634 = vmatprep.subr.mxu0 %v466
    %635 = vmatpush1.msra.mxu0 %v465
    %636 = vmatprep.subr.mxu0 %v464
    %637 = vmatpush1.msra.mxu0 %v463
    %638 = vmatprep.subr.mxu0 %v462
    %639 = vmatpush1.msra.mxu0 %v461
    %640 = vmatprep.subr.mxu0 %v524
    %641 = vmatpush2.msra.mxu0 %v523
    %642 = vmatprep.subr.mxu0 %v522
    %643 = vmatpush2.msra.mxu0 %v521
    %644 = vmatprep.subr.mxu0 %v520
    %645 = vmatpush2.msra.mxu0 %v519
    %646 = vmatprep.subr.mxu0 %v518
    %647 = vmatpush2.msra.mxu0 %v517
    %648 = vmatprep.subr.mxu0 %v516
    %649 = vmatpush2.msra.mxu0 %v515
    %650 = vmatprep.subr.mxu0 %v514
    %651 = vmatpush2.msra.mxu0 %v513
    %652 = vmatprep.subr.mxu0 %v512
    %653 = vmatpush2.msra.mxu0 %v511
    %654 = vmatprep.subr.mxu0 %v510
    %655 = vmatpush2.msra.mxu0 %v509
    %656 = vmatprep.subr.mxu0 %v508
    %657 = vmatpush2.msra.mxu0 %v507
    %658 = vmatprep.subr.mxu0 %v506
    %659 = vmatpush2.msra.mxu0 %v505
    %660 = vmatprep.subr.mxu0 %v504
    %661 = vmatpush2.msra.mxu0 %v503
    %662 = vmatprep.subr.mxu0 %v502
    %663 = vmatpush2.msra.mxu0 %v501
    %664 = vmatprep.subr.mxu0 %v500
    %665 = vmatpush2.msra.mxu0 %v499
    %666 = vmatprep.subr.mxu0 %v498
    %667 = vmatpush2.msra.mxu0 %v497
    %668 = vmatprep.subr.mxu0 %v496
    %669 = vmatpush2.msra.mxu0 %v495
    %670 = vmatprep.subr.mxu0 %v494
    %671 = vmatpush2.msra.mxu0 %v493
    %672 = vmatprep.mubr.f32.mxu0 %v396
    %673 = vmatmul.mubr.f32.gmra.mxu0 %v395
    %v674 = vpop.f32.mrf.mxu0
    %v675 = vadd.f32 %v604, %v674
    %v676 = vpop.f32.mrf.mxu0
    %v677 = vadd.f32 %v606, %v676
    %678 = vdwg.mxu0
    %v679 = vmax.f32 %v675, 0.0
    %v680 = vmax.f32 %v677, 0.0
    %s681 = scalar_lea.vmem [#allocation2], 8
    %v682 = vld [vmem:[%s681] sm:$0xff]
    %s683 = scalar_lea.vmem [#allocation5], 256
    %v684 = vld [vmem:[%s683] sm:$0xff]
    %v685 = vld [vmem:[%s683 + $0x8] sm:$0xff]
    %v686 = vld [vmem:[%s683 + $0x10] sm:$0xff]
    %v687 = vld [vmem:[%s683 + $0x18] sm:$0xff]
    %v688 = vld [vmem:[%s683 + $0x20] sm:$0xff]
    %v689 = vld [vmem:[%s683 + $0x28] sm:$0xff]
    %v690 = vld [vmem:[%s683 + $0x30] sm:$0xff]
    %v691 = vld [vmem:[%s683 + $0x38] sm:$0xff]
    %v692 = vld [vmem:[%s683 + $0x40] sm:$0xff]
    %v693 = vld [vmem:[%s683 + $0x48] sm:$0xff]
    %v694 = vld [vmem:[%s683 + $0x50] sm:$0xff]
    %v695 = vld [vmem:[%s683 + $0x58] sm:$0xff]
    %v696 = vld [vmem:[%s683 + $0x60] sm:$0xff]
    %v697 = vld [vmem:[%s683 + $0x68] sm:$0xff]
    %v698 = vld [vmem:[%s683 + $0x70] sm:$0xff]
    %v699 = vld [vmem:[%s683 + $0x78] sm:$0xff]
    %v700 = vld [vmem:[%s683 + $0x80] sm:$0xff]
    %v701 = vld [vmem:[%s683 + $0x88] sm:$0xff]
    %v702 = vld [vmem:[%s683 + $0x90] sm:$0xff]
    %v703 = vld [vmem:[%s683 + $0x98] sm:$0xff]
    %v704 = vld [vmem:[%s683 + $0xa0] sm:$0xff]
    %v705 = vld [vmem:[%s683 + $0xa8] sm:$0xff]
    %v706 = vld [vmem:[%s683 + $0xb0] sm:$0xff]
    %v707 = vld [vmem:[%s683 + $0xb8] sm:$0xff]
    %v708 = vld [vmem:[%s683 + $0xc0] sm:$0xff]
    %v709 = vld [vmem:[%s683 + $0xc8] sm:$0xff]
    %v710 = vld [vmem:[%s683 + $0xd0] sm:$0xff]
    %v711 = vld [vmem:[%s683 + $0xd8] sm:$0xff]
    %v712 = vld [vmem:[%s683 + $0xe0] sm:$0xff]
    %v713 = vld [vmem:[%s683 + $0xe8] sm:$0xff]
    %v714 = vld [vmem:[%s683 + $0xf0] sm:$0xff]
    %v715 = vld [vmem:[%s683 + $0xf8] sm:$0xff]
    %s716 = scalar_lea.vmem [#allocation7], 4
    %v717 = vld [vmem:[%s716] sm:$0xf]
    %v719 = vlaneseq
    %v720 = vshrl.u32 %v719, 7
    %v721 = vsub.s32 0, %v720
    %v722 = vrot.slane %v717, %v721
    %v723 = vlaneseq
    %v724 = vshrl.u32 %v723, 7
    %v725 = vsub.s32 1, %v724
    %v726 = vrot.slane %v717, %v725
    %v727 = vlaneseq
    %v728 = vshrl.u32 %v727, 7
    %v729 = vsub.s32 2, %v728
    %v730 = vrot.slane %v717, %v729
    %v731 = vlaneseq
    %v732 = vshrl.u32 %v731, 7
    %v733 = vsub.s32 3, %v732
    %v734 = vrot.slane %v717, %v733
    %v740 = vsel %vm247, %v682, 0
    %742 = vmatprep.subr.mxu0 0.0
    %743 = vmatpush1.msra.mxu0 0.0
    %744 = vmatprep.subr.mxu0 0.0
    %745 = vmatpush1.msra.mxu0 0.0
    %746 = vmatprep.subr.mxu0 0.0
    %747 = vmatpush1.msra.mxu0 0.0
    %748 = vmatprep.subr.mxu0 0.0
    %749 = vmatpush1.msra.mxu0 0.0
    %750 = vmatprep.subr.mxu0 0.0
    %751 = vmatpush1.msra.mxu0 0.0
    %752 = vmatprep.subr.mxu0 0.0
    %753 = vmatpush1.msra.mxu0 0.0
    %754 = vmatprep.subr.mxu0 0.0
    %755 = vmatpush1.msra.mxu0 0.0
    %756 = vmatprep.subr.mxu0 0.0
    %757 = vmatpush1.msra.mxu0 0.0
    %758 = vmatprep.subr.mxu0 %v713
    %759 = vmatpush1.msra.mxu0 %v712
    %760 = vmatprep.subr.mxu0 %v709
    %761 = vmatpush1.msra.mxu0 %v708
    %762 = vmatprep.subr.mxu0 %v705
    %763 = vmatpush1.msra.mxu0 %v704
    %764 = vmatprep.subr.mxu0 %v701
    %765 = vmatpush1.msra.mxu0 %v700
    %766 = vmatprep.subr.mxu0 %v697
    %767 = vmatpush1.msra.mxu0 %v696
    %768 = vmatprep.subr.mxu0 %v693
    %769 = vmatpush1.msra.mxu0 %v692
    %770 = vmatprep.subr.mxu0 %v689
    %771 = vmatpush1.msra.mxu0 %v688
    %772 = vmatprep.subr.mxu0 %v685
    %773 = vmatpush1.msra.mxu0 %v684
    %774 = vmatprep.subr.mxu0 0.0
    %775 = vmatpush2.msra.mxu0 0.0
    %776 = vmatprep.subr.mxu0 0.0
    %777 = vmatpush2.msra.mxu0 0.0
    %778 = vmatprep.subr.mxu0 0.0
    %779 = vmatpush2.msra.mxu0 0.0
    %780 = vmatprep.subr.mxu0 0.0
    %781 = vmatpush2.msra.mxu0 0.0
    %782 = vmatprep.subr.mxu0 0.0
    %783 = vmatpush2.msra.mxu0 0.0
    %784 = vmatprep.subr.mxu0 0.0
    %785 = vmatpush2.msra.mxu0 0.0
    %786 = vmatprep.subr.mxu0 0.0
    %787 = vmatpush2.msra.mxu0 0.0
    %788 = vmatprep.subr.mxu0 0.0
    %789 = vmatpush2.msra.mxu0 0.0
    %790 = vmatprep.subr.mxu0 0.0
    %791 = vmatpush2.msra.mxu0 0.0
    %792 = vmatprep.subr.mxu0 0.0
    %793 = vmatpush2.msra.mxu0 0.0
    %794 = vmatprep.subr.mxu0 0.0
    %795 = vmatpush2.msra.mxu0 0.0
    %796 = vmatprep.subr.mxu0 0.0
    %797 = vmatpush2.msra.mxu0 0.0
    %798 = vmatprep.subr.mxu0 0.0
    %799 = vmatpush2.msra.mxu0 0.0
    %800 = vmatprep.subr.mxu0 0.0
    %801 = vmatpush2.msra.mxu0 0.0
    %802 = vmatprep.subr.mxu0 0.0
    %803 = vmatpush2.msra.mxu0 0.0
    %804 = vmatprep.subr.mxu0 0.0
    %805 = vmatpush2.msra.mxu0 0.0
    %806 = vmatprep.mubr.f32.mxu0 0.0
    %807 = vmatmul.mubr.f32.gmra.mxu0 %v740
    %v808 = vpop.f32.mrf.mxu0
    %v809 = vadd.f32 %v722, %v808
    %v810 = vpop.f32.mrf.mxu0
    %v811 = vadd.f32 %v726, %v810
    %812 = vdwg.mxu0
    %813 = vmatprep.subr.mxu0 0.0
    %814 = vmatpush1.msra.mxu0 0.0
    %815 = vmatprep.subr.mxu0 0.0
    %816 = vmatpush1.msra.mxu0 0.0
    %817 = vmatprep.subr.mxu0 0.0
    %818 = vmatpush1.msra.mxu0 0.0
    %819 = vmatprep.subr.mxu0 0.0
    %820 = vmatpush1.msra.mxu0 0.0
    %821 = vmatprep.subr.mxu0 0.0
    %822 = vmatpush1.msra.mxu0 0.0
    %823 = vmatprep.subr.mxu0 0.0
    %824 = vmatpush1.msra.mxu0 0.0
    %825 = vmatprep.subr.mxu0 0.0
    %826 = vmatpush1.msra.mxu0 0.0
    %827 = vmatprep.subr.mxu0 0.0
    %828 = vmatpush1.msra.mxu0 0.0
    %829 = vmatprep.subr.mxu0 %v715
    %830 = vmatpush1.msra.mxu0 %v714
    %831 = vmatprep.subr.mxu0 %v711
    %832 = vmatpush1.msra.mxu0 %v710
    %833 = vmatprep.subr.mxu0 %v707
    %834 = vmatpush1.msra.mxu0 %v706
    %835 = vmatprep.subr.mxu0 %v703
    %836 = vmatpush1.msra.mxu0 %v702
    %837 = vmatprep.subr.mxu0 %v699
    %838 = vmatpush1.msra.mxu0 %v698
    %839 = vmatprep.subr.mxu0 %v695
    %840 = vmatpush1.msra.mxu0 %v694
    %841 = vmatprep.subr.mxu0 %v691
    %842 = vmatpush1.msra.mxu0 %v690
    %843 = vmatprep.subr.mxu0 %v687
    %844 = vmatpush1.msra.mxu0 %v686
    %845 = vmatprep.subr.mxu0 0.0
    %846 = vmatpush2.msra.mxu0 0.0
    %847 = vmatprep.subr.mxu0 0.0
    %848 = vmatpush2.msra.mxu0 0.0
    %849 = vmatprep.subr.mxu0 0.0
    %850 = vmatpush2.msra.mxu0 0.0
    %851 = vmatprep.subr.mxu0 0.0
    %852 = vmatpush2.msra.mxu0 0.0
    %853 = vmatprep.subr.mxu0 0.0
    %854 = vmatpush2.msra.mxu0 0.0
    %855 = vmatprep.subr.mxu0 0.0
    %856 = vmatpush2.msra.mxu0 0.0
    %857 = vmatprep.subr.mxu0 0.0
    %858 = vmatpush2.msra.mxu0 0.0
    %859 = vmatprep.subr.mxu0 0.0
    %860 = vmatpush2.msra.mxu0 0.0
    %861 = vmatprep.subr.mxu0 0.0
    %862 = vmatpush2.msra.mxu0 0.0
    %863 = vmatprep.subr.mxu0 0.0
    %864 = vmatpush2.msra.mxu0 0.0
    %865 = vmatprep.subr.mxu0 0.0
    %866 = vmatpush2.msra.mxu0 0.0
    %867 = vmatprep.subr.mxu0 0.0
    %868 = vmatpush2.msra.mxu0 0.0
    %869 = vmatprep.subr.mxu0 0.0
    %870 = vmatpush2.msra.mxu0 0.0
    %871 = vmatprep.subr.mxu0 0.0
    %872 = vmatpush2.msra.mxu0 0.0
    %873 = vmatprep.subr.mxu0 0.0
    %874 = vmatpush2.msra.mxu0 0.0
    %875 = vmatprep.subr.mxu0 0.0
    %876 = vmatpush2.msra.mxu0 0.0
    %877 = vmatprep.mubr.f32.mxu0 0.0
    %878 = vmatmul.mubr.f32.gmra.mxu0 %v740
    %v879 = vpop.f32.mrf.mxu0
    %v880 = vadd.f32 %v730, %v879
    %v881 = vpop.f32.mrf.mxu0
    %v882 = vadd.f32 %v734, %v881
    %883 = vdwg.mxu0
    %v884 = vmax.f32 %v809, 0.0
    %v885 = vmax.f32 %v811, 0.0
    %v886 = vmax.f32 %v880, 0.0
    %v887 = vmax.f32 %v882, 0.0
    %s888 = scalar_lea.vmem [#allocation8], 1024
    %v889 = vld [vmem:[%s888] sm:$0xff]
    %v890 = vld [vmem:[%s888 + $0x8] sm:$0xff]
    %v891 = vld [vmem:[%s888 + $0x10] sm:$0xff]
    %v892 = vld [vmem:[%s888 + $0x18] sm:$0xff]
    %v893 = vld [vmem:[%s888 + $0x20] sm:$0xff]
    %v894 = vld [vmem:[%s888 + $0x28] sm:$0xff]
    %v895 = vld [vmem:[%s888 + $0x30] sm:$0xff]
    %v896 = vld [vmem:[%s888 + $0x38] sm:$0xff]
    %v897 = vld [vmem:[%s888 + $0x40] sm:$0xff]
    %v898 = vld [vmem:[%s888 + $0x48] sm:$0xff]
    %v899 = vld [vmem:[%s888 + $0x50] sm:$0xff]
    %v900 = vld [vmem:[%s888 + $0x58] sm:$0xff]
    %v901 = vld [vmem:[%s888 + $0x60] sm:$0xff]
    %v902 = vld [vmem:[%s888 + $0x68] sm:$0xff]
    %v903 = vld [vmem:[%s888 + $0x70] sm:$0xff]
    %v904 = vld [vmem:[%s888 + $0x78] sm:$0xff]
    %v905 = vld [vmem:[%s888 + $0x80] sm:$0xff]
    %v906 = vld [vmem:[%s888 + $0x88] sm:$0xff]
    %v907 = vld [vmem:[%s888 + $0x90] sm:$0xff]
    %v908 = vld [vmem:[%s888 + $0x98] sm:$0xff]
    %v909 = vld [vmem:[%s888 + $0xa0] sm:$0xff]
    %v910 = vld [vmem:[%s888 + $0xa8] sm:$0xff]
    %v911 = vld [vmem:[%s888 + $0xb0] sm:$0xff]
    %v912 = vld [vmem:[%s888 + $0xb8] sm:$0xff]
    %v913 = vld [vmem:[%s888 + $0xc0] sm:$0xff]
    %v914 = vld [vmem:[%s888 + $0xc8] sm:$0xff]
    %v915 = vld [vmem:[%s888 + $0xd0] sm:$0xff]
    %v916 = vld [vmem:[%s888 + $0xd8] sm:$0xff]
    %v917 = vld [vmem:[%s888 + $0xe0] sm:$0xff]
    %v918 = vld [vmem:[%s888 + $0xe8] sm:$0xff]
    %v919 = vld [vmem:[%s888 + $0xf0] sm:$0xff]
    %v920 = vld [vmem:[%s888 + $0xf8] sm:$0xff]
    %v921 = vld [vmem:[%s888 + $0x100] sm:$0xff]
    %v922 = vld [vmem:[%s888 + $0x108] sm:$0xff]
    %v923 = vld [vmem:[%s888 + $0x110] sm:$0xff]
    %v924 = vld [vmem:[%s888 + $0x118] sm:$0xff]
    %v925 = vld [vmem:[%s888 + $0x120] sm:$0xff]
    %v926 = vld [vmem:[%s888 + $0x128] sm:$0xff]
    %v927 = vld [vmem:[%s888 + $0x130] sm:$0xff]
    %v928 = vld [vmem:[%s888 + $0x138] sm:$0xff]
    %v929 = vld [vmem:[%s888 + $0x140] sm:$0xff]
    %v930 = vld [vmem:[%s888 + $0x148] sm:$0xff]
    %v931 = vld [vmem:[%s888 + $0x150] sm:$0xff]
    %v932 = vld [vmem:[%s888 + $0x158] sm:$0xff]
    %v933 = vld [vmem:[%s888 + $0x160] sm:$0xff]
    %v934 = vld [vmem:[%s888 + $0x168] sm:$0xff]
    %v935 = vld [vmem:[%s888 + $0x170] sm:$0xff]
    %v936 = vld [vmem:[%s888 + $0x178] sm:$0xff]
    %v937 = vld [vmem:[%s888 + $0x180] sm:$0xff]
    %v938 = vld [vmem:[%s888 + $0x188] sm:$0xff]
    %v939 = vld [vmem:[%s888 + $0x190] sm:$0xff]
    %v940 = vld [vmem:[%s888 + $0x198] sm:$0xff]
    %v941 = vld [vmem:[%s888 + $0x1a0] sm:$0xff]
    %v942 = vld [vmem:[%s888 + $0x1a8] sm:$0xff]
    %v943 = vld [vmem:[%s888 + $0x1b0] sm:$0xff]
    %v944 = vld [vmem:[%s888 + $0x1b8] sm:$0xff]
    %v945 = vld [vmem:[%s888 + $0x1c0] sm:$0xff]
    %v946 = vld [vmem:[%s888 + $0x1c8] sm:$0xff]
    %v947 = vld [vmem:[%s888 + $0x1d0] sm:$0xff]
    %v948 = vld [vmem:[%s888 + $0x1d8] sm:$0xff]
    %v949 = vld [vmem:[%s888 + $0x1e0] sm:$0xff]
    %v950 = vld [vmem:[%s888 + $0x1e8] sm:$0xff]
    %v951 = vld [vmem:[%s888 + $0x1f0] sm:$0xff]
    %v952 = vld [vmem:[%s888 + $0x1f8] sm:$0xff]
    %v953 = vld [vmem:[%s888 + $0x200] sm:$0xff]
    %v954 = vld [vmem:[%s888 + $0x208] sm:$0xff]
    %v955 = vld [vmem:[%s888 + $0x210] sm:$0xff]
    %v956 = vld [vmem:[%s888 + $0x218] sm:$0xff]
    %v957 = vld [vmem:[%s888 + $0x220] sm:$0xff]
    %v958 = vld [vmem:[%s888 + $0x228] sm:$0xff]
    %v959 = vld [vmem:[%s888 + $0x230] sm:$0xff]
    %v960 = vld [vmem:[%s888 + $0x238] sm:$0xff]
    %v961 = vld [vmem:[%s888 + $0x240] sm:$0xff]
    %v962 = vld [vmem:[%s888 + $0x248] sm:$0xff]
    %v963 = vld [vmem:[%s888 + $0x250] sm:$0xff]
    %v964 = vld [vmem:[%s888 + $0x258] sm:$0xff]
    %v965 = vld [vmem:[%s888 + $0x260] sm:$0xff]
    %v966 = vld [vmem:[%s888 + $0x268] sm:$0xff]
    %v967 = vld [vmem:[%s888 + $0x270] sm:$0xff]
    %v968 = vld [vmem:[%s888 + $0x278] sm:$0xff]
    %v969 = vld [vmem:[%s888 + $0x280] sm:$0xff]
    %v970 = vld [vmem:[%s888 + $0x288] sm:$0xff]
    %v971 = vld [vmem:[%s888 + $0x290] sm:$0xff]
    %v972 = vld [vmem:[%s888 + $0x298] sm:$0xff]
    %v973 = vld [vmem:[%s888 + $0x2a0] sm:$0xff]
    %v974 = vld [vmem:[%s888 + $0x2a8] sm:$0xff]
    %v975 = vld [vmem:[%s888 + $0x2b0] sm:$0xff]
    %v976 = vld [vmem:[%s888 + $0x2b8] sm:$0xff]
    %v977 = vld [vmem:[%s888 + $0x2c0] sm:$0xff]
    %v978 = vld [vmem:[%s888 + $0x2c8] sm:$0xff]
    %v979 = vld [vmem:[%s888 + $0x2d0] sm:$0xff]
    %v980 = vld [vmem:[%s888 + $0x2d8] sm:$0xff]
    %v981 = vld [vmem:[%s888 + $0x2e0] sm:$0xff]
    %v982 = vld [vmem:[%s888 + $0x2e8] sm:$0xff]
    %v983 = vld [vmem:[%s888 + $0x2f0] sm:$0xff]
    %v984 = vld [vmem:[%s888 + $0x2f8] sm:$0xff]
    %v985 = vld [vmem:[%s888 + $0x300] sm:$0xff]
    %v986 = vld [vmem:[%s888 + $0x308] sm:$0xff]
    %v987 = vld [vmem:[%s888 + $0x310] sm:$0xff]
    %v988 = vld [vmem:[%s888 + $0x318] sm:$0xff]
    %v989 = vld [vmem:[%s888 + $0x320] sm:$0xff]
    %v990 = vld [vmem:[%s888 + $0x328] sm:$0xff]
    %v991 = vld [vmem:[%s888 + $0x330] sm:$0xff]
    %v992 = vld [vmem:[%s888 + $0x338] sm:$0xff]
    %v993 = vld [vmem:[%s888 + $0x340] sm:$0xff]
    %v994 = vld [vmem:[%s888 + $0x348] sm:$0xff]
    %v995 = vld [vmem:[%s888 + $0x350] sm:$0xff]
    %v996 = vld [vmem:[%s888 + $0x358] sm:$0xff]
    %v997 = vld [vmem:[%s888 + $0x360] sm:$0xff]
    %v998 = vld [vmem:[%s888 + $0x368] sm:$0xff]
    %v999 = vld [vmem:[%s888 + $0x370] sm:$0xff]
    %v1000 = vld [vmem:[%s888 + $0x378] sm:$0xff]
    %v1001 = vld [vmem:[%s888 + $0x380] sm:$0xff]
    %v1002 = vld [vmem:[%s888 + $0x388] sm:$0xff]
    %v1003 = vld [vmem:[%s888 + $0x390] sm:$0xff]
    %v1004 = vld [vmem:[%s888 + $0x398] sm:$0xff]
    %v1005 = vld [vmem:[%s888 + $0x3a0] sm:$0xff]
    %v1006 = vld [vmem:[%s888 + $0x3a8] sm:$0xff]
    %v1007 = vld [vmem:[%s888 + $0x3b0] sm:$0xff]
    %v1008 = vld [vmem:[%s888 + $0x3b8] sm:$0xff]
    %v1009 = vld [vmem:[%s888 + $0x3c0] sm:$0xff]
    %v1010 = vld [vmem:[%s888 + $0x3c8] sm:$0xff]
    %v1011 = vld [vmem:[%s888 + $0x3d0] sm:$0xff]
    %v1012 = vld [vmem:[%s888 + $0x3d8] sm:$0xff]
    %v1013 = vld [vmem:[%s888 + $0x3e0] sm:$0xff]
    %v1014 = vld [vmem:[%s888 + $0x3e8] sm:$0xff]
    %v1015 = vld [vmem:[%s888 + $0x3f0] sm:$0xff]
    %v1016 = vld [vmem:[%s888 + $0x3f8] sm:$0xff]
    %s1017 = scalar_lea.vmem [#allocation10], 2
    %v1018 = vld [vmem:[%s1017] sm:$0x3]
    %v1020 = vlaneseq
    %v1021 = vshrl.u32 %v1020, 7
    %v1022 = vsub.s32 0, %v1021
    %v1023 = vrot.slane %v1018, %v1022
    %v1024 = vlaneseq
    %v1025 = vshrl.u32 %v1024, 7
    %v1026 = vsub.s32 1, %v1025
    %v1027 = vrot.slane %v1018, %v1026
    %1030 = vmatprep.subr.mxu0 %v920
    %1031 = vmatpush1.msra.mxu0 %v919
    %1032 = vmatprep.subr.mxu0 %v918
    %1033 = vmatpush1.msra.mxu0 %v917
    %1034 = vmatprep.subr.mxu0 %v916
    %1035 = vmatpush1.msra.mxu0 %v915
    %1036 = vmatprep.subr.mxu0 %v914
    %1037 = vmatpush1.msra.mxu0 %v913
    %1038 = vmatprep.subr.mxu0 %v912
    %1039 = vmatpush1.msra.mxu0 %v911
    %1040 = vmatprep.subr.mxu0 %v910
    %1041 = vmatpush1.msra.mxu0 %v909
    %1042 = vmatprep.subr.mxu0 %v908
    %1043 = vmatpush1.msra.mxu0 %v907
    %1044 = vmatprep.subr.mxu0 %v906
    %1045 = vmatpush1.msra.mxu0 %v905
    %1046 = vmatprep.subr.mxu0 %v904
    %1047 = vmatpush1.msra.mxu0 %v903
    %1048 = vmatprep.subr.mxu0 %v902
    %1049 = vmatpush1.msra.mxu0 %v901
    %1050 = vmatprep.subr.mxu0 %v900
    %1051 = vmatpush1.msra.mxu0 %v899
    %1052 = vmatprep.subr.mxu0 %v898
    %1053 = vmatpush1.msra.mxu0 %v897
    %1054 = vmatprep.subr.mxu0 %v896
    %1055 = vmatpush1.msra.mxu0 %v895
    %1056 = vmatprep.subr.mxu0 %v894
    %1057 = vmatpush1.msra.mxu0 %v893
    %1058 = vmatprep.subr.mxu0 %v892
    %1059 = vmatpush1.msra.mxu0 %v891
    %1060 = vmatprep.subr.mxu0 %v890
    %1061 = vmatpush1.msra.mxu0 %v889
    %1062 = vmatprep.subr.mxu0 %v952
    %1063 = vmatpush2.msra.mxu0 %v951
    %1064 = vmatprep.subr.mxu0 %v950
    %1065 = vmatpush2.msra.mxu0 %v949
    %1066 = vmatprep.subr.mxu0 %v948
    %1067 = vmatpush2.msra.mxu0 %v947
    %1068 = vmatprep.subr.mxu0 %v946
    %1069 = vmatpush2.msra.mxu0 %v945
    %1070 = vmatprep.subr.mxu0 %v944
    %1071 = vmatpush2.msra.mxu0 %v943
    %1072 = vmatprep.subr.mxu0 %v942
    %1073 = vmatpush2.msra.mxu0 %v941
    %1074 = vmatprep.subr.mxu0 %v940
    %1075 = vmatpush2.msra.mxu0 %v939
    %1076 = vmatprep.subr.mxu0 %v938
    %1077 = vmatpush2.msra.mxu0 %v937
    %1078 = vmatprep.subr.mxu0 %v936
    %1079 = vmatpush2.msra.mxu0 %v935
    %1080 = vmatprep.subr.mxu0 %v934
    %1081 = vmatpush2.msra.mxu0 %v933
    %1082 = vmatprep.subr.mxu0 %v932
    %1083 = vmatpush2.msra.mxu0 %v931
    %1084 = vmatprep.subr.mxu0 %v930
    %1085 = vmatpush2.msra.mxu0 %v929
    %1086 = vmatprep.subr.mxu0 %v928
    %1087 = vmatpush2.msra.mxu0 %v927
    %1088 = vmatprep.subr.mxu0 %v926
    %1089 = vmatpush2.msra.mxu0 %v925
    %1090 = vmatprep.subr.mxu0 %v924
    %1091 = vmatpush2.msra.mxu0 %v923
    %1092 = vmatprep.subr.mxu0 %v922
    %1093 = vmatpush2.msra.mxu0 %v921
    %1094 = vmatprep.mubr.f32.mxu0 %v885
    %1095 = vmatmul.mubr.f32.gmra.mxu0 %v884
    %v1096 = vpop.f32.mrf.mxu0
    %v1097 = vadd.f32 %v1023, %v1096
    %v1098 = vpop.f32.mrf.mxu0
    %v1099 = vadd.f32 %v1027, %v1098
    %1100 = vdwg.mxu0
    %1101 = vmatprep.subr.mxu0 %v984
    %1102 = vmatpush1.msra.mxu0 %v983
    %1103 = vmatprep.subr.mxu0 %v982
    %1104 = vmatpush1.msra.mxu0 %v981
    %1105 = vmatprep.subr.mxu0 %v980
    %1106 = vmatpush1.msra.mxu0 %v979
    %1107 = vmatprep.subr.mxu0 %v978
    %1108 = vmatpush1.msra.mxu0 %v977
    %1109 = vmatprep.subr.mxu0 %v976
    %1110 = vmatpush1.msra.mxu0 %v975
    %1111 = vmatprep.subr.mxu0 %v974
    %1112 = vmatpush1.msra.mxu0 %v973
    %1113 = vmatprep.subr.mxu0 %v972
    %1114 = vmatpush1.msra.mxu0 %v971
    %1115 = vmatprep.subr.mxu0 %v970
    %1116 = vmatpush1.msra.mxu0 %v969
    %1117 = vmatprep.subr.mxu0 %v968
    %1118 = vmatpush1.msra.mxu0 %v967
    %1119 = vmatprep.subr.mxu0 %v966
    %1120 = vmatpush1.msra.mxu0 %v965
    %1121 = vmatprep.subr.mxu0 %v964
    %1122 = vmatpush1.msra.mxu0 %v963
    %1123 = vmatprep.subr.mxu0 %v962
    %1124 = vmatpush1.msra.mxu0 %v961
    %1125 = vmatprep.subr.mxu0 %v960
    %1126 = vmatpush1.msra.mxu0 %v959
    %1127 = vmatprep.subr.mxu0 %v958
    %1128 = vmatpush1.msra.mxu0 %v957
    %1129 = vmatprep.subr.mxu0 %v956
    %1130 = vmatpush1.msra.mxu0 %v955
    %1131 = vmatprep.subr.mxu0 %v954
    %1132 = vmatpush1.msra.mxu0 %v953
    %1133 = vmatprep.subr.mxu0 %v1016
    %1134 = vmatpush2.msra.mxu0 %v1015
    %1135 = vmatprep.subr.mxu0 %v1014
    %1136 = vmatpush2.msra.mxu0 %v1013
    %1137 = vmatprep.subr.mxu0 %v1012
    %1138 = vmatpush2.msra.mxu0 %v1011
    %1139 = vmatprep.subr.mxu0 %v1010
    %1140 = vmatpush2.msra.mxu0 %v1009
    %1141 = vmatprep.subr.mxu0 %v1008
    %1142 = vmatpush2.msra.mxu0 %v1007
    %1143 = vmatprep.subr.mxu0 %v1006
    %1144 = vmatpush2.msra.mxu0 %v1005
    %1145 = vmatprep.subr.mxu0 %v1004
    %1146 = vmatpush2.msra.mxu0 %v1003
    %1147 = vmatprep.subr.mxu0 %v1002
    %1148 = vmatpush2.msra.mxu0 %v1001
    %1149 = vmatprep.subr.mxu0 %v1000
    %1150 = vmatpush2.msra.mxu0 %v999
    %1151 = vmatprep.subr.mxu0 %v998
    %1152 = vmatpush2.msra.mxu0 %v997
    %1153 = vmatprep.subr.mxu0 %v996
    %1154 = vmatpush2.msra.mxu0 %v995
    %1155 = vmatprep.subr.mxu0 %v994
    %1156 = vmatpush2.msra.mxu0 %v993
    %1157 = vmatprep.subr.mxu0 %v992
    %1158 = vmatpush2.msra.mxu0 %v991
    %1159 = vmatprep.subr.mxu0 %v990
    %1160 = vmatpush2.msra.mxu0 %v989
    %1161 = vmatprep.subr.mxu0 %v988
    %1162 = vmatpush2.msra.mxu0 %v987
    %1163 = vmatprep.subr.mxu0 %v986
    %1164 = vmatpush2.msra.mxu0 %v985
    %1165 = vmatprep.mubr.f32.mxu0 %v887
    %1166 = vmatmul.mubr.f32.gmra.mxu0 %v886
    %v1167 = vpop.f32.mrf.mxu0
    %v1168 = vadd.f32 %v1097, %v1167
    %v1169 = vpop.f32.mrf.mxu0
    %v1170 = vadd.f32 %v1099, %v1169
    %1171 = vdwg.mxu0
    %v1172 = vmax.f32 %v1168, 0.0
    %v1173 = vmax.f32 %v1170, 0.0
    %s1174 = scalar_lea.vmem [#allocation2], 16
    %v1175 = vld [vmem:[%s1174] sm:$0xff]
    %s1176 = scalar_lea.vmem [#allocation5], 512
    %v1177 = vld [vmem:[%s1176] sm:$0xff]
    %v1178 = vld [vmem:[%s1176 + $0x8] sm:$0xff]
    %v1179 = vld [vmem:[%s1176 + $0x10] sm:$0xff]
    %v1180 = vld [vmem:[%s1176 + $0x18] sm:$0xff]
    %v1181 = vld [vmem:[%s1176 + $0x20] sm:$0xff]
    %v1182 = vld [vmem:[%s1176 + $0x28] sm:$0xff]
    %v1183 = vld [vmem:[%s1176 + $0x30] sm:$0xff]
    %v1184 = vld [vmem:[%s1176 + $0x38] sm:$0xff]
    %v1185 = vld [vmem:[%s1176 + $0x40] sm:$0xff]
    %v1186 = vld [vmem:[%s1176 + $0x48] sm:$0xff]
    %v1187 = vld [vmem:[%s1176 + $0x50] sm:$0xff]
    %v1188 = vld [vmem:[%s1176 + $0x58] sm:$0xff]
    %v1189 = vld [vmem:[%s1176 + $0x60] sm:$0xff]
    %v1190 = vld [vmem:[%s1176 + $0x68] sm:$0xff]
    %v1191 = vld [vmem:[%s1176 + $0x70] sm:$0xff]
    %v1192 = vld [vmem:[%s1176 + $0x78] sm:$0xff]
    %v1193 = vld [vmem:[%s1176 + $0x80] sm:$0xff]
    %v1194 = vld [vmem:[%s1176 + $0x88] sm:$0xff]
    %v1195 = vld [vmem:[%s1176 + $0x90] sm:$0xff]
    %v1196 = vld [vmem:[%s1176 + $0x98] sm:$0xff]
    %v1197 = vld [vmem:[%s1176 + $0xa0] sm:$0xff]
    %v1198 = vld [vmem:[%s1176 + $0xa8] sm:$0xff]
    %v1199 = vld [vmem:[%s1176 + $0xb0] sm:$0xff]
    %v1200 = vld [vmem:[%s1176 + $0xb8] sm:$0xff]
    %v1201 = vld [vmem:[%s1176 + $0xc0] sm:$0xff]
    %v1202 = vld [vmem:[%s1176 + $0xc8] sm:$0xff]
    %v1203 = vld [vmem:[%s1176 + $0xd0] sm:$0xff]
    %v1204 = vld [vmem:[%s1176 + $0xd8] sm:$0xff]
    %v1205 = vld [vmem:[%s1176 + $0xe0] sm:$0xff]
    %v1206 = vld [vmem:[%s1176 + $0xe8] sm:$0xff]
    %v1207 = vld [vmem:[%s1176 + $0xf0] sm:$0xff]
    %v1208 = vld [vmem:[%s1176 + $0xf8] sm:$0xff]
    %s1209 = scalar_lea.vmem [#allocation7], 8
    %v1210 = vld [vmem:[%s1209] sm:$0xf]
    %v1212 = vlaneseq
    %v1213 = vshrl.u32 %v1212, 7
    %v1214 = vsub.s32 0, %v1213
    %v1215 = vrot.slane %v1210, %v1214
    %v1216 = vlaneseq
    %v1217 = vshrl.u32 %v1216, 7
    %v1218 = vsub.s32 1, %v1217
    %v1219 = vrot.slane %v1210, %v1218
    %v1220 = vlaneseq
    %v1221 = vshrl.u32 %v1220, 7
    %v1222 = vsub.s32 2, %v1221
    %v1223 = vrot.slane %v1210, %v1222
    %v1224 = vlaneseq
    %v1225 = vshrl.u32 %v1224, 7
    %v1226 = vsub.s32 3, %v1225
    %v1227 = vrot.slane %v1210, %v1226
    %v1233 = vsel %vm247, %v1175, 0
    %1235 = vmatprep.subr.mxu0 0.0
    %1236 = vmatpush1.msra.mxu0 0.0
    %1237 = vmatprep.subr.mxu0 0.0
    %1238 = vmatpush1.msra.mxu0 0.0
    %1239 = vmatprep.subr.mxu0 0.0
    %1240 = vmatpush1.msra.mxu0 0.0
    %1241 = vmatprep.subr.mxu0 0.0
    %1242 = vmatpush1.msra.mxu0 0.0
    %1243 = vmatprep.subr.mxu0 0.0
    %1244 = vmatpush1.msra.mxu0 0.0
    %1245 = vmatprep.subr.mxu0 0.0
    %1246 = vmatpush1.msra.mxu0 0.0
    %1247 = vmatprep.subr.mxu0 0.0
    %1248 = vmatpush1.msra.mxu0 0.0
    %1249 = vmatprep.subr.mxu0 0.0
    %1250 = vmatpush1.msra.mxu0 0.0
    %1251 = vmatprep.subr.mxu0 %v1206
    %1252 = vmatpush1.msra.mxu0 %v1205
    %1253 = vmatprep.subr.mxu0 %v1202
    %1254 = vmatpush1.msra.mxu0 %v1201
    %1255 = vmatprep.subr.mxu0 %v1198
    %1256 = vmatpush1.msra.mxu0 %v1197
    %1257 = vmatprep.subr.mxu0 %v1194
    %1258 = vmatpush1.msra.mxu0 %v1193
    %1259 = vmatprep.subr.mxu0 %v1190
    %1260 = vmatpush1.msra.mxu0 %v1189
    %1261 = vmatprep.subr.mxu0 %v1186
    %1262 = vmatpush1.msra.mxu0 %v1185
    %1263 = vmatprep.subr.mxu0 %v1182
    %1264 = vmatpush1.msra.mxu0 %v1181
    %1265 = vmatprep.subr.mxu0 %v1178
    %1266 = vmatpush1.msra.mxu0 %v1177
    %1267 = vmatprep.subr.mxu0 0.0
    %1268 = vmatpush2.msra.mxu0 0.0
    %1269 = vmatprep.subr.mxu0 0.0
    %1270 = vmatpush2.msra.mxu0 0.0
    %1271 = vmatprep.subr.mxu0 0.0
    %1272 = vmatpush2.msra.mxu0 0.0
    %1273 = vmatprep.subr.mxu0 0.0
    %1274 = vmatpush2.msra.mxu0 0.0
    %1275 = vmatprep.subr.mxu0 0.0
    %1276 = vmatpush2.msra.mxu0 0.0
    %1277 = vmatprep.subr.mxu0 0.0
    %1278 = vmatpush2.msra.mxu0 0.0
    %1279 = vmatprep.subr.mxu0 0.0
    %1280 = vmatpush2.msra.mxu0 0.0
    %1281 = vmatprep.subr.mxu0 0.0
    %1282 = vmatpush2.msra.mxu0 0.0
    %1283 = vmatprep.subr.mxu0 0.0
    %1284 = vmatpush2.msra.mxu0 0.0
    %1285 = vmatprep.subr.mxu0 0.0
    %1286 = vmatpush2.msra.mxu0 0.0
    %1287 = vmatprep.subr.mxu0 0.0
    %1288 = vmatpush2.msra.mxu0 0.0
    %1289 = vmatprep.subr.mxu0 0.0
    %1290 = vmatpush2.msra.mxu0 0.0
    %1291 = vmatprep.subr.mxu0 0.0
    %1292 = vmatpush2.msra.mxu0 0.0
    %1293 = vmatprep.subr.mxu0 0.0
    %1294 = vmatpush2.msra.mxu0 0.0
    %1295 = vmatprep.subr.mxu0 0.0
    %1296 = vmatpush2.msra.mxu0 0.0
    %1297 = vmatprep.subr.mxu0 0.0
    %1298 = vmatpush2.msra.mxu0 0.0
    %1299 = vmatprep.mubr.f32.mxu0 0.0
    %1300 = vmatmul.mubr.f32.gmra.mxu0 %v1233
    %v1301 = vpop.f32.mrf.mxu0
    %v1302 = vadd.f32 %v1215, %v1301
    %v1303 = vpop.f32.mrf.mxu0
    %v1304 = vadd.f32 %v1219, %v1303
    %1305 = vdwg.mxu0
    %1306 = vmatprep.subr.mxu0 0.0
    %1307 = vmatpush1.msra.mxu0 0.0
    %1308 = vmatprep.subr.mxu0 0.0
    %1309 = vmatpush1.msra.mxu0 0.0
    %1310 = vmatprep.subr.mxu0 0.0
    %1311 = vmatpush1.msra.mxu0 0.0
    %1312 = vmatprep.subr.mxu0 0.0
    %1313 = vmatpush1.msra.mxu0 0.0
    %1314 = vmatprep.subr.mxu0 0.0
    %1315 = vmatpush1.msra.mxu0 0.0
    %1316 = vmatprep.subr.mxu0 0.0
    %1317 = vmatpush1.msra.mxu0 0.0
    %1318 = vmatprep.subr.mxu0 0.0
    %1319 = vmatpush1.msra.mxu0 0.0
    %1320 = vmatprep.subr.mxu0 0.0
    %1321 = vmatpush1.msra.mxu0 0.0
    %1322 = vmatprep.subr.mxu0 %v1208
    %1323 = vmatpush1.msra.mxu0 %v1207
    %1324 = vmatprep.subr.mxu0 %v1204
    %1325 = vmatpush1.msra.mxu0 %v1203
    %1326 = vmatprep.subr.mxu0 %v1200
    %1327 = vmatpush1.msra.mxu0 %v1199
    %1328 = vmatprep.subr.mxu0 %v1196
    %1329 = vmatpush1.msra.mxu0 %v1195
    %1330 = vmatprep.subr.mxu0 %v1192
    %1331 = vmatpush1.msra.mxu0 %v1191
    %1332 = vmatprep.subr.mxu0 %v1188
    %1333 = vmatpush1.msra.mxu0 %v1187
    %1334 = vmatprep.subr.mxu0 %v1184
    %1335 = vmatpush1.msra.mxu0 %v1183
    %1336 = vmatprep.subr.mxu0 %v1180
    %1337 = vmatpush1.msra.mxu0 %v1179
    %1338 = vmatprep.subr.mxu0 0.0
    %1339 = vmatpush2.msra.mxu0 0.0
    %1340 = vmatprep.subr.mxu0 0.0
    %1341 = vmatpush2.msra.mxu0 0.0
    %1342 = vmatprep.subr.mxu0 0.0
    %1343 = vmatpush2.msra.mxu0 0.0
    %1344 = vmatprep.subr.mxu0 0.0
    %1345 = vmatpush2.msra.mxu0 0.0
    %1346 = vmatprep.subr.mxu0 0.0
    %1347 = vmatpush2.msra.mxu0 0.0
    %1348 = vmatprep.subr.mxu0 0.0
    %1349 = vmatpush2.msra.mxu0 0.0
    %1350 = vmatprep.subr.mxu0 0.0
    %1351 = vmatpush2.msra.mxu0 0.0
    %1352 = vmatprep.subr.mxu0 0.0
    %1353 = vmatpush2.msra.mxu0 0.0
    %1354 = vmatprep.subr.mxu0 0.0
    %1355 = vmatpush2.msra.mxu0 0.0
    %1356 = vmatprep.subr.mxu0 0.0
    %1357 = vmatpush2.msra.mxu0 0.0
    %1358 = vmatprep.subr.mxu0 0.0
    %1359 = vmatpush2.msra.mxu0 0.0
    %1360 = vmatprep.subr.mxu0 0.0
    %1361 = vmatpush2.msra.mxu0 0.0
    %1362 = vmatprep.subr.mxu0 0.0
    %1363 = vmatpush2.msra.mxu0 0.0
    %1364 = vmatprep.subr.mxu0 0.0
    %1365 = vmatpush2.msra.mxu0 0.0
    %1366 = vmatprep.subr.mxu0 0.0
    %1367 = vmatpush2.msra.mxu0 0.0
    %1368 = vmatprep.subr.mxu0 0.0
    %1369 = vmatpush2.msra.mxu0 0.0
    %1370 = vmatprep.mubr.f32.mxu0 0.0
    %1371 = vmatmul.mubr.f32.gmra.mxu0 %v1233
    %v1372 = vpop.f32.mrf.mxu0
    %v1373 = vadd.f32 %v1223, %v1372
    %v1374 = vpop.f32.mrf.mxu0
    %v1375 = vadd.f32 %v1227, %v1374
    %1376 = vdwg.mxu0
    %v1377 = vmax.f32 %v1302, 0.0
    %v1378 = vmax.f32 %v1304, 0.0
    %v1379 = vmax.f32 %v1373, 0.0
    %v1380 = vmax.f32 %v1375, 0.0
    %s1381 = scalar_lea.vmem [#allocation8], 2048
    %v1382 = vld [vmem:[%s1381] sm:$0xff]
    %v1383 = vld [vmem:[%s1381 + $0x8] sm:$0xff]
    %v1384 = vld [vmem:[%s1381 + $0x10] sm:$0xff]
    %v1385 = vld [vmem:[%s1381 + $0x18] sm:$0xff]
    %v1386 = vld [vmem:[%s1381 + $0x20] sm:$0xff]
    %v1387 = vld [vmem:[%s1381 + $0x28] sm:$0xff]
    %v1388 = vld [vmem:[%s1381 + $0x30] sm:$0xff]
    %v1389 = vld [vmem:[%s1381 + $0x38] sm:$0xff]
    %v1390 = vld [vmem:[%s1381 + $0x40] sm:$0xff]
    %v1391 = vld [vmem:[%s1381 + $0x48] sm:$0xff]
    %v1392 = vld [vmem:[%s1381 + $0x50] sm:$0xff]
    %v1393 = vld [vmem:[%s1381 + $0x58] sm:$0xff]
    %v1394 = vld [vmem:[%s1381 + $0x60] sm:$0xff]
    %v1395 = vld [vmem:[%s1381 + $0x68] sm:$0xff]
    %v1396 = vld [vmem:[%s1381 + $0x70] sm:$0xff]
    %v1397 = vld [vmem:[%s1381 + $0x78] sm:$0xff]
    %v1398 = vld [vmem:[%s1381 + $0x80] sm:$0xff]
    %v1399 = vld [vmem:[%s1381 + $0x88] sm:$0xff]
    %v1400 = vld [vmem:[%s1381 + $0x90] sm:$0xff]
    %v1401 = vld [vmem:[%s1381 + $0x98] sm:$0xff]
    %v1402 = vld [vmem:[%s1381 + $0xa0] sm:$0xff]
    %v1403 = vld [vmem:[%s1381 + $0xa8] sm:$0xff]
    %v1404 = vld [vmem:[%s1381 + $0xb0] sm:$0xff]
    %v1405 = vld [vmem:[%s1381 + $0xb8] sm:$0xff]
    %v1406 = vld [vmem:[%s1381 + $0xc0] sm:$0xff]
    %v1407 = vld [vmem:[%s1381 + $0xc8] sm:$0xff]
    %v1408 = vld [vmem:[%s1381 + $0xd0] sm:$0xff]
    %v1409 = vld [vmem:[%s1381 + $0xd8] sm:$0xff]
    %v1410 = vld [vmem:[%s1381 + $0xe0] sm:$0xff]
    %v1411 = vld [vmem:[%s1381 + $0xe8] sm:$0xff]
    %v1412 = vld [vmem:[%s1381 + $0xf0] sm:$0xff]
    %v1413 = vld [vmem:[%s1381 + $0xf8] sm:$0xff]
    %v1414 = vld [vmem:[%s1381 + $0x100] sm:$0xff]
    %v1415 = vld [vmem:[%s1381 + $0x108] sm:$0xff]
    %v1416 = vld [vmem:[%s1381 + $0x110] sm:$0xff]
    %v1417 = vld [vmem:[%s1381 + $0x118] sm:$0xff]
    %v1418 = vld [vmem:[%s1381 + $0x120] sm:$0xff]
    %v1419 = vld [vmem:[%s1381 + $0x128] sm:$0xff]
    %v1420 = vld [vmem:[%s1381 + $0x130] sm:$0xff]
    %v1421 = vld [vmem:[%s1381 + $0x138] sm:$0xff]
    %v1422 = vld [vmem:[%s1381 + $0x140] sm:$0xff]
    %v1423 = vld [vmem:[%s1381 + $0x148] sm:$0xff]
    %v1424 = vld [vmem:[%s1381 + $0x150] sm:$0xff]
    %v1425 = vld [vmem:[%s1381 + $0x158] sm:$0xff]
    %v1426 = vld [vmem:[%s1381 + $0x160] sm:$0xff]
    %v1427 = vld [vmem:[%s1381 + $0x168] sm:$0xff]
    %v1428 = vld [vmem:[%s1381 + $0x170] sm:$0xff]
    %v1429 = vld [vmem:[%s1381 + $0x178] sm:$0xff]
    %v1430 = vld [vmem:[%s1381 + $0x180] sm:$0xff]
    %v1431 = vld [vmem:[%s1381 + $0x188] sm:$0xff]
    %v1432 = vld [vmem:[%s1381 + $0x190] sm:$0xff]
    %v1433 = vld [vmem:[%s1381 + $0x198] sm:$0xff]
    %v1434 = vld [vmem:[%s1381 + $0x1a0] sm:$0xff]
    %v1435 = vld [vmem:[%s1381 + $0x1a8] sm:$0xff]
    %v1436 = vld [vmem:[%s1381 + $0x1b0] sm:$0xff]
    %v1437 = vld [vmem:[%s1381 + $0x1b8] sm:$0xff]
    %v1438 = vld [vmem:[%s1381 + $0x1c0] sm:$0xff]
    %v1439 = vld [vmem:[%s1381 + $0x1c8] sm:$0xff]
    %v1440 = vld [vmem:[%s1381 + $0x1d0] sm:$0xff]
    %v1441 = vld [vmem:[%s1381 + $0x1d8] sm:$0xff]
    %v1442 = vld [vmem:[%s1381 + $0x1e0] sm:$0xff]
    %v1443 = vld [vmem:[%s1381 + $0x1e8] sm:$0xff]
    %v1444 = vld [vmem:[%s1381 + $0x1f0] sm:$0xff]
    %v1445 = vld [vmem:[%s1381 + $0x1f8] sm:$0xff]
    %v1446 = vld [vmem:[%s1381 + $0x200] sm:$0xff]
    %v1447 = vld [vmem:[%s1381 + $0x208] sm:$0xff]
    %v1448 = vld [vmem:[%s1381 + $0x210] sm:$0xff]
    %v1449 = vld [vmem:[%s1381 + $0x218] sm:$0xff]
    %v1450 = vld [vmem:[%s1381 + $0x220] sm:$0xff]
    %v1451 = vld [vmem:[%s1381 + $0x228] sm:$0xff]
    %v1452 = vld [vmem:[%s1381 + $0x230] sm:$0xff]
    %v1453 = vld [vmem:[%s1381 + $0x238] sm:$0xff]
    %v1454 = vld [vmem:[%s1381 + $0x240] sm:$0xff]
    %v1455 = vld [vmem:[%s1381 + $0x248] sm:$0xff]
    %v1456 = vld [vmem:[%s1381 + $0x250] sm:$0xff]
    %v1457 = vld [vmem:[%s1381 + $0x258] sm:$0xff]
    %v1458 = vld [vmem:[%s1381 + $0x260] sm:$0xff]
    %v1459 = vld [vmem:[%s1381 + $0x268] sm:$0xff]
    %v1460 = vld [vmem:[%s1381 + $0x270] sm:$0xff]
    %v1461 = vld [vmem:[%s1381 + $0x278] sm:$0xff]
    %v1462 = vld [vmem:[%s1381 + $0x280] sm:$0xff]
    %v1463 = vld [vmem:[%s1381 + $0x288] sm:$0xff]
    %v1464 = vld [vmem:[%s1381 + $0x290] sm:$0xff]
    %v1465 = vld [vmem:[%s1381 + $0x298] sm:$0xff]
    %v1466 = vld [vmem:[%s1381 + $0x2a0] sm:$0xff]
    %v1467 = vld [vmem:[%s1381 + $0x2a8] sm:$0xff]
    %v1468 = vld [vmem:[%s1381 + $0x2b0] sm:$0xff]
    %v1469 = vld [vmem:[%s1381 + $0x2b8] sm:$0xff]
    %v1470 = vld [vmem:[%s1381 + $0x2c0] sm:$0xff]
    %v1471 = vld [vmem:[%s1381 + $0x2c8] sm:$0xff]
    %v1472 = vld [vmem:[%s1381 + $0x2d0] sm:$0xff]
    %v1473 = vld [vmem:[%s1381 + $0x2d8] sm:$0xff]
    %v1474 = vld [vmem:[%s1381 + $0x2e0] sm:$0xff]
    %v1475 = vld [vmem:[%s1381 + $0x2e8] sm:$0xff]
    %v1476 = vld [vmem:[%s1381 + $0x2f0] sm:$0xff]
    %v1477 = vld [vmem:[%s1381 + $0x2f8] sm:$0xff]
    %v1478 = vld [vmem:[%s1381 + $0x300] sm:$0xff]
    %v1479 = vld [vmem:[%s1381 + $0x308] sm:$0xff]
    %v1480 = vld [vmem:[%s1381 + $0x310] sm:$0xff]
    %v1481 = vld [vmem:[%s1381 + $0x318] sm:$0xff]
    %v1482 = vld [vmem:[%s1381 + $0x320] sm:$0xff]
    %v1483 = vld [vmem:[%s1381 + $0x328] sm:$0xff]
    %v1484 = vld [vmem:[%s1381 + $0x330] sm:$0xff]
    %v1485 = vld [vmem:[%s1381 + $0x338] sm:$0xff]
    %v1486 = vld [vmem:[%s1381 + $0x340] sm:$0xff]
    %v1487 = vld [vmem:[%s1381 + $0x348] sm:$0xff]
    %v1488 = vld [vmem:[%s1381 + $0x350] sm:$0xff]
    %v1489 = vld [vmem:[%s1381 + $0x358] sm:$0xff]
    %v1490 = vld [vmem:[%s1381 + $0x360] sm:$0xff]
    %v1491 = vld [vmem:[%s1381 + $0x368] sm:$0xff]
    %v1492 = vld [vmem:[%s1381 + $0x370] sm:$0xff]
    %v1493 = vld [vmem:[%s1381 + $0x378] sm:$0xff]
    %v1494 = vld [vmem:[%s1381 + $0x380] sm:$0xff]
    %v1495 = vld [vmem:[%s1381 + $0x388] sm:$0xff]
    %v1496 = vld [vmem:[%s1381 + $0x390] sm:$0xff]
    %v1497 = vld [vmem:[%s1381 + $0x398] sm:$0xff]
    %v1498 = vld [vmem:[%s1381 + $0x3a0] sm:$0xff]
    %v1499 = vld [vmem:[%s1381 + $0x3a8] sm:$0xff]
    %v1500 = vld [vmem:[%s1381 + $0x3b0] sm:$0xff]
    %v1501 = vld [vmem:[%s1381 + $0x3b8] sm:$0xff]
    %v1502 = vld [vmem:[%s1381 + $0x3c0] sm:$0xff]
    %v1503 = vld [vmem:[%s1381 + $0x3c8] sm:$0xff]
    %v1504 = vld [vmem:[%s1381 + $0x3d0] sm:$0xff]
    %v1505 = vld [vmem:[%s1381 + $0x3d8] sm:$0xff]
    %v1506 = vld [vmem:[%s1381 + $0x3e0] sm:$0xff]
    %v1507 = vld [vmem:[%s1381 + $0x3e8] sm:$0xff]
    %v1508 = vld [vmem:[%s1381 + $0x3f0] sm:$0xff]
    %v1509 = vld [vmem:[%s1381 + $0x3f8] sm:$0xff]
    %s1510 = scalar_lea.vmem [#allocation10], 4
    %v1511 = vld [vmem:[%s1510] sm:$0x3]
    %v1513 = vlaneseq
    %v1514 = vshrl.u32 %v1513, 7
    %v1515 = vsub.s32 0, %v1514
    %v1516 = vrot.slane %v1511, %v1515
    %v1517 = vlaneseq
    %v1518 = vshrl.u32 %v1517, 7
    %v1519 = vsub.s32 1, %v1518
    %v1520 = vrot.slane %v1511, %v1519
    %1523 = vmatprep.subr.mxu0 %v1413
    %1524 = vmatpush1.msra.mxu0 %v1412
    %1525 = vmatprep.subr.mxu0 %v1411
    %1526 = vmatpush1.msra.mxu0 %v1410
    %1527 = vmatprep.subr.mxu0 %v1409
    %1528 = vmatpush1.msra.mxu0 %v1408
    %1529 = vmatprep.subr.mxu0 %v1407
    %1530 = vmatpush1.msra.mxu0 %v1406
    %1531 = vmatprep.subr.mxu0 %v1405
    %1532 = vmatpush1.msra.mxu0 %v1404
    %1533 = vmatprep.subr.mxu0 %v1403
    %1534 = vmatpush1.msra.mxu0 %v1402
    %1535 = vmatprep.subr.mxu0 %v1401
    %1536 = vmatpush1.msra.mxu0 %v1400
    %1537 = vmatprep.subr.mxu0 %v1399
    %1538 = vmatpush1.msra.mxu0 %v1398
    %1539 = vmatprep.subr.mxu0 %v1397
    %1540 = vmatpush1.msra.mxu0 %v1396
    %1541 = vmatprep.subr.mxu0 %v1395
    %1542 = vmatpush1.msra.mxu0 %v1394
    %1543 = vmatprep.subr.mxu0 %v1393
    %1544 = vmatpush1.msra.mxu0 %v1392
    %1545 = vmatprep.subr.mxu0 %v1391
    %1546 = vmatpush1.msra.mxu0 %v1390
    %1547 = vmatprep.subr.mxu0 %v1389
    %1548 = vmatpush1.msra.mxu0 %v1388
    %1549 = vmatprep.subr.mxu0 %v1387
    %1550 = vmatpush1.msra.mxu0 %v1386
    %1551 = vmatprep.subr.mxu0 %v1385
    %1552 = vmatpush1.msra.mxu0 %v1384
    %1553 = vmatprep.subr.mxu0 %v1383
    %1554 = vmatpush1.msra.mxu0 %v1382
    %1555 = vmatprep.subr.mxu0 %v1445
    %1556 = vmatpush2.msra.mxu0 %v1444
    %1557 = vmatprep.subr.mxu0 %v1443
    %1558 = vmatpush2.msra.mxu0 %v1442
    %1559 = vmatprep.subr.mxu0 %v1441
    %1560 = vmatpush2.msra.mxu0 %v1440
    %1561 = vmatprep.subr.mxu0 %v1439
    %1562 = vmatpush2.msra.mxu0 %v1438
    %1563 = vmatprep.subr.mxu0 %v1437
    %1564 = vmatpush2.msra.mxu0 %v1436
    %1565 = vmatprep.subr.mxu0 %v1435
    %1566 = vmatpush2.msra.mxu0 %v1434
    %1567 = vmatprep.subr.mxu0 %v1433
    %1568 = vmatpush2.msra.mxu0 %v1432
    %1569 = vmatprep.subr.mxu0 %v1431
    %1570 = vmatpush2.msra.mxu0 %v1430
    %1571 = vmatprep.subr.mxu0 %v1429
    %1572 = vmatpush2.msra.mxu0 %v1428
    %1573 = vmatprep.subr.mxu0 %v1427
    %1574 = vmatpush2.msra.mxu0 %v1426
    %1575 = vmatprep.subr.mxu0 %v1425
    %1576 = vmatpush2.msra.mxu0 %v1424
    %1577 = vmatprep.subr.mxu0 %v1423
    %1578 = vmatpush2.msra.mxu0 %v1422
    %1579 = vmatprep.subr.mxu0 %v1421
    %1580 = vmatpush2.msra.mxu0 %v1420
    %1581 = vmatprep.subr.mxu0 %v1419
    %1582 = vmatpush2.msra.mxu0 %v1418
    %1583 = vmatprep.subr.mxu0 %v1417
    %1584 = vmatpush2.msra.mxu0 %v1416
    %1585 = vmatprep.subr.mxu0 %v1415
    %1586 = vmatpush2.msra.mxu0 %v1414
    %1587 = vmatprep.mubr.f32.mxu0 %v1378
    %1588 = vmatmul.mubr.f32.gmra.mxu0 %v1377
    %v1589 = vpop.f32.mrf.mxu0
    %v1590 = vadd.f32 %v1516, %v1589
    %v1591 = vpop.f32.mrf.mxu0
    %v1592 = vadd.f32 %v1520, %v1591
    %1593 = vdwg.mxu0
    %1594 = vmatprep.subr.mxu0 %v1477
    %1595 = vmatpush1.msra.mxu0 %v1476
    %1596 = vmatprep.subr.mxu0 %v1475
    %1597 = vmatpush1.msra.mxu0 %v1474
    %1598 = vmatprep.subr.mxu0 %v1473
    %1599 = vmatpush1.msra.mxu0 %v1472
    %1600 = vmatprep.subr.mxu0 %v1471
    %1601 = vmatpush1.msra.mxu0 %v1470
    %1602 = vmatprep.subr.mxu0 %v1469
    %1603 = vmatpush1.msra.mxu0 %v1468
    %1604 = vmatprep.subr.mxu0 %v1467
    %1605 = vmatpush1.msra.mxu0 %v1466
    %1606 = vmatprep.subr.mxu0 %v1465
    %1607 = vmatpush1.msra.mxu0 %v1464
    %1608 = vmatprep.subr.mxu0 %v1463
    %1609 = vmatpush1.msra.mxu0 %v1462
    %1610 = vmatprep.subr.mxu0 %v1461
    %1611 = vmatpush1.msra.mxu0 %v1460
    %1612 = vmatprep.subr.mxu0 %v1459
    %1613 = vmatpush1.msra.mxu0 %v1458
    %1614 = vmatprep.subr.mxu0 %v1457
    %1615 = vmatpush1.msra.mxu0 %v1456
    %1616 = vmatprep.subr.mxu0 %v1455
    %1617 = vmatpush1.msra.mxu0 %v1454
    %1618 = vmatprep.subr.mxu0 %v1453
    %1619 = vmatpush1.msra.mxu0 %v1452
    %1620 = vmatprep.subr.mxu0 %v1451
    %1621 = vmatpush1.msra.mxu0 %v1450
    %1622 = vmatprep.subr.mxu0 %v1449
    %1623 = vmatpush1.msra.mxu0 %v1448
    %1624 = vmatprep.subr.mxu0 %v1447
    %1625 = vmatpush1.msra.mxu0 %v1446
    %1626 = vmatprep.subr.mxu0 %v1509
    %1627 = vmatpush2.msra.mxu0 %v1508
    %1628 = vmatprep.subr.mxu0 %v1507
    %1629 = vmatpush2.msra.mxu0 %v1506
    %1630 = vmatprep.subr.mxu0 %v1505
    %1631 = vmatpush2.msra.mxu0 %v1504
    %1632 = vmatprep.subr.mxu0 %v1503
    %1633 = vmatpush2.msra.mxu0 %v1502
    %1634 = vmatprep.subr.mxu0 %v1501
    %1635 = vmatpush2.msra.mxu0 %v1500
    %1636 = vmatprep.subr.mxu0 %v1499
    %1637 = vmatpush2.msra.mxu0 %v1498
    %1638 = vmatprep.subr.mxu0 %v1497
    %1639 = vmatpush2.msra.mxu0 %v1496
    %1640 = vmatprep.subr.mxu0 %v1495
    %1641 = vmatpush2.msra.mxu0 %v1494
    %1642 = vmatprep.subr.mxu0 %v1493
    %1643 = vmatpush2.msra.mxu0 %v1492
    %1644 = vmatprep.subr.mxu0 %v1491
    %1645 = vmatpush2.msra.mxu0 %v1490
    %1646 = vmatprep.subr.mxu0 %v1489
    %1647 = vmatpush2.msra.mxu0 %v1488
    %1648 = vmatprep.subr.mxu0 %v1487
    %1649 = vmatpush2.msra.mxu0 %v1486
    %1650 = vmatprep.subr.mxu0 %v1485
    %1651 = vmatpush2.msra.mxu0 %v1484
    %1652 = vmatprep.subr.mxu0 %v1483
    %1653 = vmatpush2.msra.mxu0 %v1482
    %1654 = vmatprep.subr.mxu0 %v1481
    %1655 = vmatpush2.msra.mxu0 %v1480
    %1656 = vmatprep.subr.mxu0 %v1479
    %1657 = vmatpush2.msra.mxu0 %v1478
    %1658 = vmatprep.mubr.f32.mxu0 %v1380
    %1659 = vmatmul.mubr.f32.gmra.mxu0 %v1379
    %v1660 = vpop.f32.mrf.mxu0
    %v1661 = vadd.f32 %v1590, %v1660
    %v1662 = vpop.f32.mrf.mxu0
    %v1663 = vadd.f32 %v1592, %v1662
    %1664 = vdwg.mxu0
    %v1665 = vmax.f32 %v1661, 0.0
    %v1666 = vmax.f32 %v1663, 0.0
    %s1667 = scalar_lea.vmem [#allocation2], 24
    %v1668 = vld [vmem:[%s1667] sm:$0xff]
    %s1669 = scalar_lea.vmem [#allocation5], 768
    %v1670 = vld [vmem:[%s1669] sm:$0xff]
    %v1671 = vld [vmem:[%s1669 + $0x8] sm:$0xff]
    %v1672 = vld [vmem:[%s1669 + $0x10] sm:$0xff]
    %v1673 = vld [vmem:[%s1669 + $0x18] sm:$0xff]
    %v1674 = vld [vmem:[%s1669 + $0x20] sm:$0xff]
    %v1675 = vld [vmem:[%s1669 + $0x28] sm:$0xff]
    %v1676 = vld [vmem:[%s1669 + $0x30] sm:$0xff]
    %v1677 = vld [vmem:[%s1669 + $0x38] sm:$0xff]
    %v1678 = vld [vmem:[%s1669 + $0x40] sm:$0xff]
    %v1679 = vld [vmem:[%s1669 + $0x48] sm:$0xff]
    %v1680 = vld [vmem:[%s1669 + $0x50] sm:$0xff]
    %v1681 = vld [vmem:[%s1669 + $0x58] sm:$0xff]
    %v1682 = vld [vmem:[%s1669 + $0x60] sm:$0xff]
    %v1683 = vld [vmem:[%s1669 + $0x68] sm:$0xff]
    %v1684 = vld [vmem:[%s1669 + $0x70] sm:$0xff]
    %v1685 = vld [vmem:[%s1669 + $0x78] sm:$0xff]
    %v1686 = vld [vmem:[%s1669 + $0x80] sm:$0xff]
    %v1687 = vld [vmem:[%s1669 + $0x88] sm:$0xff]
    %v1688 = vld [vmem:[%s1669 + $0x90] sm:$0xff]
    %v1689 = vld [vmem:[%s1669 + $0x98] sm:$0xff]
    %v1690 = vld [vmem:[%s1669 + $0xa0] sm:$0xff]
    %v1691 = vld [vmem:[%s1669 + $0xa8] sm:$0xff]
    %v1692 = vld [vmem:[%s1669 + $0xb0] sm:$0xff]
    %v1693 = vld [vmem:[%s1669 + $0xb8] sm:$0xff]
    %v1694 = vld [vmem:[%s1669 + $0xc0] sm:$0xff]
    %v1695 = vld [vmem:[%s1669 + $0xc8] sm:$0xff]
    %v1696 = vld [vmem:[%s1669 + $0xd0] sm:$0xff]
    %v1697 = vld [vmem:[%s1669 + $0xd8] sm:$0xff]
    %v1698 = vld [vmem:[%s1669 + $0xe0] sm:$0xff]
    %v1699 = vld [vmem:[%s1669 + $0xe8] sm:$0xff]
    %v1700 = vld [vmem:[%s1669 + $0xf0] sm:$0xff]
    %v1701 = vld [vmem:[%s1669 + $0xf8] sm:$0xff]
    %s1702 = scalar_lea.vmem [#allocation7], 12
    %v1703 = vld [vmem:[%s1702] sm:$0xf]
    %v1705 = vlaneseq
    %v1706 = vshrl.u32 %v1705, 7
    %v1707 = vsub.s32 0, %v1706
    %v1708 = vrot.slane %v1703, %v1707
    %v1709 = vlaneseq
    %v1710 = vshrl.u32 %v1709, 7
    %v1711 = vsub.s32 1, %v1710
    %v1712 = vrot.slane %v1703, %v1711
    %v1713 = vlaneseq
    %v1714 = vshrl.u32 %v1713, 7
    %v1715 = vsub.s32 2, %v1714
    %v1716 = vrot.slane %v1703, %v1715
    %v1717 = vlaneseq
    %v1718 = vshrl.u32 %v1717, 7
    %v1719 = vsub.s32 3, %v1718
    %v1720 = vrot.slane %v1703, %v1719
    %v1726 = vsel %vm247, %v1668, 0
    %1728 = vmatprep.subr.mxu0 0.0
    %1729 = vmatpush1.msra.mxu0 0.0
    %1730 = vmatprep.subr.mxu0 0.0
    %1731 = vmatpush1.msra.mxu0 0.0
    %1732 = vmatprep.subr.mxu0 0.0
    %1733 = vmatpush1.msra.mxu0 0.0
    %1734 = vmatprep.subr.mxu0 0.0
    %1735 = vmatpush1.msra.mxu0 0.0
    %1736 = vmatprep.subr.mxu0 0.0
    %1737 = vmatpush1.msra.mxu0 0.0
    %1738 = vmatprep.subr.mxu0 0.0
    %1739 = vmatpush1.msra.mxu0 0.0
    %1740 = vmatprep.subr.mxu0 0.0
    %1741 = vmatpush1.msra.mxu0 0.0
    %1742 = vmatprep.subr.mxu0 0.0
    %1743 = vmatpush1.msra.mxu0 0.0
    %1744 = vmatprep.subr.mxu0 %v1699
    %1745 = vmatpush1.msra.mxu0 %v1698
    %1746 = vmatprep.subr.mxu0 %v1695
    %1747 = vmatpush1.msra.mxu0 %v1694
    %1748 = vmatprep.subr.mxu0 %v1691
    %1749 = vmatpush1.msra.mxu0 %v1690
    %1750 = vmatprep.subr.mxu0 %v1687
    %1751 = vmatpush1.msra.mxu0 %v1686
    %1752 = vmatprep.subr.mxu0 %v1683
    %1753 = vmatpush1.msra.mxu0 %v1682
    %1754 = vmatprep.subr.mxu0 %v1679
    %1755 = vmatpush1.msra.mxu0 %v1678
    %1756 = vmatprep.subr.mxu0 %v1675
    %1757 = vmatpush1.msra.mxu0 %v1674
    %1758 = vmatprep.subr.mxu0 %v1671
    %1759 = vmatpush1.msra.mxu0 %v1670
    %1760 = vmatprep.subr.mxu0 0.0
    %1761 = vmatpush2.msra.mxu0 0.0
    %1762 = vmatprep.subr.mxu0 0.0
    %1763 = vmatpush2.msra.mxu0 0.0
    %1764 = vmatprep.subr.mxu0 0.0
    %1765 = vmatpush2.msra.mxu0 0.0
    %1766 = vmatprep.subr.mxu0 0.0
    %1767 = vmatpush2.msra.mxu0 0.0
    %1768 = vmatprep.subr.mxu0 0.0
    %1769 = vmatpush2.msra.mxu0 0.0
    %1770 = vmatprep.subr.mxu0 0.0
    %1771 = vmatpush2.msra.mxu0 0.0
    %1772 = vmatprep.subr.mxu0 0.0
    %1773 = vmatpush2.msra.mxu0 0.0
    %1774 = vmatprep.subr.mxu0 0.0
    %1775 = vmatpush2.msra.mxu0 0.0
    %1776 = vmatprep.subr.mxu0 0.0
    %1777 = vmatpush2.msra.mxu0 0.0
    %1778 = vmatprep.subr.mxu0 0.0
    %1779 = vmatpush2.msra.mxu0 0.0
    %1780 = vmatprep.subr.mxu0 0.0
    %1781 = vmatpush2.msra.mxu0 0.0
    %1782 = vmatprep.subr.mxu0 0.0
    %1783 = vmatpush2.msra.mxu0 0.0
    %1784 = vmatprep.subr.mxu0 0.0
    %1785 = vmatpush2.msra.mxu0 0.0
    %1786 = vmatprep.subr.mxu0 0.0
    %1787 = vmatpush2.msra.mxu0 0.0
    %1788 = vmatprep.subr.mxu0 0.0
    %1789 = vmatpush2.msra.mxu0 0.0
    %1790 = vmatprep.subr.mxu0 0.0
    %1791 = vmatpush2.msra.mxu0 0.0
    %1792 = vmatprep.mubr.f32.mxu0 0.0
    %1793 = vmatmul.mubr.f32.gmra.mxu0 %v1726
    %v1794 = vpop.f32.mrf.mxu0
    %v1795 = vadd.f32 %v1708, %v1794
    %v1796 = vpop.f32.mrf.mxu0
    %v1797 = vadd.f32 %v1712, %v1796
    %1798 = vdwg.mxu0
    %1799 = vmatprep.subr.mxu0 0.0
    %1800 = vmatpush1.msra.mxu0 0.0
    %1801 = vmatprep.subr.mxu0 0.0
    %1802 = vmatpush1.msra.mxu0 0.0
    %1803 = vmatprep.subr.mxu0 0.0
    %1804 = vmatpush1.msra.mxu0 0.0
    %1805 = vmatprep.subr.mxu0 0.0
    %1806 = vmatpush1.msra.mxu0 0.0
    %1807 = vmatprep.subr.mxu0 0.0
    %1808 = vmatpush1.msra.mxu0 0.0
    %1809 = vmatprep.subr.mxu0 0.0
    %1810 = vmatpush1.msra.mxu0 0.0
    %1811 = vmatprep.subr.mxu0 0.0
    %1812 = vmatpush1.msra.mxu0 0.0
    %1813 = vmatprep.subr.mxu0 0.0
    %1814 = vmatpush1.msra.mxu0 0.0
    %1815 = vmatprep.subr.mxu0 %v1701
    %1816 = vmatpush1.msra.mxu0 %v1700
    %1817 = vmatprep.subr.mxu0 %v1697
    %1818 = vmatpush1.msra.mxu0 %v1696
    %1819 = vmatprep.subr.mxu0 %v1693
    %1820 = vmatpush1.msra.mxu0 %v1692
    %1821 = vmatprep.subr.mxu0 %v1689
    %1822 = vmatpush1.msra.mxu0 %v1688
    %1823 = vmatprep.subr.mxu0 %v1685
    %1824 = vmatpush1.msra.mxu0 %v1684
    %1825 = vmatprep.subr.mxu0 %v1681
    %1826 = vmatpush1.msra.mxu0 %v1680
    %1827 = vmatprep.subr.mxu0 %v1677
    %1828 = vmatpush1.msra.mxu0 %v1676
    %1829 = vmatprep.subr.mxu0 %v1673
    %1830 = vmatpush1.msra.mxu0 %v1672
    %1831 = vmatprep.subr.mxu0 0.0
    %1832 = vmatpush2.msra.mxu0 0.0
    %1833 = vmatprep.subr.mxu0 0.0
    %1834 = vmatpush2.msra.mxu0 0.0
    %1835 = vmatprep.subr.mxu0 0.0
    %1836 = vmatpush2.msra.mxu0 0.0
    %1837 = vmatprep.subr.mxu0 0.0
    %1838 = vmatpush2.msra.mxu0 0.0
    %1839 = vmatprep.subr.mxu0 0.0
    %1840 = vmatpush2.msra.mxu0 0.0
    %1841 = vmatprep.subr.mxu0 0.0
    %1842 = vmatpush2.msra.mxu0 0.0
    %1843 = vmatprep.subr.mxu0 0.0
    %1844 = vmatpush2.msra.mxu0 0.0
    %1845 = vmatprep.subr.mxu0 0.0
    %1846 = vmatpush2.msra.mxu0 0.0
    %1847 = vmatprep.subr.mxu0 0.0
    %1848 = vmatpush2.msra.mxu0 0.0
    %1849 = vmatprep.subr.mxu0 0.0
    %1850 = vmatpush2.msra.mxu0 0.0
    %1851 = vmatprep.subr.mxu0 0.0
    %1852 = vmatpush2.msra.mxu0 0.0
    %1853 = vmatprep.subr.mxu0 0.0
    %1854 = vmatpush2.msra.mxu0 0.0
    %1855 = vmatprep.subr.mxu0 0.0
    %1856 = vmatpush2.msra.mxu0 0.0
    %1857 = vmatprep.subr.mxu0 0.0
    %1858 = vmatpush2.msra.mxu0 0.0
    %1859 = vmatprep.subr.mxu0 0.0
    %1860 = vmatpush2.msra.mxu0 0.0
    %1861 = vmatprep.subr.mxu0 0.0
    %1862 = vmatpush2.msra.mxu0 0.0
    %1863 = vmatprep.mubr.f32.mxu0 0.0
    %1864 = vmatmul.mubr.f32.gmra.mxu0 %v1726
    %v1865 = vpop.f32.mrf.mxu0
    %v1866 = vadd.f32 %v1716, %v1865
    %v1867 = vpop.f32.mrf.mxu0
    %v1868 = vadd.f32 %v1720, %v1867
    %1869 = vdwg.mxu0
    %v1870 = vmax.f32 %v1795, 0.0
    %v1871 = vmax.f32 %v1797, 0.0
    %v1872 = vmax.f32 %v1866, 0.0
    %v1873 = vmax.f32 %v1868, 0.0
    %s1874 = scalar_lea.vmem [#allocation8], 3072
    %v1875 = vld [vmem:[%s1874] sm:$0xff]
    %v1876 = vld [vmem:[%s1874 + $0x8] sm:$0xff]
    %v1877 = vld [vmem:[%s1874 + $0x10] sm:$0xff]
    %v1878 = vld [vmem:[%s1874 + $0x18] sm:$0xff]
    %v1879 = vld [vmem:[%s1874 + $0x20] sm:$0xff]
    %v1880 = vld [vmem:[%s1874 + $0x28] sm:$0xff]
    %v1881 = vld [vmem:[%s1874 + $0x30] sm:$0xff]
    %v1882 = vld [vmem:[%s1874 + $0x38] sm:$0xff]
    %v1883 = vld [vmem:[%s1874 + $0x40] sm:$0xff]
    %v1884 = vld [vmem:[%s1874 + $0x48] sm:$0xff]
    %v1885 = vld [vmem:[%s1874 + $0x50] sm:$0xff]
    %v1886 = vld [vmem:[%s1874 + $0x58] sm:$0xff]
    %v1887 = vld [vmem:[%s1874 + $0x60] sm:$0xff]
    %v1888 = vld [vmem:[%s1874 + $0x68] sm:$0xff]
    %v1889 = vld [vmem:[%s1874 + $0x70] sm:$0xff]
    %v1890 = vld [vmem:[%s1874 + $0x78] sm:$0xff]
    %v1891 = vld [vmem:[%s1874 + $0x80] sm:$0xff]
    %v1892 = vld [vmem:[%s1874 + $0x88] sm:$0xff]
    %v1893 = vld [vmem:[%s1874 + $0x90] sm:$0xff]
    %v1894 = vld [vmem:[%s1874 + $0x98] sm:$0xff]
    %v1895 = vld [vmem:[%s1874 + $0xa0] sm:$0xff]
    %v1896 = vld [vmem:[%s1874 + $0xa8] sm:$0xff]
    %v1897 = vld [vmem:[%s1874 + $0xb0] sm:$0xff]
    %v1898 = vld [vmem:[%s1874 + $0xb8] sm:$0xff]
    %v1899 = vld [vmem:[%s1874 + $0xc0] sm:$0xff]
    %v1900 = vld [vmem:[%s1874 + $0xc8] sm:$0xff]
    %v1901 = vld [vmem:[%s1874 + $0xd0] sm:$0xff]
    %v1902 = vld [vmem:[%s1874 + $0xd8] sm:$0xff]
    %v1903 = vld [vmem:[%s1874 + $0xe0] sm:$0xff]
    %v1904 = vld [vmem:[%s1874 + $0xe8] sm:$0xff]
    %v1905 = vld [vmem:[%s1874 + $0xf0] sm:$0xff]
    %v1906 = vld [vmem:[%s1874 + $0xf8] sm:$0xff]
    %v1907 = vld [vmem:[%s1874 + $0x100] sm:$0xff]
    %v1908 = vld [vmem:[%s1874 + $0x108] sm:$0xff]
    %v1909 = vld [vmem:[%s1874 + $0x110] sm:$0xff]
    %v1910 = vld [vmem:[%s1874 + $0x118] sm:$0xff]
    %v1911 = vld [vmem:[%s1874 + $0x120] sm:$0xff]
    %v1912 = vld [vmem:[%s1874 + $0x128] sm:$0xff]
    %v1913 = vld [vmem:[%s1874 + $0x130] sm:$0xff]
    %v1914 = vld [vmem:[%s1874 + $0x138] sm:$0xff]
    %v1915 = vld [vmem:[%s1874 + $0x140] sm:$0xff]
    %v1916 = vld [vmem:[%s1874 + $0x148] sm:$0xff]
    %v1917 = vld [vmem:[%s1874 + $0x150] sm:$0xff]
    %v1918 = vld [vmem:[%s1874 + $0x158] sm:$0xff]
    %v1919 = vld [vmem:[%s1874 + $0x160] sm:$0xff]
    %v1920 = vld [vmem:[%s1874 + $0x168] sm:$0xff]
    %v1921 = vld [vmem:[%s1874 + $0x170] sm:$0xff]
    %v1922 = vld [vmem:[%s1874 + $0x178] sm:$0xff]
    %v1923 = vld [vmem:[%s1874 + $0x180] sm:$0xff]
    %v1924 = vld [vmem:[%s1874 + $0x188] sm:$0xff]
    %v1925 = vld [vmem:[%s1874 + $0x190] sm:$0xff]
    %v1926 = vld [vmem:[%s1874 + $0x198] sm:$0xff]
    %v1927 = vld [vmem:[%s1874 + $0x1a0] sm:$0xff]
    %v1928 = vld [vmem:[%s1874 + $0x1a8] sm:$0xff]
    %v1929 = vld [vmem:[%s1874 + $0x1b0] sm:$0xff]
    %v1930 = vld [vmem:[%s1874 + $0x1b8] sm:$0xff]
    %v1931 = vld [vmem:[%s1874 + $0x1c0] sm:$0xff]
    %v1932 = vld [vmem:[%s1874 + $0x1c8] sm:$0xff]
    %v1933 = vld [vmem:[%s1874 + $0x1d0] sm:$0xff]
    %v1934 = vld [vmem:[%s1874 + $0x1d8] sm:$0xff]
    %v1935 = vld [vmem:[%s1874 + $0x1e0] sm:$0xff]
    %v1936 = vld [vmem:[%s1874 + $0x1e8] sm:$0xff]
    %v1937 = vld [vmem:[%s1874 + $0x1f0] sm:$0xff]
    %v1938 = vld [vmem:[%s1874 + $0x1f8] sm:$0xff]
    %v1939 = vld [vmem:[%s1874 + $0x200] sm:$0xff]
    %v1940 = vld [vmem:[%s1874 + $0x208] sm:$0xff]
    %v1941 = vld [vmem:[%s1874 + $0x210] sm:$0xff]
    %v1942 = vld [vmem:[%s1874 + $0x218] sm:$0xff]
    %v1943 = vld [vmem:[%s1874 + $0x220] sm:$0xff]
    %v1944 = vld [vmem:[%s1874 + $0x228] sm:$0xff]
    %v1945 = vld [vmem:[%s1874 + $0x230] sm:$0xff]
    %v1946 = vld [vmem:[%s1874 + $0x238] sm:$0xff]
    %v1947 = vld [vmem:[%s1874 + $0x240] sm:$0xff]
    %v1948 = vld [vmem:[%s1874 + $0x248] sm:$0xff]
    %v1949 = vld [vmem:[%s1874 + $0x250] sm:$0xff]
    %v1950 = vld [vmem:[%s1874 + $0x258] sm:$0xff]
    %v1951 = vld [vmem:[%s1874 + $0x260] sm:$0xff]
    %v1952 = vld [vmem:[%s1874 + $0x268] sm:$0xff]
    %v1953 = vld [vmem:[%s1874 + $0x270] sm:$0xff]
    %v1954 = vld [vmem:[%s1874 + $0x278] sm:$0xff]
    %v1955 = vld [vmem:[%s1874 + $0x280] sm:$0xff]
    %v1956 = vld [vmem:[%s1874 + $0x288] sm:$0xff]
    %v1957 = vld [vmem:[%s1874 + $0x290] sm:$0xff]
    %v1958 = vld [vmem:[%s1874 + $0x298] sm:$0xff]
    %v1959 = vld [vmem:[%s1874 + $0x2a0] sm:$0xff]
    %v1960 = vld [vmem:[%s1874 + $0x2a8] sm:$0xff]
    %v1961 = vld [vmem:[%s1874 + $0x2b0] sm:$0xff]
    %v1962 = vld [vmem:[%s1874 + $0x2b8] sm:$0xff]
    %v1963 = vld [vmem:[%s1874 + $0x2c0] sm:$0xff]
    %v1964 = vld [vmem:[%s1874 + $0x2c8] sm:$0xff]
    %v1965 = vld [vmem:[%s1874 + $0x2d0] sm:$0xff]
    %v1966 = vld [vmem:[%s1874 + $0x2d8] sm:$0xff]
    %v1967 = vld [vmem:[%s1874 + $0x2e0] sm:$0xff]
    %v1968 = vld [vmem:[%s1874 + $0x2e8] sm:$0xff]
    %v1969 = vld [vmem:[%s1874 + $0x2f0] sm:$0xff]
    %v1970 = vld [vmem:[%s1874 + $0x2f8] sm:$0xff]
    %v1971 = vld [vmem:[%s1874 + $0x300] sm:$0xff]
    %v1972 = vld [vmem:[%s1874 + $0x308] sm:$0xff]
    %v1973 = vld [vmem:[%s1874 + $0x310] sm:$0xff]
    %v1974 = vld [vmem:[%s1874 + $0x318] sm:$0xff]
    %v1975 = vld [vmem:[%s1874 + $0x320] sm:$0xff]
    %v1976 = vld [vmem:[%s1874 + $0x328] sm:$0xff]
    %v1977 = vld [vmem:[%s1874 + $0x330] sm:$0xff]
    %v1978 = vld [vmem:[%s1874 + $0x338] sm:$0xff]
    %v1979 = vld [vmem:[%s1874 + $0x340] sm:$0xff]
    %v1980 = vld [vmem:[%s1874 + $0x348] sm:$0xff]
    %v1981 = vld [vmem:[%s1874 + $0x350] sm:$0xff]
    %v1982 = vld [vmem:[%s1874 + $0x358] sm:$0xff]
    %v1983 = vld [vmem:[%s1874 + $0x360] sm:$0xff]
    %v1984 = vld [vmem:[%s1874 + $0x368] sm:$0xff]
    %v1985 = vld [vmem:[%s1874 + $0x370] sm:$0xff]
    %v1986 = vld [vmem:[%s1874 + $0x378] sm:$0xff]
    %v1987 = vld [vmem:[%s1874 + $0x380] sm:$0xff]
    %v1988 = vld [vmem:[%s1874 + $0x388] sm:$0xff]
    %v1989 = vld [vmem:[%s1874 + $0x390] sm:$0xff]
    %v1990 = vld [vmem:[%s1874 + $0x398] sm:$0xff]
    %v1991 = vld [vmem:[%s1874 + $0x3a0] sm:$0xff]
    %v1992 = vld [vmem:[%s1874 + $0x3a8] sm:$0xff]
    %v1993 = vld [vmem:[%s1874 + $0x3b0] sm:$0xff]
    %v1994 = vld [vmem:[%s1874 + $0x3b8] sm:$0xff]
    %v1995 = vld [vmem:[%s1874 + $0x3c0] sm:$0xff]
    %v1996 = vld [vmem:[%s1874 + $0x3c8] sm:$0xff]
    %v1997 = vld [vmem:[%s1874 + $0x3d0] sm:$0xff]
    %v1998 = vld [vmem:[%s1874 + $0x3d8] sm:$0xff]
    %v1999 = vld [vmem:[%s1874 + $0x3e0] sm:$0xff]
    %v2000 = vld [vmem:[%s1874 + $0x3e8] sm:$0xff]
    %v2001 = vld [vmem:[%s1874 + $0x3f0] sm:$0xff]
    %v2002 = vld [vmem:[%s1874 + $0x3f8] sm:$0xff]
    %s2003 = scalar_lea.vmem [#allocation10], 6
    %v2004 = vld [vmem:[%s2003] sm:$0x3]
    %v2006 = vlaneseq
    %v2007 = vshrl.u32 %v2006, 7
    %v2008 = vsub.s32 0, %v2007
    %v2009 = vrot.slane %v2004, %v2008
    %v2010 = vlaneseq
    %v2011 = vshrl.u32 %v2010, 7
    %v2012 = vsub.s32 1, %v2011
    %v2013 = vrot.slane %v2004, %v2012
    %2016 = vmatprep.subr.mxu0 %v1906
    %2017 = vmatpush1.msra.mxu0 %v1905
    %2018 = vmatprep.subr.mxu0 %v1904
    %2019 = vmatpush1.msra.mxu0 %v1903
    %2020 = vmatprep.subr.mxu0 %v1902
    %2021 = vmatpush1.msra.mxu0 %v1901
    %2022 = vmatprep.subr.mxu0 %v1900
    %2023 = vmatpush1.msra.mxu0 %v1899
    %2024 = vmatprep.subr.mxu0 %v1898
    %2025 = vmatpush1.msra.mxu0 %v1897
    %2026 = vmatprep.subr.mxu0 %v1896
    %2027 = vmatpush1.msra.mxu0 %v1895
    %2028 = vmatprep.subr.mxu0 %v1894
    %2029 = vmatpush1.msra.mxu0 %v1893
    %2030 = vmatprep.subr.mxu0 %v1892
    %2031 = vmatpush1.msra.mxu0 %v1891
    %2032 = vmatprep.subr.mxu0 %v1890
    %2033 = vmatpush1.msra.mxu0 %v1889
    %2034 = vmatprep.subr.mxu0 %v1888
    %2035 = vmatpush1.msra.mxu0 %v1887
    %2036 = vmatprep.subr.mxu0 %v1886
    %2037 = vmatpush1.msra.mxu0 %v1885
    %2038 = vmatprep.subr.mxu0 %v1884
    %2039 = vmatpush1.msra.mxu0 %v1883
    %2040 = vmatprep.subr.mxu0 %v1882
    %2041 = vmatpush1.msra.mxu0 %v1881
    %2042 = vmatprep.subr.mxu0 %v1880
    %2043 = vmatpush1.msra.mxu0 %v1879
    %2044 = vmatprep.subr.mxu0 %v1878
    %2045 = vmatpush1.msra.mxu0 %v1877
    %2046 = vmatprep.subr.mxu0 %v1876
    %2047 = vmatpush1.msra.mxu0 %v1875
    %2048 = vmatprep.subr.mxu0 %v1938
    %2049 = vmatpush2.msra.mxu0 %v1937
    %2050 = vmatprep.subr.mxu0 %v1936
    %2051 = vmatpush2.msra.mxu0 %v1935
    %2052 = vmatprep.subr.mxu0 %v1934
    %2053 = vmatpush2.msra.mxu0 %v1933
    %2054 = vmatprep.subr.mxu0 %v1932
    %2055 = vmatpush2.msra.mxu0 %v1931
    %2056 = vmatprep.subr.mxu0 %v1930
    %2057 = vmatpush2.msra.mxu0 %v1929
    %2058 = vmatprep.subr.mxu0 %v1928
    %2059 = vmatpush2.msra.mxu0 %v1927
    %2060 = vmatprep.subr.mxu0 %v1926
    %2061 = vmatpush2.msra.mxu0 %v1925
    %2062 = vmatprep.subr.mxu0 %v1924
    %2063 = vmatpush2.msra.mxu0 %v1923
    %2064 = vmatprep.subr.mxu0 %v1922
    %2065 = vmatpush2.msra.mxu0 %v1921
    %2066 = vmatprep.subr.mxu0 %v1920
    %2067 = vmatpush2.msra.mxu0 %v1919
    %2068 = vmatprep.subr.mxu0 %v1918
    %2069 = vmatpush2.msra.mxu0 %v1917
    %2070 = vmatprep.subr.mxu0 %v1916
    %2071 = vmatpush2.msra.mxu0 %v1915
    %2072 = vmatprep.subr.mxu0 %v1914
    %2073 = vmatpush2.msra.mxu0 %v1913
    %2074 = vmatprep.subr.mxu0 %v1912
    %2075 = vmatpush2.msra.mxu0 %v1911
    %2076 = vmatprep.subr.mxu0 %v1910
    %2077 = vmatpush2.msra.mxu0 %v1909
    %2078 = vmatprep.subr.mxu0 %v1908
    %2079 = vmatpush2.msra.mxu0 %v1907
    %2080 = vmatprep.mubr.f32.mxu0 %v1871
    %2081 = vmatmul.mubr.f32.gmra.mxu0 %v1870
    %v2082 = vpop.f32.mrf.mxu0
    %v2083 = vadd.f32 %v2009, %v2082
    %v2084 = vpop.f32.mrf.mxu0
    %v2085 = vadd.f32 %v2013, %v2084
    %2086 = vdwg.mxu0
    %2087 = vmatprep.subr.mxu0 %v1970
    %2088 = vmatpush1.msra.mxu0 %v1969
    %2089 = vmatprep.subr.mxu0 %v1968
    %2090 = vmatpush1.msra.mxu0 %v1967
    %2091 = vmatprep.subr.mxu0 %v1966
    %2092 = vmatpush1.msra.mxu0 %v1965
    %2093 = vmatprep.subr.mxu0 %v1964
    %2094 = vmatpush1.msra.mxu0 %v1963
    %2095 = vmatprep.subr.mxu0 %v1962
    %2096 = vmatpush1.msra.mxu0 %v1961
    %2097 = vmatprep.subr.mxu0 %v1960
    %2098 = vmatpush1.msra.mxu0 %v1959
    %2099 = vmatprep.subr.mxu0 %v1958
    %2100 = vmatpush1.msra.mxu0 %v1957
    %2101 = vmatprep.subr.mxu0 %v1956
    %2102 = vmatpush1.msra.mxu0 %v1955
    %2103 = vmatprep.subr.mxu0 %v1954
    %2104 = vmatpush1.msra.mxu0 %v1953
    %2105 = vmatprep.subr.mxu0 %v1952
    %2106 = vmatpush1.msra.mxu0 %v1951
    %2107 = vmatprep.subr.mxu0 %v1950
    %2108 = vmatpush1.msra.mxu0 %v1949
    %2109 = vmatprep.subr.mxu0 %v1948
    %2110 = vmatpush1.msra.mxu0 %v1947
    %2111 = vmatprep.subr.mxu0 %v1946
    %2112 = vmatpush1.msra.mxu0 %v1945
    %2113 = vmatprep.subr.mxu0 %v1944
    %2114 = vmatpush1.msra.mxu0 %v1943
    %2115 = vmatprep.subr.mxu0 %v1942
    %2116 = vmatpush1.msra.mxu0 %v1941
    %2117 = vmatprep.subr.mxu0 %v1940
    %2118 = vmatpush1.msra.mxu0 %v1939
    %2119 = vmatprep.subr.mxu0 %v2002
    %2120 = vmatpush2.msra.mxu0 %v2001
    %2121 = vmatprep.subr.mxu0 %v2000
    %2122 = vmatpush2.msra.mxu0 %v1999
    %2123 = vmatprep.subr.mxu0 %v1998
    %2124 = vmatpush2.msra.mxu0 %v1997
    %2125 = vmatprep.subr.mxu0 %v1996
    %2126 = vmatpush2.msra.mxu0 %v1995
    %2127 = vmatprep.subr.mxu0 %v1994
    %2128 = vmatpush2.msra.mxu0 %v1993
    %2129 = vmatprep.subr.mxu0 %v1992
    %2130 = vmatpush2.msra.mxu0 %v1991
    %2131 = vmatprep.subr.mxu0 %v1990
    %2132 = vmatpush2.msra.mxu0 %v1989
    %2133 = vmatprep.subr.mxu0 %v1988
    %2134 = vmatpush2.msra.mxu0 %v1987
    %2135 = vmatprep.subr.mxu0 %v1986
    %2136 = vmatpush2.msra.mxu0 %v1985
    %2137 = vmatprep.subr.mxu0 %v1984
    %2138 = vmatpush2.msra.mxu0 %v1983
    %2139 = vmatprep.subr.mxu0 %v1982
    %2140 = vmatpush2.msra.mxu0 %v1981
    %2141 = vmatprep.subr.mxu0 %v1980
    %2142 = vmatpush2.msra.mxu0 %v1979
    %2143 = vmatprep.subr.mxu0 %v1978
    %2144 = vmatpush2.msra.mxu0 %v1977
    %2145 = vmatprep.subr.mxu0 %v1976
    %2146 = vmatpush2.msra.mxu0 %v1975
    %2147 = vmatprep.subr.mxu0 %v1974
    %2148 = vmatpush2.msra.mxu0 %v1973
    %2149 = vmatprep.subr.mxu0 %v1972
    %2150 = vmatpush2.msra.mxu0 %v1971
    %2151 = vmatprep.mubr.f32.mxu0 %v1873
    %2152 = vmatmul.mubr.f32.gmra.mxu0 %v1872
    %v2153 = vpop.f32.mrf.mxu0
    %v2154 = vadd.f32 %v2083, %v2153
    %v2155 = vpop.f32.mrf.mxu0
    %v2156 = vadd.f32 %v2085, %v2155
    %2157 = vdwg.mxu0
    %v2158 = vmax.f32 %v2154, 0.0
    %v2159 = vmax.f32 %v2156, 0.0
    %s2160 = scalar_lea.vmem [#allocation2], 32
    %v2161 = vld [vmem:[%s2160] sm:$0xff]
    %s2162 = scalar_lea.vmem [#allocation5], 1024
    %v2163 = vld [vmem:[%s2162] sm:$0xff]
    %v2164 = vld [vmem:[%s2162 + $0x8] sm:$0xff]
    %v2165 = vld [vmem:[%s2162 + $0x10] sm:$0xff]
    %v2166 = vld [vmem:[%s2162 + $0x18] sm:$0xff]
    %v2167 = vld [vmem:[%s2162 + $0x20] sm:$0xff]
    %v2168 = vld [vmem:[%s2162 + $0x28] sm:$0xff]
    %v2169 = vld [vmem:[%s2162 + $0x30] sm:$0xff]
    %v2170 = vld [vmem:[%s2162 + $0x38] sm:$0xff]
    %v2171 = vld [vmem:[%s2162 + $0x40] sm:$0xff]
    %v2172 = vld [vmem:[%s2162 + $0x48] sm:$0xff]
    %v2173 = vld [vmem:[%s2162 + $0x50] sm:$0xff]
    %v2174 = vld [vmem:[%s2162 + $0x58] sm:$0xff]
    %v2175 = vld [vmem:[%s2162 + $0x60] sm:$0xff]
    %v2176 = vld [vmem:[%s2162 + $0x68] sm:$0xff]
    %v2177 = vld [vmem:[%s2162 + $0x70] sm:$0xff]
    %v2178 = vld [vmem:[%s2162 + $0x78] sm:$0xff]
    %v2179 = vld [vmem:[%s2162 + $0x80] sm:$0xff]
    %v2180 = vld [vmem:[%s2162 + $0x88] sm:$0xff]
    %v2181 = vld [vmem:[%s2162 + $0x90] sm:$0xff]
    %v2182 = vld [vmem:[%s2162 + $0x98] sm:$0xff]
    %v2183 = vld [vmem:[%s2162 + $0xa0] sm:$0xff]
    %v2184 = vld [vmem:[%s2162 + $0xa8] sm:$0xff]
    %v2185 = vld [vmem:[%s2162 + $0xb0] sm:$0xff]
    %v2186 = vld [vmem:[%s2162 + $0xb8] sm:$0xff]
    %v2187 = vld [vmem:[%s2162 + $0xc0] sm:$0xff]
    %v2188 = vld [vmem:[%s2162 + $0xc8] sm:$0xff]
    %v2189 = vld [vmem:[%s2162 + $0xd0] sm:$0xff]
    %v2190 = vld [vmem:[%s2162 + $0xd8] sm:$0xff]
    %v2191 = vld [vmem:[%s2162 + $0xe0] sm:$0xff]
    %v2192 = vld [vmem:[%s2162 + $0xe8] sm:$0xff]
    %v2193 = vld [vmem:[%s2162 + $0xf0] sm:$0xff]
    %v2194 = vld [vmem:[%s2162 + $0xf8] sm:$0xff]
    %s2195 = scalar_lea.vmem [#allocation7], 16
    %v2196 = vld [vmem:[%s2195] sm:$0xf]
    %v2198 = vlaneseq
    %v2199 = vshrl.u32 %v2198, 7
    %v2200 = vsub.s32 0, %v2199
    %v2201 = vrot.slane %v2196, %v2200
    %v2202 = vlaneseq
    %v2203 = vshrl.u32 %v2202, 7
    %v2204 = vsub.s32 1, %v2203
    %v2205 = vrot.slane %v2196, %v2204
    %v2206 = vlaneseq
    %v2207 = vshrl.u32 %v2206, 7
    %v2208 = vsub.s32 2, %v2207
    %v2209 = vrot.slane %v2196, %v2208
    %v2210 = vlaneseq
    %v2211 = vshrl.u32 %v2210, 7
    %v2212 = vsub.s32 3, %v2211
    %v2213 = vrot.slane %v2196, %v2212
    %v2219 = vsel %vm247, %v2161, 0
    %2221 = vmatprep.subr.mxu0 0.0
    %2222 = vmatpush1.msra.mxu0 0.0
    %2223 = vmatprep.subr.mxu0 0.0
    %2224 = vmatpush1.msra.mxu0 0.0
    %2225 = vmatprep.subr.mxu0 0.0
    %2226 = vmatpush1.msra.mxu0 0.0
    %2227 = vmatprep.subr.mxu0 0.0
    %2228 = vmatpush1.msra.mxu0 0.0
    %2229 = vmatprep.subr.mxu0 0.0
    %2230 = vmatpush1.msra.mxu0 0.0
    %2231 = vmatprep.subr.mxu0 0.0
    %2232 = vmatpush1.msra.mxu0 0.0
    %2233 = vmatprep.subr.mxu0 0.0
    %2234 = vmatpush1.msra.mxu0 0.0
    %2235 = vmatprep.subr.mxu0 0.0
    %2236 = vmatpush1.msra.mxu0 0.0
    %2237 = vmatprep.subr.mxu0 %v2192
    %2238 = vmatpush1.msra.mxu0 %v2191
    %2239 = vmatprep.subr.mxu0 %v2188
    %2240 = vmatpush1.msra.mxu0 %v2187
    %2241 = vmatprep.subr.mxu0 %v2184
    %2242 = vmatpush1.msra.mxu0 %v2183
    %2243 = vmatprep.subr.mxu0 %v2180
    %2244 = vmatpush1.msra.mxu0 %v2179
    %2245 = vmatprep.subr.mxu0 %v2176
    %2246 = vmatpush1.msra.mxu0 %v2175
    %2247 = vmatprep.subr.mxu0 %v2172
    %2248 = vmatpush1.msra.mxu0 %v2171
    %2249 = vmatprep.subr.mxu0 %v2168
    %2250 = vmatpush1.msra.mxu0 %v2167
    %2251 = vmatprep.subr.mxu0 %v2164
    %2252 = vmatpush1.msra.mxu0 %v2163
    %2253 = vmatprep.subr.mxu0 0.0
    %2254 = vmatpush2.msra.mxu0 0.0
    %2255 = vmatprep.subr.mxu0 0.0
    %2256 = vmatpush2.msra.mxu0 0.0
    %2257 = vmatprep.subr.mxu0 0.0
    %2258 = vmatpush2.msra.mxu0 0.0
    %2259 = vmatprep.subr.mxu0 0.0
    %2260 = vmatpush2.msra.mxu0 0.0
    %2261 = vmatprep.subr.mxu0 0.0
    %2262 = vmatpush2.msra.mxu0 0.0
    %2263 = vmatprep.subr.mxu0 0.0
    %2264 = vmatpush2.msra.mxu0 0.0
    %2265 = vmatprep.subr.mxu0 0.0
    %2266 = vmatpush2.msra.mxu0 0.0
    %2267 = vmatprep.subr.mxu0 0.0
    %2268 = vmatpush2.msra.mxu0 0.0
    %2269 = vmatprep.subr.mxu0 0.0
    %2270 = vmatpush2.msra.mxu0 0.0
    %2271 = vmatprep.subr.mxu0 0.0
    %2272 = vmatpush2.msra.mxu0 0.0
    %2273 = vmatprep.subr.mxu0 0.0
    %2274 = vmatpush2.msra.mxu0 0.0
    %2275 = vmatprep.subr.mxu0 0.0
    %2276 = vmatpush2.msra.mxu0 0.0
    %2277 = vmatprep.subr.mxu0 0.0
    %2278 = vmatpush2.msra.mxu0 0.0
    %2279 = vmatprep.subr.mxu0 0.0
    %2280 = vmatpush2.msra.mxu0 0.0
    %2281 = vmatprep.subr.mxu0 0.0
    %2282 = vmatpush2.msra.mxu0 0.0
    %2283 = vmatprep.subr.mxu0 0.0
    %2284 = vmatpush2.msra.mxu0 0.0
    %2285 = vmatprep.mubr.f32.mxu0 0.0
    %2286 = vmatmul.mubr.f32.gmra.mxu0 %v2219
    %v2287 = vpop.f32.mrf.mxu0
    %v2288 = vadd.f32 %v2201, %v2287
    %v2289 = vpop.f32.mrf.mxu0
    %v2290 = vadd.f32 %v2205, %v2289
    %2291 = vdwg.mxu0
    %2292 = vmatprep.subr.mxu0 0.0
    %2293 = vmatpush1.msra.mxu0 0.0
    %2294 = vmatprep.subr.mxu0 0.0
    %2295 = vmatpush1.msra.mxu0 0.0
    %2296 = vmatprep.subr.mxu0 0.0
    %2297 = vmatpush1.msra.mxu0 0.0
    %2298 = vmatprep.subr.mxu0 0.0
    %2299 = vmatpush1.msra.mxu0 0.0
    %2300 = vmatprep.subr.mxu0 0.0
    %2301 = vmatpush1.msra.mxu0 0.0
    %2302 = vmatprep.subr.mxu0 0.0
    %2303 = vmatpush1.msra.mxu0 0.0
    %2304 = vmatprep.subr.mxu0 0.0
    %2305 = vmatpush1.msra.mxu0 0.0
    %2306 = vmatprep.subr.mxu0 0.0
    %2307 = vmatpush1.msra.mxu0 0.0
    %2308 = vmatprep.subr.mxu0 %v2194
    %2309 = vmatpush1.msra.mxu0 %v2193
    %2310 = vmatprep.subr.mxu0 %v2190
    %2311 = vmatpush1.msra.mxu0 %v2189
    %2312 = vmatprep.subr.mxu0 %v2186
    %2313 = vmatpush1.msra.mxu0 %v2185
    %2314 = vmatprep.subr.mxu0 %v2182
    %2315 = vmatpush1.msra.mxu0 %v2181
    %2316 = vmatprep.subr.mxu0 %v2178
    %2317 = vmatpush1.msra.mxu0 %v2177
    %2318 = vmatprep.subr.mxu0 %v2174
    %2319 = vmatpush1.msra.mxu0 %v2173
    %2320 = vmatprep.subr.mxu0 %v2170
    %2321 = vmatpush1.msra.mxu0 %v2169
    %2322 = vmatprep.subr.mxu0 %v2166
    %2323 = vmatpush1.msra.mxu0 %v2165
    %2324 = vmatprep.subr.mxu0 0.0
    %2325 = vmatpush2.msra.mxu0 0.0
    %2326 = vmatprep.subr.mxu0 0.0
    %2327 = vmatpush2.msra.mxu0 0.0
    %2328 = vmatprep.subr.mxu0 0.0
    %2329 = vmatpush2.msra.mxu0 0.0
    %2330 = vmatprep.subr.mxu0 0.0
    %2331 = vmatpush2.msra.mxu0 0.0
    %2332 = vmatprep.subr.mxu0 0.0
    %2333 = vmatpush2.msra.mxu0 0.0
    %2334 = vmatprep.subr.mxu0 0.0
    %2335 = vmatpush2.msra.mxu0 0.0
    %2336 = vmatprep.subr.mxu0 0.0
    %2337 = vmatpush2.msra.mxu0 0.0
    %2338 = vmatprep.subr.mxu0 0.0
    %2339 = vmatpush2.msra.mxu0 0.0
    %2340 = vmatprep.subr.mxu0 0.0
    %2341 = vmatpush2.msra.mxu0 0.0
    %2342 = vmatprep.subr.mxu0 0.0
    %2343 = vmatpush2.msra.mxu0 0.0
    %2344 = vmatprep.subr.mxu0 0.0
    %2345 = vmatpush2.msra.mxu0 0.0
    %2346 = vmatprep.subr.mxu0 0.0
    %2347 = vmatpush2.msra.mxu0 0.0
    %2348 = vmatprep.subr.mxu0 0.0
    %2349 = vmatpush2.msra.mxu0 0.0
    %2350 = vmatprep.subr.mxu0 0.0
    %2351 = vmatpush2.msra.mxu0 0.0
    %2352 = vmatprep.subr.mxu0 0.0
    %2353 = vmatpush2.msra.mxu0 0.0
    %2354 = vmatprep.subr.mxu0 0.0
    %2355 = vmatpush2.msra.mxu0 0.0
    %2356 = vmatprep.mubr.f32.mxu0 0.0
    %2357 = vmatmul.mubr.f32.gmra.mxu0 %v2219
    %v2358 = vpop.f32.mrf.mxu0
    %v2359 = vadd.f32 %v2209, %v2358
    %v2360 = vpop.f32.mrf.mxu0
    %v2361 = vadd.f32 %v2213, %v2360
    %2362 = vdwg.mxu0
    %v2363 = vmax.f32 %v2288, 0.0
    %v2364 = vmax.f32 %v2290, 0.0
    %v2365 = vmax.f32 %v2359, 0.0
    %v2366 = vmax.f32 %v2361, 0.0
    %s2367 = scalar_lea.vmem [#allocation8], 4096
    %v2368 = vld [vmem:[%s2367] sm:$0xff]
    %v2369 = vld [vmem:[%s2367 + $0x8] sm:$0xff]
    %v2370 = vld [vmem:[%s2367 + $0x10] sm:$0xff]
    %v2371 = vld [vmem:[%s2367 + $0x18] sm:$0xff]
    %v2372 = vld [vmem:[%s2367 + $0x20] sm:$0xff]
    %v2373 = vld [vmem:[%s2367 + $0x28] sm:$0xff]
    %v2374 = vld [vmem:[%s2367 + $0x30] sm:$0xff]
    %v2375 = vld [vmem:[%s2367 + $0x38] sm:$0xff]
    %v2376 = vld [vmem:[%s2367 + $0x40] sm:$0xff]
    %v2377 = vld [vmem:[%s2367 + $0x48] sm:$0xff]
    %v2378 = vld [vmem:[%s2367 + $0x50] sm:$0xff]
    %v2379 = vld [vmem:[%s2367 + $0x58] sm:$0xff]
    %v2380 = vld [vmem:[%s2367 + $0x60] sm:$0xff]
    %v2381 = vld [vmem:[%s2367 + $0x68] sm:$0xff]
    %v2382 = vld [vmem:[%s2367 + $0x70] sm:$0xff]
    %v2383 = vld [vmem:[%s2367 + $0x78] sm:$0xff]
    %v2384 = vld [vmem:[%s2367 + $0x80] sm:$0xff]
    %v2385 = vld [vmem:[%s2367 + $0x88] sm:$0xff]
    %v2386 = vld [vmem:[%s2367 + $0x90] sm:$0xff]
    %v2387 = vld [vmem:[%s2367 + $0x98] sm:$0xff]
    %v2388 = vld [vmem:[%s2367 + $0xa0] sm:$0xff]
    %v2389 = vld [vmem:[%s2367 + $0xa8] sm:$0xff]
    %v2390 = vld [vmem:[%s2367 + $0xb0] sm:$0xff]
    %v2391 = vld [vmem:[%s2367 + $0xb8] sm:$0xff]
    %v2392 = vld [vmem:[%s2367 + $0xc0] sm:$0xff]
    %v2393 = vld [vmem:[%s2367 + $0xc8] sm:$0xff]
    %v2394 = vld [vmem:[%s2367 + $0xd0] sm:$0xff]
    %v2395 = vld [vmem:[%s2367 + $0xd8] sm:$0xff]
    %v2396 = vld [vmem:[%s2367 + $0xe0] sm:$0xff]
    %v2397 = vld [vmem:[%s2367 + $0xe8] sm:$0xff]
    %v2398 = vld [vmem:[%s2367 + $0xf0] sm:$0xff]
    %v2399 = vld [vmem:[%s2367 + $0xf8] sm:$0xff]
    %v2400 = vld [vmem:[%s2367 + $0x100] sm:$0xff]
    %v2401 = vld [vmem:[%s2367 + $0x108] sm:$0xff]
    %v2402 = vld [vmem:[%s2367 + $0x110] sm:$0xff]
    %v2403 = vld [vmem:[%s2367 + $0x118] sm:$0xff]
    %v2404 = vld [vmem:[%s2367 + $0x120] sm:$0xff]
    %v2405 = vld [vmem:[%s2367 + $0x128] sm:$0xff]
    %v2406 = vld [vmem:[%s2367 + $0x130] sm:$0xff]
    %v2407 = vld [vmem:[%s2367 + $0x138] sm:$0xff]
    %v2408 = vld [vmem:[%s2367 + $0x140] sm:$0xff]
    %v2409 = vld [vmem:[%s2367 + $0x148] sm:$0xff]
    %v2410 = vld [vmem:[%s2367 + $0x150] sm:$0xff]
    %v2411 = vld [vmem:[%s2367 + $0x158] sm:$0xff]
    %v2412 = vld [vmem:[%s2367 + $0x160] sm:$0xff]
    %v2413 = vld [vmem:[%s2367 + $0x168] sm:$0xff]
    %v2414 = vld [vmem:[%s2367 + $0x170] sm:$0xff]
    %v2415 = vld [vmem:[%s2367 + $0x178] sm:$0xff]
    %v2416 = vld [vmem:[%s2367 + $0x180] sm:$0xff]
    %v2417 = vld [vmem:[%s2367 + $0x188] sm:$0xff]
    %v2418 = vld [vmem:[%s2367 + $0x190] sm:$0xff]
    %v2419 = vld [vmem:[%s2367 + $0x198] sm:$0xff]
    %v2420 = vld [vmem:[%s2367 + $0x1a0] sm:$0xff]
    %v2421 = vld [vmem:[%s2367 + $0x1a8] sm:$0xff]
    %v2422 = vld [vmem:[%s2367 + $0x1b0] sm:$0xff]
    %v2423 = vld [vmem:[%s2367 + $0x1b8] sm:$0xff]
    %v2424 = vld [vmem:[%s2367 + $0x1c0] sm:$0xff]
    %v2425 = vld [vmem:[%s2367 + $0x1c8] sm:$0xff]
    %v2426 = vld [vmem:[%s2367 + $0x1d0] sm:$0xff]
    %v2427 = vld [vmem:[%s2367 + $0x1d8] sm:$0xff]
    %v2428 = vld [vmem:[%s2367 + $0x1e0] sm:$0xff]
    %v2429 = vld [vmem:[%s2367 + $0x1e8] sm:$0xff]
    %v2430 = vld [vmem:[%s2367 + $0x1f0] sm:$0xff]
    %v2431 = vld [vmem:[%s2367 + $0x1f8] sm:$0xff]
    %v2432 = vld [vmem:[%s2367 + $0x200] sm:$0xff]
    %v2433 = vld [vmem:[%s2367 + $0x208] sm:$0xff]
    %v2434 = vld [vmem:[%s2367 + $0x210] sm:$0xff]
    %v2435 = vld [vmem:[%s2367 + $0x218] sm:$0xff]
    %v2436 = vld [vmem:[%s2367 + $0x220] sm:$0xff]
    %v2437 = vld [vmem:[%s2367 + $0x228] sm:$0xff]
    %v2438 = vld [vmem:[%s2367 + $0x230] sm:$0xff]
    %v2439 = vld [vmem:[%s2367 + $0x238] sm:$0xff]
    %v2440 = vld [vmem:[%s2367 + $0x240] sm:$0xff]
    %v2441 = vld [vmem:[%s2367 + $0x248] sm:$0xff]
    %v2442 = vld [vmem:[%s2367 + $0x250] sm:$0xff]
    %v2443 = vld [vmem:[%s2367 + $0x258] sm:$0xff]
    %v2444 = vld [vmem:[%s2367 + $0x260] sm:$0xff]
    %v2445 = vld [vmem:[%s2367 + $0x268] sm:$0xff]
    %v2446 = vld [vmem:[%s2367 + $0x270] sm:$0xff]
    %v2447 = vld [vmem:[%s2367 + $0x278] sm:$0xff]
    %v2448 = vld [vmem:[%s2367 + $0x280] sm:$0xff]
    %v2449 = vld [vmem:[%s2367 + $0x288] sm:$0xff]
    %v2450 = vld [vmem:[%s2367 + $0x290] sm:$0xff]
    %v2451 = vld [vmem:[%s2367 + $0x298] sm:$0xff]
    %v2452 = vld [vmem:[%s2367 + $0x2a0] sm:$0xff]
    %v2453 = vld [vmem:[%s2367 + $0x2a8] sm:$0xff]
    %v2454 = vld [vmem:[%s2367 + $0x2b0] sm:$0xff]
    %v2455 = vld [vmem:[%s2367 + $0x2b8] sm:$0xff]
    %v2456 = vld [vmem:[%s2367 + $0x2c0] sm:$0xff]
    %v2457 = vld [vmem:[%s2367 + $0x2c8] sm:$0xff]
    %v2458 = vld [vmem:[%s2367 + $0x2d0] sm:$0xff]
    %v2459 = vld [vmem:[%s2367 + $0x2d8] sm:$0xff]
    %v2460 = vld [vmem:[%s2367 + $0x2e0] sm:$0xff]
    %v2461 = vld [vmem:[%s2367 + $0x2e8] sm:$0xff]
    %v2462 = vld [vmem:[%s2367 + $0x2f0] sm:$0xff]
    %v2463 = vld [vmem:[%s2367 + $0x2f8] sm:$0xff]
    %v2464 = vld [vmem:[%s2367 + $0x300] sm:$0xff]
    %v2465 = vld [vmem:[%s2367 + $0x308] sm:$0xff]
    %v2466 = vld [vmem:[%s2367 + $0x310] sm:$0xff]
    %v2467 = vld [vmem:[%s2367 + $0x318] sm:$0xff]
    %v2468 = vld [vmem:[%s2367 + $0x320] sm:$0xff]
    %v2469 = vld [vmem:[%s2367 + $0x328] sm:$0xff]
    %v2470 = vld [vmem:[%s2367 + $0x330] sm:$0xff]
    %v2471 = vld [vmem:[%s2367 + $0x338] sm:$0xff]
    %v2472 = vld [vmem:[%s2367 + $0x340] sm:$0xff]
    %v2473 = vld [vmem:[%s2367 + $0x348] sm:$0xff]
    %v2474 = vld [vmem:[%s2367 + $0x350] sm:$0xff]
    %v2475 = vld [vmem:[%s2367 + $0x358] sm:$0xff]
    %v2476 = vld [vmem:[%s2367 + $0x360] sm:$0xff]
    %v2477 = vld [vmem:[%s2367 + $0x368] sm:$0xff]
    %v2478 = vld [vmem:[%s2367 + $0x370] sm:$0xff]
    %v2479 = vld [vmem:[%s2367 + $0x378] sm:$0xff]
    %v2480 = vld [vmem:[%s2367 + $0x380] sm:$0xff]
    %v2481 = vld [vmem:[%s2367 + $0x388] sm:$0xff]
    %v2482 = vld [vmem:[%s2367 + $0x390] sm:$0xff]
    %v2483 = vld [vmem:[%s2367 + $0x398] sm:$0xff]
    %v2484 = vld [vmem:[%s2367 + $0x3a0] sm:$0xff]
    %v2485 = vld [vmem:[%s2367 + $0x3a8] sm:$0xff]
    %v2486 = vld [vmem:[%s2367 + $0x3b0] sm:$0xff]
    %v2487 = vld [vmem:[%s2367 + $0x3b8] sm:$0xff]
    %v2488 = vld [vmem:[%s2367 + $0x3c0] sm:$0xff]
    %v2489 = vld [vmem:[%s2367 + $0x3c8] sm:$0xff]
    %v2490 = vld [vmem:[%s2367 + $0x3d0] sm:$0xff]
    %v2491 = vld [vmem:[%s2367 + $0x3d8] sm:$0xff]
    %v2492 = vld [vmem:[%s2367 + $0x3e0] sm:$0xff]
    %v2493 = vld [vmem:[%s2367 + $0x3e8] sm:$0xff]
    %v2494 = vld [vmem:[%s2367 + $0x3f0] sm:$0xff]
    %v2495 = vld [vmem:[%s2367 + $0x3f8] sm:$0xff]
    %s2496 = scalar_lea.vmem [#allocation10], 8
    %v2497 = vld [vmem:[%s2496] sm:$0x3]
    %v2499 = vlaneseq
    %v2500 = vshrl.u32 %v2499, 7
    %v2501 = vsub.s32 0, %v2500
    %v2502 = vrot.slane %v2497, %v2501
    %v2503 = vlaneseq
    %v2504 = vshrl.u32 %v2503, 7
    %v2505 = vsub.s32 1, %v2504
    %v2506 = vrot.slane %v2497, %v2505
    %2509 = vmatprep.subr.mxu0 %v2399
    %2510 = vmatpush1.msra.mxu0 %v2398
    %2511 = vmatprep.subr.mxu0 %v2397
    %2512 = vmatpush1.msra.mxu0 %v2396
    %2513 = vmatprep.subr.mxu0 %v2395
    %2514 = vmatpush1.msra.mxu0 %v2394
    %2515 = vmatprep.subr.mxu0 %v2393
    %2516 = vmatpush1.msra.mxu0 %v2392
    %2517 = vmatprep.subr.mxu0 %v2391
    %2518 = vmatpush1.msra.mxu0 %v2390
    %2519 = vmatprep.subr.mxu0 %v2389
    %2520 = vmatpush1.msra.mxu0 %v2388
    %2521 = vmatprep.subr.mxu0 %v2387
    %2522 = vmatpush1.msra.mxu0 %v2386
    %2523 = vmatprep.subr.mxu0 %v2385
    %2524 = vmatpush1.msra.mxu0 %v2384
    %2525 = vmatprep.subr.mxu0 %v2383
    %2526 = vmatpush1.msra.mxu0 %v2382
    %2527 = vmatprep.subr.mxu0 %v2381
    %2528 = vmatpush1.msra.mxu0 %v2380
    %2529 = vmatprep.subr.mxu0 %v2379
    %2530 = vmatpush1.msra.mxu0 %v2378
    %2531 = vmatprep.subr.mxu0 %v2377
    %2532 = vmatpush1.msra.mxu0 %v2376
    %2533 = vmatprep.subr.mxu0 %v2375
    %2534 = vmatpush1.msra.mxu0 %v2374
    %2535 = vmatprep.subr.mxu0 %v2373
    %2536 = vmatpush1.msra.mxu0 %v2372
    %2537 = vmatprep.subr.mxu0 %v2371
    %2538 = vmatpush1.msra.mxu0 %v2370
    %2539 = vmatprep.subr.mxu0 %v2369
    %2540 = vmatpush1.msra.mxu0 %v2368
    %2541 = vmatprep.subr.mxu0 %v2431
    %2542 = vmatpush2.msra.mxu0 %v2430
    %2543 = vmatprep.subr.mxu0 %v2429
    %2544 = vmatpush2.msra.mxu0 %v2428
    %2545 = vmatprep.subr.mxu0 %v2427
    %2546 = vmatpush2.msra.mxu0 %v2426
    %2547 = vmatprep.subr.mxu0 %v2425
    %2548 = vmatpush2.msra.mxu0 %v2424
    %2549 = vmatprep.subr.mxu0 %v2423
    %2550 = vmatpush2.msra.mxu0 %v2422
    %2551 = vmatprep.subr.mxu0 %v2421
    %2552 = vmatpush2.msra.mxu0 %v2420
    %2553 = vmatprep.subr.mxu0 %v2419
    %2554 = vmatpush2.msra.mxu0 %v2418
    %2555 = vmatprep.subr.mxu0 %v2417
    %2556 = vmatpush2.msra.mxu0 %v2416
    %2557 = vmatprep.subr.mxu0 %v2415
    %2558 = vmatpush2.msra.mxu0 %v2414
    %2559 = vmatprep.subr.mxu0 %v2413
    %2560 = vmatpush2.msra.mxu0 %v2412
    %2561 = vmatprep.subr.mxu0 %v2411
    %2562 = vmatpush2.msra.mxu0 %v2410
    %2563 = vmatprep.subr.mxu0 %v2409
    %2564 = vmatpush2.msra.mxu0 %v2408
    %2565 = vmatprep.subr.mxu0 %v2407
    %2566 = vmatpush2.msra.mxu0 %v2406
    %2567 = vmatprep.subr.mxu0 %v2405
    %2568 = vmatpush2.msra.mxu0 %v2404
    %2569 = vmatprep.subr.mxu0 %v2403
    %2570 = vmatpush2.msra.mxu0 %v2402
    %2571 = vmatprep.subr.mxu0 %v2401
    %2572 = vmatpush2.msra.mxu0 %v2400
    %2573 = vmatprep.mubr.f32.mxu0 %v2364
    %2574 = vmatmul.mubr.f32.gmra.mxu0 %v2363
    %v2575 = vpop.f32.mrf.mxu0
    %v2576 = vadd.f32 %v2502, %v2575
    %v2577 = vpop.f32.mrf.mxu0
    %v2578 = vadd.f32 %v2506, %v2577
    %2579 = vdwg.mxu0
    %2580 = vmatprep.subr.mxu0 %v2463
    %2581 = vmatpush1.msra.mxu0 %v2462
    %2582 = vmatprep.subr.mxu0 %v2461
    %2583 = vmatpush1.msra.mxu0 %v2460
    %2584 = vmatprep.subr.mxu0 %v2459
    %2585 = vmatpush1.msra.mxu0 %v2458
    %2586 = vmatprep.subr.mxu0 %v2457
    %2587 = vmatpush1.msra.mxu0 %v2456
    %2588 = vmatprep.subr.mxu0 %v2455
    %2589 = vmatpush1.msra.mxu0 %v2454
    %2590 = vmatprep.subr.mxu0 %v2453
    %2591 = vmatpush1.msra.mxu0 %v2452
    %2592 = vmatprep.subr.mxu0 %v2451
    %2593 = vmatpush1.msra.mxu0 %v2450
    %2594 = vmatprep.subr.mxu0 %v2449
    %2595 = vmatpush1.msra.mxu0 %v2448
    %2596 = vmatprep.subr.mxu0 %v2447
    %2597 = vmatpush1.msra.mxu0 %v2446
    %2598 = vmatprep.subr.mxu0 %v2445
    %2599 = vmatpush1.msra.mxu0 %v2444
    %2600 = vmatprep.subr.mxu0 %v2443
    %2601 = vmatpush1.msra.mxu0 %v2442
    %2602 = vmatprep.subr.mxu0 %v2441
    %2603 = vmatpush1.msra.mxu0 %v2440
    %2604 = vmatprep.subr.mxu0 %v2439
    %2605 = vmatpush1.msra.mxu0 %v2438
    %2606 = vmatprep.subr.mxu0 %v2437
    %2607 = vmatpush1.msra.mxu0 %v2436
    %2608 = vmatprep.subr.mxu0 %v2435
    %2609 = vmatpush1.msra.mxu0 %v2434
    %2610 = vmatprep.subr.mxu0 %v2433
    %2611 = vmatpush1.msra.mxu0 %v2432
    %2612 = vmatprep.subr.mxu0 %v2495
    %2613 = vmatpush2.msra.mxu0 %v2494
    %2614 = vmatprep.subr.mxu0 %v2493
    %2615 = vmatpush2.msra.mxu0 %v2492
    %2616 = vmatprep.subr.mxu0 %v2491
    %2617 = vmatpush2.msra.mxu0 %v2490
    %2618 = vmatprep.subr.mxu0 %v2489
    %2619 = vmatpush2.msra.mxu0 %v2488
    %2620 = vmatprep.subr.mxu0 %v2487
    %2621 = vmatpush2.msra.mxu0 %v2486
    %2622 = vmatprep.subr.mxu0 %v2485
    %2623 = vmatpush2.msra.mxu0 %v2484
    %2624 = vmatprep.subr.mxu0 %v2483
    %2625 = vmatpush2.msra.mxu0 %v2482
    %2626 = vmatprep.subr.mxu0 %v2481
    %2627 = vmatpush2.msra.mxu0 %v2480
    %2628 = vmatprep.subr.mxu0 %v2479
    %2629 = vmatpush2.msra.mxu0 %v2478
    %2630 = vmatprep.subr.mxu0 %v2477
    %2631 = vmatpush2.msra.mxu0 %v2476
    %2632 = vmatprep.subr.mxu0 %v2475
    %2633 = vmatpush2.msra.mxu0 %v2474
    %2634 = vmatprep.subr.mxu0 %v2473
    %2635 = vmatpush2.msra.mxu0 %v2472
    %2636 = vmatprep.subr.mxu0 %v2471
    %2637 = vmatpush2.msra.mxu0 %v2470
    %2638 = vmatprep.subr.mxu0 %v2469
    %2639 = vmatpush2.msra.mxu0 %v2468
    %2640 = vmatprep.subr.mxu0 %v2467
    %2641 = vmatpush2.msra.mxu0 %v2466
    %2642 = vmatprep.subr.mxu0 %v2465
    %2643 = vmatpush2.msra.mxu0 %v2464
    %2644 = vmatprep.mubr.f32.mxu0 %v2366
    %2645 = vmatmul.mubr.f32.gmra.mxu0 %v2365
    %v2646 = vpop.f32.mrf.mxu0
    %v2647 = vadd.f32 %v2576, %v2646
    %v2648 = vpop.f32.mrf.mxu0
    %v2649 = vadd.f32 %v2578, %v2648
    %2650 = vdwg.mxu0
    %v2651 = vmax.f32 %v2647, 0.0
    %v2652 = vmax.f32 %v2649, 0.0
    %s2653 = scalar_lea.vmem [#allocation2], 40
    %v2654 = vld [vmem:[%s2653] sm:$0xff]
    %s2655 = scalar_lea.vmem [#allocation5], 1280
    %v2656 = vld [vmem:[%s2655] sm:$0xff]
    %v2657 = vld [vmem:[%s2655 + $0x8] sm:$0xff]
    %v2658 = vld [vmem:[%s2655 + $0x10] sm:$0xff]
    %v2659 = vld [vmem:[%s2655 + $0x18] sm:$0xff]
    %v2660 = vld [vmem:[%s2655 + $0x20] sm:$0xff]
    %v2661 = vld [vmem:[%s2655 + $0x28] sm:$0xff]
    %v2662 = vld [vmem:[%s2655 + $0x30] sm:$0xff]
    %v2663 = vld [vmem:[%s2655 + $0x38] sm:$0xff]
    %v2664 = vld [vmem:[%s2655 + $0x40] sm:$0xff]
    %v2665 = vld [vmem:[%s2655 + $0x48] sm:$0xff]
    %v2666 = vld [vmem:[%s2655 + $0x50] sm:$0xff]
    %v2667 = vld [vmem:[%s2655 + $0x58] sm:$0xff]
    %v2668 = vld [vmem:[%s2655 + $0x60] sm:$0xff]
    %v2669 = vld [vmem:[%s2655 + $0x68] sm:$0xff]
    %v2670 = vld [vmem:[%s2655 + $0x70] sm:$0xff]
    %v2671 = vld [vmem:[%s2655 + $0x78] sm:$0xff]
    %v2672 = vld [vmem:[%s2655 + $0x80] sm:$0xff]
    %v2673 = vld [vmem:[%s2655 + $0x88] sm:$0xff]
    %v2674 = vld [vmem:[%s2655 + $0x90] sm:$0xff]
    %v2675 = vld [vmem:[%s2655 + $0x98] sm:$0xff]
    %v2676 = vld [vmem:[%s2655 + $0xa0] sm:$0xff]
    %v2677 = vld [vmem:[%s2655 + $0xa8] sm:$0xff]
    %v2678 = vld [vmem:[%s2655 + $0xb0] sm:$0xff]
    %v2679 = vld [vmem:[%s2655 + $0xb8] sm:$0xff]
    %v2680 = vld [vmem:[%s2655 + $0xc0] sm:$0xff]
    %v2681 = vld [vmem:[%s2655 + $0xc8] sm:$0xff]
    %v2682 = vld [vmem:[%s2655 + $0xd0] sm:$0xff]
    %v2683 = vld [vmem:[%s2655 + $0xd8] sm:$0xff]
    %v2684 = vld [vmem:[%s2655 + $0xe0] sm:$0xff]
    %v2685 = vld [vmem:[%s2655 + $0xe8] sm:$0xff]
    %v2686 = vld [vmem:[%s2655 + $0xf0] sm:$0xff]
    %v2687 = vld [vmem:[%s2655 + $0xf8] sm:$0xff]
    %s2688 = scalar_lea.vmem [#allocation7], 20
    %v2689 = vld [vmem:[%s2688] sm:$0xf]
    %v2691 = vlaneseq
    %v2692 = vshrl.u32 %v2691, 7
    %v2693 = vsub.s32 0, %v2692
    %v2694 = vrot.slane %v2689, %v2693
    %v2695 = vlaneseq
    %v2696 = vshrl.u32 %v2695, 7
    %v2697 = vsub.s32 1, %v2696
    %v2698 = vrot.slane %v2689, %v2697
    %v2699 = vlaneseq
    %v2700 = vshrl.u32 %v2699, 7
    %v2701 = vsub.s32 2, %v2700
    %v2702 = vrot.slane %v2689, %v2701
    %v2703 = vlaneseq
    %v2704 = vshrl.u32 %v2703, 7
    %v2705 = vsub.s32 3, %v2704
    %v2706 = vrot.slane %v2689, %v2705
    %v2712 = vsel %vm247, %v2654, 0
    %2714 = vmatprep.subr.mxu0 0.0
    %2715 = vmatpush1.msra.mxu0 0.0
    %2716 = vmatprep.subr.mxu0 0.0
    %2717 = vmatpush1.msra.mxu0 0.0
    %2718 = vmatprep.subr.mxu0 0.0
    %2719 = vmatpush1.msra.mxu0 0.0
    %2720 = vmatprep.subr.mxu0 0.0
    %2721 = vmatpush1.msra.mxu0 0.0
    %2722 = vmatprep.subr.mxu0 0.0
    %2723 = vmatpush1.msra.mxu0 0.0
    %2724 = vmatprep.subr.mxu0 0.0
    %2725 = vmatpush1.msra.mxu0 0.0
    %2726 = vmatprep.subr.mxu0 0.0
    %2727 = vmatpush1.msra.mxu0 0.0
    %2728 = vmatprep.subr.mxu0 0.0
    %2729 = vmatpush1.msra.mxu0 0.0
    %2730 = vmatprep.subr.mxu0 %v2685
    %2731 = vmatpush1.msra.mxu0 %v2684
    %2732 = vmatprep.subr.mxu0 %v2681
    %2733 = vmatpush1.msra.mxu0 %v2680
    %2734 = vmatprep.subr.mxu0 %v2677
    %2735 = vmatpush1.msra.mxu0 %v2676
    %2736 = vmatprep.subr.mxu0 %v2673
    %2737 = vmatpush1.msra.mxu0 %v2672
    %2738 = vmatprep.subr.mxu0 %v2669
    %2739 = vmatpush1.msra.mxu0 %v2668
    %2740 = vmatprep.subr.mxu0 %v2665
    %2741 = vmatpush1.msra.mxu0 %v2664
    %2742 = vmatprep.subr.mxu0 %v2661
    %2743 = vmatpush1.msra.mxu0 %v2660
    %2744 = vmatprep.subr.mxu0 %v2657
    %2745 = vmatpush1.msra.mxu0 %v2656
    %2746 = vmatprep.subr.mxu0 0.0
    %2747 = vmatpush2.msra.mxu0 0.0
    %2748 = vmatprep.subr.mxu0 0.0
    %2749 = vmatpush2.msra.mxu0 0.0
    %2750 = vmatprep.subr.mxu0 0.0
    %2751 = vmatpush2.msra.mxu0 0.0
    %2752 = vmatprep.subr.mxu0 0.0
    %2753 = vmatpush2.msra.mxu0 0.0
    %2754 = vmatprep.subr.mxu0 0.0
    %2755 = vmatpush2.msra.mxu0 0.0
    %2756 = vmatprep.subr.mxu0 0.0
    %2757 = vmatpush2.msra.mxu0 0.0
    %2758 = vmatprep.subr.mxu0 0.0
    %2759 = vmatpush2.msra.mxu0 0.0
    %2760 = vmatprep.subr.mxu0 0.0
    %2761 = vmatpush2.msra.mxu0 0.0
    %2762 = vmatprep.subr.mxu0 0.0
    %2763 = vmatpush2.msra.mxu0 0.0
    %2764 = vmatprep.subr.mxu0 0.0
    %2765 = vmatpush2.msra.mxu0 0.0
    %2766 = vmatprep.subr.mxu0 0.0
    %2767 = vmatpush2.msra.mxu0 0.0
    %2768 = vmatprep.subr.mxu0 0.0
    %2769 = vmatpush2.msra.mxu0 0.0
    %2770 = vmatprep.subr.mxu0 0.0
    %2771 = vmatpush2.msra.mxu0 0.0
    %2772 = vmatprep.subr.mxu0 0.0
    %2773 = vmatpush2.msra.mxu0 0.0
    %2774 = vmatprep.subr.mxu0 0.0
    %2775 = vmatpush2.msra.mxu0 0.0
    %2776 = vmatprep.subr.mxu0 0.0
    %2777 = vmatpush2.msra.mxu0 0.0
    %2778 = vmatprep.mubr.f32.mxu0 0.0
    %2779 = vmatmul.mubr.f32.gmra.mxu0 %v2712
    %v2780 = vpop.f32.mrf.mxu0
    %v2781 = vadd.f32 %v2694, %v2780
    %v2782 = vpop.f32.mrf.mxu0
    %v2783 = vadd.f32 %v2698, %v2782
    %2784 = vdwg.mxu0
    %2785 = vmatprep.subr.mxu0 0.0
    %2786 = vmatpush1.msra.mxu0 0.0
    %2787 = vmatprep.subr.mxu0 0.0
    %2788 = vmatpush1.msra.mxu0 0.0
    %2789 = vmatprep.subr.mxu0 0.0
    %2790 = vmatpush1.msra.mxu0 0.0
    %2791 = vmatprep.subr.mxu0 0.0
    %2792 = vmatpush1.msra.mxu0 0.0
    %2793 = vmatprep.subr.mxu0 0.0
    %2794 = vmatpush1.msra.mxu0 0.0
    %2795 = vmatprep.subr.mxu0 0.0
    %2796 = vmatpush1.msra.mxu0 0.0
    %2797 = vmatprep.subr.mxu0 0.0
    %2798 = vmatpush1.msra.mxu0 0.0
    %2799 = vmatprep.subr.mxu0 0.0
    %2800 = vmatpush1.msra.mxu0 0.0
    %2801 = vmatprep.subr.mxu0 %v2687
    %2802 = vmatpush1.msra.mxu0 %v2686
    %2803 = vmatprep.subr.mxu0 %v2683
    %2804 = vmatpush1.msra.mxu0 %v2682
    %2805 = vmatprep.subr.mxu0 %v2679
    %2806 = vmatpush1.msra.mxu0 %v2678
    %2807 = vmatprep.subr.mxu0 %v2675
    %2808 = vmatpush1.msra.mxu0 %v2674
    %2809 = vmatprep.subr.mxu0 %v2671
    %2810 = vmatpush1.msra.mxu0 %v2670
    %2811 = vmatprep.subr.mxu0 %v2667
    %2812 = vmatpush1.msra.mxu0 %v2666
    %2813 = vmatprep.subr.mxu0 %v2663
    %2814 = vmatpush1.msra.mxu0 %v2662
    %2815 = vmatprep.subr.mxu0 %v2659
    %2816 = vmatpush1.msra.mxu0 %v2658
    %2817 = vmatprep.subr.mxu0 0.0
    %2818 = vmatpush2.msra.mxu0 0.0
    %2819 = vmatprep.subr.mxu0 0.0
    %2820 = vmatpush2.msra.mxu0 0.0
    %2821 = vmatprep.subr.mxu0 0.0
    %2822 = vmatpush2.msra.mxu0 0.0
    %2823 = vmatprep.subr.mxu0 0.0
    %2824 = vmatpush2.msra.mxu0 0.0
    %2825 = vmatprep.subr.mxu0 0.0
    %2826 = vmatpush2.msra.mxu0 0.0
    %2827 = vmatprep.subr.mxu0 0.0
    %2828 = vmatpush2.msra.mxu0 0.0
    %2829 = vmatprep.subr.mxu0 0.0
    %2830 = vmatpush2.msra.mxu0 0.0
    %2831 = vmatprep.subr.mxu0 0.0
    %2832 = vmatpush2.msra.mxu0 0.0
    %2833 = vmatprep.subr.mxu0 0.0
    %2834 = vmatpush2.msra.mxu0 0.0
    %2835 = vmatprep.subr.mxu0 0.0
    %2836 = vmatpush2.msra.mxu0 0.0
    %2837 = vmatprep.subr.mxu0 0.0
    %2838 = vmatpush2.msra.mxu0 0.0
    %2839 = vmatprep.subr.mxu0 0.0
    %2840 = vmatpush2.msra.mxu0 0.0
    %2841 = vmatprep.subr.mxu0 0.0
    %2842 = vmatpush2.msra.mxu0 0.0
    %2843 = vmatprep.subr.mxu0 0.0
    %2844 = vmatpush2.msra.mxu0 0.0
    %2845 = vmatprep.subr.mxu0 0.0
    %2846 = vmatpush2.msra.mxu0 0.0
    %2847 = vmatprep.subr.mxu0 0.0
    %2848 = vmatpush2.msra.mxu0 0.0
    %2849 = vmatprep.mubr.f32.mxu0 0.0
    %2850 = vmatmul.mubr.f32.gmra.mxu0 %v2712
    %v2851 = vpop.f32.mrf.mxu0
    %v2852 = vadd.f32 %v2702, %v2851
    %v2853 = vpop.f32.mrf.mxu0
    %v2854 = vadd.f32 %v2706, %v2853
    %2855 = vdwg.mxu0
    %v2856 = vmax.f32 %v2781, 0.0
    %v2857 = vmax.f32 %v2783, 0.0
    %v2858 = vmax.f32 %v2852, 0.0
    %v2859 = vmax.f32 %v2854, 0.0
    %s2860 = scalar_lea.vmem [#allocation8], 5120
    %v2861 = vld [vmem:[%s2860] sm:$0xff]
    %v2862 = vld [vmem:[%s2860 + $0x8] sm:$0xff]
    %v2863 = vld [vmem:[%s2860 + $0x10] sm:$0xff]
    %v2864 = vld [vmem:[%s2860 + $0x18] sm:$0xff]
    %v2865 = vld [vmem:[%s2860 + $0x20] sm:$0xff]
    %v2866 = vld [vmem:[%s2860 + $0x28] sm:$0xff]
    %v2867 = vld [vmem:[%s2860 + $0x30] sm:$0xff]
    %v2868 = vld [vmem:[%s2860 + $0x38] sm:$0xff]
    %v2869 = vld [vmem:[%s2860 + $0x40] sm:$0xff]
    %v2870 = vld [vmem:[%s2860 + $0x48] sm:$0xff]
    %v2871 = vld [vmem:[%s2860 + $0x50] sm:$0xff]
    %v2872 = vld [vmem:[%s2860 + $0x58] sm:$0xff]
    %v2873 = vld [vmem:[%s2860 + $0x60] sm:$0xff]
    %v2874 = vld [vmem:[%s2860 + $0x68] sm:$0xff]
    %v2875 = vld [vmem:[%s2860 + $0x70] sm:$0xff]
    %v2876 = vld [vmem:[%s2860 + $0x78] sm:$0xff]
    %v2877 = vld [vmem:[%s2860 + $0x80] sm:$0xff]
    %v2878 = vld [vmem:[%s2860 + $0x88] sm:$0xff]
    %v2879 = vld [vmem:[%s2860 + $0x90] sm:$0xff]
    %v2880 = vld [vmem:[%s2860 + $0x98] sm:$0xff]
    %v2881 = vld [vmem:[%s2860 + $0xa0] sm:$0xff]
    %v2882 = vld [vmem:[%s2860 + $0xa8] sm:$0xff]
    %v2883 = vld [vmem:[%s2860 + $0xb0] sm:$0xff]
    %v2884 = vld [vmem:[%s2860 + $0xb8] sm:$0xff]
    %v2885 = vld [vmem:[%s2860 + $0xc0] sm:$0xff]
    %v2886 = vld [vmem:[%s2860 + $0xc8] sm:$0xff]
    %v2887 = vld [vmem:[%s2860 + $0xd0] sm:$0xff]
    %v2888 = vld [vmem:[%s2860 + $0xd8] sm:$0xff]
    %v2889 = vld [vmem:[%s2860 + $0xe0] sm:$0xff]
    %v2890 = vld [vmem:[%s2860 + $0xe8] sm:$0xff]
    %v2891 = vld [vmem:[%s2860 + $0xf0] sm:$0xff]
    %v2892 = vld [vmem:[%s2860 + $0xf8] sm:$0xff]
    %v2893 = vld [vmem:[%s2860 + $0x100] sm:$0xff]
    %v2894 = vld [vmem:[%s2860 + $0x108] sm:$0xff]
    %v2895 = vld [vmem:[%s2860 + $0x110] sm:$0xff]
    %v2896 = vld [vmem:[%s2860 + $0x118] sm:$0xff]
    %v2897 = vld [vmem:[%s2860 + $0x120] sm:$0xff]
    %v2898 = vld [vmem:[%s2860 + $0x128] sm:$0xff]
    %v2899 = vld [vmem:[%s2860 + $0x130] sm:$0xff]
    %v2900 = vld [vmem:[%s2860 + $0x138] sm:$0xff]
    %v2901 = vld [vmem:[%s2860 + $0x140] sm:$0xff]
    %v2902 = vld [vmem:[%s2860 + $0x148] sm:$0xff]
    %v2903 = vld [vmem:[%s2860 + $0x150] sm:$0xff]
    %v2904 = vld [vmem:[%s2860 + $0x158] sm:$0xff]
    %v2905 = vld [vmem:[%s2860 + $0x160] sm:$0xff]
    %v2906 = vld [vmem:[%s2860 + $0x168] sm:$0xff]
    %v2907 = vld [vmem:[%s2860 + $0x170] sm:$0xff]
    %v2908 = vld [vmem:[%s2860 + $0x178] sm:$0xff]
    %v2909 = vld [vmem:[%s2860 + $0x180] sm:$0xff]
    %v2910 = vld [vmem:[%s2860 + $0x188] sm:$0xff]
    %v2911 = vld [vmem:[%s2860 + $0x190] sm:$0xff]
    %v2912 = vld [vmem:[%s2860 + $0x198] sm:$0xff]
    %v2913 = vld [vmem:[%s2860 + $0x1a0] sm:$0xff]
    %v2914 = vld [vmem:[%s2860 + $0x1a8] sm:$0xff]
    %v2915 = vld [vmem:[%s2860 + $0x1b0] sm:$0xff]
    %v2916 = vld [vmem:[%s2860 + $0x1b8] sm:$0xff]
    %v2917 = vld [vmem:[%s2860 + $0x1c0] sm:$0xff]
    %v2918 = vld [vmem:[%s2860 + $0x1c8] sm:$0xff]
    %v2919 = vld [vmem:[%s2860 + $0x1d0] sm:$0xff]
    %v2920 = vld [vmem:[%s2860 + $0x1d8] sm:$0xff]
    %v2921 = vld [vmem:[%s2860 + $0x1e0] sm:$0xff]
    %v2922 = vld [vmem:[%s2860 + $0x1e8] sm:$0xff]
    %v2923 = vld [vmem:[%s2860 + $0x1f0] sm:$0xff]
    %v2924 = vld [vmem:[%s2860 + $0x1f8] sm:$0xff]
    %v2925 = vld [vmem:[%s2860 + $0x200] sm:$0xff]
    %v2926 = vld [vmem:[%s2860 + $0x208] sm:$0xff]
    %v2927 = vld [vmem:[%s2860 + $0x210] sm:$0xff]
    %v2928 = vld [vmem:[%s2860 + $0x218] sm:$0xff]
    %v2929 = vld [vmem:[%s2860 + $0x220] sm:$0xff]
    %v2930 = vld [vmem:[%s2860 + $0x228] sm:$0xff]
    %v2931 = vld [vmem:[%s2860 + $0x230] sm:$0xff]
    %v2932 = vld [vmem:[%s2860 + $0x238] sm:$0xff]
    %v2933 = vld [vmem:[%s2860 + $0x240] sm:$0xff]
    %v2934 = vld [vmem:[%s2860 + $0x248] sm:$0xff]
    %v2935 = vld [vmem:[%s2860 + $0x250] sm:$0xff]
    %v2936 = vld [vmem:[%s2860 + $0x258] sm:$0xff]
    %v2937 = vld [vmem:[%s2860 + $0x260] sm:$0xff]
    %v2938 = vld [vmem:[%s2860 + $0x268] sm:$0xff]
    %v2939 = vld [vmem:[%s2860 + $0x270] sm:$0xff]
    %v2940 = vld [vmem:[%s2860 + $0x278] sm:$0xff]
    %v2941 = vld [vmem:[%s2860 + $0x280] sm:$0xff]
    %v2942 = vld [vmem:[%s2860 + $0x288] sm:$0xff]
    %v2943 = vld [vmem:[%s2860 + $0x290] sm:$0xff]
    %v2944 = vld [vmem:[%s2860 + $0x298] sm:$0xff]
    %v2945 = vld [vmem:[%s2860 + $0x2a0] sm:$0xff]
    %v2946 = vld [vmem:[%s2860 + $0x2a8] sm:$0xff]
    %v2947 = vld [vmem:[%s2860 + $0x2b0] sm:$0xff]
    %v2948 = vld [vmem:[%s2860 + $0x2b8] sm:$0xff]
    %v2949 = vld [vmem:[%s2860 + $0x2c0] sm:$0xff]
    %v2950 = vld [vmem:[%s2860 + $0x2c8] sm:$0xff]
    %v2951 = vld [vmem:[%s2860 + $0x2d0] sm:$0xff]
    %v2952 = vld [vmem:[%s2860 + $0x2d8] sm:$0xff]
    %v2953 = vld [vmem:[%s2860 + $0x2e0] sm:$0xff]
    %v2954 = vld [vmem:[%s2860 + $0x2e8] sm:$0xff]
    %v2955 = vld [vmem:[%s2860 + $0x2f0] sm:$0xff]
    %v2956 = vld [vmem:[%s2860 + $0x2f8] sm:$0xff]
    %v2957 = vld [vmem:[%s2860 + $0x300] sm:$0xff]
    %v2958 = vld [vmem:[%s2860 + $0x308] sm:$0xff]
    %v2959 = vld [vmem:[%s2860 + $0x310] sm:$0xff]
    %v2960 = vld [vmem:[%s2860 + $0x318] sm:$0xff]
    %v2961 = vld [vmem:[%s2860 + $0x320] sm:$0xff]
    %v2962 = vld [vmem:[%s2860 + $0x328] sm:$0xff]
    %v2963 = vld [vmem:[%s2860 + $0x330] sm:$0xff]
    %v2964 = vld [vmem:[%s2860 + $0x338] sm:$0xff]
    %v2965 = vld [vmem:[%s2860 + $0x340] sm:$0xff]
    %v2966 = vld [vmem:[%s2860 + $0x348] sm:$0xff]
    %v2967 = vld [vmem:[%s2860 + $0x350] sm:$0xff]
    %v2968 = vld [vmem:[%s2860 + $0x358] sm:$0xff]
    %v2969 = vld [vmem:[%s2860 + $0x360] sm:$0xff]
    %v2970 = vld [vmem:[%s2860 + $0x368] sm:$0xff]
    %v2971 = vld [vmem:[%s2860 + $0x370] sm:$0xff]
    %v2972 = vld [vmem:[%s2860 + $0x378] sm:$0xff]
    %v2973 = vld [vmem:[%s2860 + $0x380] sm:$0xff]
    %v2974 = vld [vmem:[%s2860 + $0x388] sm:$0xff]
    %v2975 = vld [vmem:[%s2860 + $0x390] sm:$0xff]
    %v2976 = vld [vmem:[%s2860 + $0x398] sm:$0xff]
    %v2977 = vld [vmem:[%s2860 + $0x3a0] sm:$0xff]
    %v2978 = vld [vmem:[%s2860 + $0x3a8] sm:$0xff]
    %v2979 = vld [vmem:[%s2860 + $0x3b0] sm:$0xff]
    %v2980 = vld [vmem:[%s2860 + $0x3b8] sm:$0xff]
    %v2981 = vld [vmem:[%s2860 + $0x3c0] sm:$0xff]
    %v2982 = vld [vmem:[%s2860 + $0x3c8] sm:$0xff]
    %v2983 = vld [vmem:[%s2860 + $0x3d0] sm:$0xff]
    %v2984 = vld [vmem:[%s2860 + $0x3d8] sm:$0xff]
    %v2985 = vld [vmem:[%s2860 + $0x3e0] sm:$0xff]
    %v2986 = vld [vmem:[%s2860 + $0x3e8] sm:$0xff]
    %v2987 = vld [vmem:[%s2860 + $0x3f0] sm:$0xff]
    %v2988 = vld [vmem:[%s2860 + $0x3f8] sm:$0xff]
    %s2989 = scalar_lea.vmem [#allocation10], 10
    %v2990 = vld [vmem:[%s2989] sm:$0x3]
    %v2992 = vlaneseq
    %v2993 = vshrl.u32 %v2992, 7
    %v2994 = vsub.s32 0, %v2993
    %v2995 = vrot.slane %v2990, %v2994
    %v2996 = vlaneseq
    %v2997 = vshrl.u32 %v2996, 7
    %v2998 = vsub.s32 1, %v2997
    %v2999 = vrot.slane %v2990, %v2998
    %3002 = vmatprep.subr.mxu0 %v2892
    %3003 = vmatpush1.msra.mxu0 %v2891
    %3004 = vmatprep.subr.mxu0 %v2890
    %3005 = vmatpush1.msra.mxu0 %v2889
    %3006 = vmatprep.subr.mxu0 %v2888
    %3007 = vmatpush1.msra.mxu0 %v2887
    %3008 = vmatprep.subr.mxu0 %v2886
    %3009 = vmatpush1.msra.mxu0 %v2885
    %3010 = vmatprep.subr.mxu0 %v2884
    %3011 = vmatpush1.msra.mxu0 %v2883
    %3012 = vmatprep.subr.mxu0 %v2882
    %3013 = vmatpush1.msra.mxu0 %v2881
    %3014 = vmatprep.subr.mxu0 %v2880
    %3015 = vmatpush1.msra.mxu0 %v2879
    %3016 = vmatprep.subr.mxu0 %v2878
    %3017 = vmatpush1.msra.mxu0 %v2877
    %3018 = vmatprep.subr.mxu0 %v2876
    %3019 = vmatpush1.msra.mxu0 %v2875
    %3020 = vmatprep.subr.mxu0 %v2874
    %3021 = vmatpush1.msra.mxu0 %v2873
    %3022 = vmatprep.subr.mxu0 %v2872
    %3023 = vmatpush1.msra.mxu0 %v2871
    %3024 = vmatprep.subr.mxu0 %v2870
    %3025 = vmatpush1.msra.mxu0 %v2869
    %3026 = vmatprep.subr.mxu0 %v2868
    %3027 = vmatpush1.msra.mxu0 %v2867
    %3028 = vmatprep.subr.mxu0 %v2866
    %3029 = vmatpush1.msra.mxu0 %v2865
    %3030 = vmatprep.subr.mxu0 %v2864
    %3031 = vmatpush1.msra.mxu0 %v2863
    %3032 = vmatprep.subr.mxu0 %v2862
    %3033 = vmatpush1.msra.mxu0 %v2861
    %3034 = vmatprep.subr.mxu0 %v2924
    %3035 = vmatpush2.msra.mxu0 %v2923
    %3036 = vmatprep.subr.mxu0 %v2922
    %3037 = vmatpush2.msra.mxu0 %v2921
    %3038 = vmatprep.subr.mxu0 %v2920
    %3039 = vmatpush2.msra.mxu0 %v2919
    %3040 = vmatprep.subr.mxu0 %v2918
    %3041 = vmatpush2.msra.mxu0 %v2917
    %3042 = vmatprep.subr.mxu0 %v2916
    %3043 = vmatpush2.msra.mxu0 %v2915
    %3044 = vmatprep.subr.mxu0 %v2914
    %3045 = vmatpush2.msra.mxu0 %v2913
    %3046 = vmatprep.subr.mxu0 %v2912
    %3047 = vmatpush2.msra.mxu0 %v2911
    %3048 = vmatprep.subr.mxu0 %v2910
    %3049 = vmatpush2.msra.mxu0 %v2909
    %3050 = vmatprep.subr.mxu0 %v2908
    %3051 = vmatpush2.msra.mxu0 %v2907
    %3052 = vmatprep.subr.mxu0 %v2906
    %3053 = vmatpush2.msra.mxu0 %v2905
    %3054 = vmatprep.subr.mxu0 %v2904
    %3055 = vmatpush2.msra.mxu0 %v2903
    %3056 = vmatprep.subr.mxu0 %v2902
    %3057 = vmatpush2.msra.mxu0 %v2901
    %3058 = vmatprep.subr.mxu0 %v2900
    %3059 = vmatpush2.msra.mxu0 %v2899
    %3060 = vmatprep.subr.mxu0 %v2898
    %3061 = vmatpush2.msra.mxu0 %v2897
    %3062 = vmatprep.subr.mxu0 %v2896
    %3063 = vmatpush2.msra.mxu0 %v2895
    %3064 = vmatprep.subr.mxu0 %v2894
    %3065 = vmatpush2.msra.mxu0 %v2893
    %3066 = vmatprep.mubr.f32.mxu0 %v2857
    %3067 = vmatmul.mubr.f32.gmra.mxu0 %v2856
    %v3068 = vpop.f32.mrf.mxu0
    %v3069 = vadd.f32 %v2995, %v3068
    %v3070 = vpop.f32.mrf.mxu0
    %v3071 = vadd.f32 %v2999, %v3070
    %3072 = vdwg.mxu0
    %3073 = vmatprep.subr.mxu0 %v2956
    %3074 = vmatpush1.msra.mxu0 %v2955
    %3075 = vmatprep.subr.mxu0 %v2954
    %3076 = vmatpush1.msra.mxu0 %v2953
    %3077 = vmatprep.subr.mxu0 %v2952
    %3078 = vmatpush1.msra.mxu0 %v2951
    %3079 = vmatprep.subr.mxu0 %v2950
    %3080 = vmatpush1.msra.mxu0 %v2949
    %3081 = vmatprep.subr.mxu0 %v2948
    %3082 = vmatpush1.msra.mxu0 %v2947
    %3083 = vmatprep.subr.mxu0 %v2946
    %3084 = vmatpush1.msra.mxu0 %v2945
    %3085 = vmatprep.subr.mxu0 %v2944
    %3086 = vmatpush1.msra.mxu0 %v2943
    %3087 = vmatprep.subr.mxu0 %v2942
    %3088 = vmatpush1.msra.mxu0 %v2941
    %3089 = vmatprep.subr.mxu0 %v2940
    %3090 = vmatpush1.msra.mxu0 %v2939
    %3091 = vmatprep.subr.mxu0 %v2938
    %3092 = vmatpush1.msra.mxu0 %v2937
    %3093 = vmatprep.subr.mxu0 %v2936
    %3094 = vmatpush1.msra.mxu0 %v2935
    %3095 = vmatprep.subr.mxu0 %v2934
    %3096 = vmatpush1.msra.mxu0 %v2933
    %3097 = vmatprep.subr.mxu0 %v2932
    %3098 = vmatpush1.msra.mxu0 %v2931
    %3099 = vmatprep.subr.mxu0 %v2930
    %3100 = vmatpush1.msra.mxu0 %v2929
    %3101 = vmatprep.subr.mxu0 %v2928
    %3102 = vmatpush1.msra.mxu0 %v2927
    %3103 = vmatprep.subr.mxu0 %v2926
    %3104 = vmatpush1.msra.mxu0 %v2925
    %3105 = vmatprep.subr.mxu0 %v2988
    %3106 = vmatpush2.msra.mxu0 %v2987
    %3107 = vmatprep.subr.mxu0 %v2986
    %3108 = vmatpush2.msra.mxu0 %v2985
    %3109 = vmatprep.subr.mxu0 %v2984
    %3110 = vmatpush2.msra.mxu0 %v2983
    %3111 = vmatprep.subr.mxu0 %v2982
    %3112 = vmatpush2.msra.mxu0 %v2981
    %3113 = vmatprep.subr.mxu0 %v2980
    %3114 = vmatpush2.msra.mxu0 %v2979
    %3115 = vmatprep.subr.mxu0 %v2978
    %3116 = vmatpush2.msra.mxu0 %v2977
    %3117 = vmatprep.subr.mxu0 %v2976
    %3118 = vmatpush2.msra.mxu0 %v2975
    %3119 = vmatprep.subr.mxu0 %v2974
    %3120 = vmatpush2.msra.mxu0 %v2973
    %3121 = vmatprep.subr.mxu0 %v2972
    %3122 = vmatpush2.msra.mxu0 %v2971
    %3123 = vmatprep.subr.mxu0 %v2970
    %3124 = vmatpush2.msra.mxu0 %v2969
    %3125 = vmatprep.subr.mxu0 %v2968
    %3126 = vmatpush2.msra.mxu0 %v2967
    %3127 = vmatprep.subr.mxu0 %v2966
    %3128 = vmatpush2.msra.mxu0 %v2965
    %3129 = vmatprep.subr.mxu0 %v2964
    %3130 = vmatpush2.msra.mxu0 %v2963
    %3131 = vmatprep.subr.mxu0 %v2962
    %3132 = vmatpush2.msra.mxu0 %v2961
    %3133 = vmatprep.subr.mxu0 %v2960
    %3134 = vmatpush2.msra.mxu0 %v2959
    %3135 = vmatprep.subr.mxu0 %v2958
    %3136 = vmatpush2.msra.mxu0 %v2957
    %3137 = vmatprep.mubr.f32.mxu0 %v2859
    %3138 = vmatmul.mubr.f32.gmra.mxu0 %v2858
    %v3139 = vpop.f32.mrf.mxu0
    %v3140 = vadd.f32 %v3069, %v3139
    %v3141 = vpop.f32.mrf.mxu0
    %v3142 = vadd.f32 %v3071, %v3141
    %3143 = vdwg.mxu0
    %v3144 = vmax.f32 %v3140, 0.0
    %v3145 = vmax.f32 %v3142, 0.0
    %v3146 = vld [vmem:[#allocation11] sm:$0xff]
    %v3147 = vld [vmem:[#allocation11 + $0x8] sm:$0xff]
    %v3148 = vld [vmem:[#allocation11 + $0x10] sm:$0xff]
    %v3149 = vld [vmem:[#allocation11 + $0x18] sm:$0xff]
    %v3150 = vld [vmem:[#allocation11 + $0x20] sm:$0xff]
    %v3151 = vld [vmem:[#allocation11 + $0x28] sm:$0xff]
    %v3152 = vld [vmem:[#allocation11 + $0x30] sm:$0xff]
    %v3153 = vld [vmem:[#allocation11 + $0x38] sm:$0xff]
    %v3154 = vld [vmem:[#allocation11 + $0x40] sm:$0xff]
    %v3155 = vld [vmem:[#allocation11 + $0x48] sm:$0xff]
    %v3156 = vld [vmem:[#allocation11 + $0x50] sm:$0xff]
    %v3157 = vld [vmem:[#allocation11 + $0x58] sm:$0xff]
    %v3158 = vld [vmem:[#allocation11 + $0x60] sm:$0xff]
    %v3159 = vld [vmem:[#allocation11 + $0x68] sm:$0xff]
    %v3160 = vld [vmem:[#allocation11 + $0x70] sm:$0xff]
    %v3161 = vld [vmem:[#allocation11 + $0x78] sm:$0xff]
    %v3162 = vld [vmem:[#allocation11 + $0x80] sm:$0xff]
    %v3163 = vld [vmem:[#allocation11 + $0x88] sm:$0xff]
    %v3164 = vld [vmem:[#allocation11 + $0x90] sm:$0xff]
    %v3165 = vld [vmem:[#allocation11 + $0x98] sm:$0xff]
    %v3166 = vld [vmem:[#allocation11 + $0xa0] sm:$0xff]
    %v3167 = vld [vmem:[#allocation11 + $0xa8] sm:$0xff]
    %v3168 = vld [vmem:[#allocation11 + $0xb0] sm:$0xff]
    %v3169 = vld [vmem:[#allocation11 + $0xb8] sm:$0xff]
    %v3170 = vld [vmem:[#allocation11 + $0xc0] sm:$0xff]
    %v3171 = vld [vmem:[#allocation11 + $0xc8] sm:$0xff]
    %v3172 = vld [vmem:[#allocation11 + $0xd0] sm:$0xff]
    %v3173 = vld [vmem:[#allocation11 + $0xd8] sm:$0xff]
    %v3174 = vld [vmem:[#allocation11 + $0xe0] sm:$0xff]
    %v3175 = vld [vmem:[#allocation11 + $0xe8] sm:$0xff]
    %v3176 = vld [vmem:[#allocation11 + $0xf0] sm:$0xff]
    %v3177 = vld [vmem:[#allocation11 + $0xf8] sm:$0xff]
    %v3178 = vld [vmem:[#allocation13] sm:$0x1]
    %v3180 = vlaneseq
    %v3181 = vshrl.u32 %v3180, 7
    %v3182 = vsub.s32 0, %v3181
    %v3183 = vrot.slane %v3178, %v3182
    %3185 = vmatprep.subr.mxu0 0.0
    %3186 = vmatpush1.msra.mxu0 %v3161
    %3187 = vmatprep.subr.mxu0 0.0
    %3188 = vmatpush1.msra.mxu0 %v3160
    %3189 = vmatprep.subr.mxu0 0.0
    %3190 = vmatpush1.msra.mxu0 %v3159
    %3191 = vmatprep.subr.mxu0 0.0
    %3192 = vmatpush1.msra.mxu0 %v3158
    %3193 = vmatprep.subr.mxu0 0.0
    %3194 = vmatpush1.msra.mxu0 %v3157
    %3195 = vmatprep.subr.mxu0 0.0
    %3196 = vmatpush1.msra.mxu0 %v3156
    %3197 = vmatprep.subr.mxu0 0.0
    %3198 = vmatpush1.msra.mxu0 %v3155
    %3199 = vmatprep.subr.mxu0 0.0
    %3200 = vmatpush1.msra.mxu0 %v3154
    %3201 = vmatprep.subr.mxu0 0.0
    %3202 = vmatpush1.msra.mxu0 %v3153
    %3203 = vmatprep.subr.mxu0 0.0
    %3204 = vmatpush1.msra.mxu0 %v3152
    %3205 = vmatprep.subr.mxu0 0.0
    %3206 = vmatpush1.msra.mxu0 %v3151
    %3207 = vmatprep.subr.mxu0 0.0
    %3208 = vmatpush1.msra.mxu0 %v3150
    %3209 = vmatprep.subr.mxu0 0.0
    %3210 = vmatpush1.msra.mxu0 %v3149
    %3211 = vmatprep.subr.mxu0 0.0
    %3212 = vmatpush1.msra.mxu0 %v3148
    %3213 = vmatprep.subr.mxu0 0.0
    %3214 = vmatpush1.msra.mxu0 %v3147
    %3215 = vmatprep.subr.mxu0 0.0
    %3216 = vmatpush1.msra.mxu0 %v3146
    %3217 = vmatprep.subr.mxu0 0.0
    %3218 = vmatpush2.msra.mxu0 %v3177
    %3219 = vmatprep.subr.mxu0 0.0
    %3220 = vmatpush2.msra.mxu0 %v3176
    %3221 = vmatprep.subr.mxu0 0.0
    %3222 = vmatpush2.msra.mxu0 %v3175
    %3223 = vmatprep.subr.mxu0 0.0
    %3224 = vmatpush2.msra.mxu0 %v3174
    %3225 = vmatprep.subr.mxu0 0.0
    %3226 = vmatpush2.msra.mxu0 %v3173
    %3227 = vmatprep.subr.mxu0 0.0
    %3228 = vmatpush2.msra.mxu0 %v3172
    %3229 = vmatprep.subr.mxu0 0.0
    %3230 = vmatpush2.msra.mxu0 %v3171
    %3231 = vmatprep.subr.mxu0 0.0
    %3232 = vmatpush2.msra.mxu0 %v3170
    %3233 = vmatprep.subr.mxu0 0.0
    %3234 = vmatpush2.msra.mxu0 %v3169
    %3235 = vmatprep.subr.mxu0 0.0
    %3236 = vmatpush2.msra.mxu0 %v3168
    %3237 = vmatprep.subr.mxu0 0.0
    %3238 = vmatpush2.msra.mxu0 %v3167
    %3239 = vmatprep.subr.mxu0 0.0
    %3240 = vmatpush2.msra.mxu0 %v3166
    %3241 = vmatprep.subr.mxu0 0.0
    %3242 = vmatpush2.msra.mxu0 %v3165
    %3243 = vmatprep.subr.mxu0 0.0
    %3244 = vmatpush2.msra.mxu0 %v3164
    %3245 = vmatprep.subr.mxu0 0.0
    %3246 = vmatpush2.msra.mxu0 %v3163
    %3247 = vmatprep.subr.mxu0 0.0
    %3248 = vmatpush2.msra.mxu0 %v3162
    %3249 = vmatprep.mubr.f32.mxu0 %v680
    %3250 = vmatmul.mubr.f32.gmra.mxu0 %v679
    %v3251 = vpop.f32.mrf.mxu0
    %v3252 = vadd.f32 %v3183, %v3251
    %v3253 = vpop.f32.mrf.mxu0
    %3254 = vdwg.mxu0
    %v3255 = vmax.f32 %v3252, 0.0
    %3256 = vst [vmem:[#allocation20] sm:$0xff] %v3255
    %s3257 = scalar_lea.vmem [#allocation11], 256
    %v3258 = vld [vmem:[%s3257] sm:$0xff]
    %v3259 = vld [vmem:[%s3257 + $0x8] sm:$0xff]
    %v3260 = vld [vmem:[%s3257 + $0x10] sm:$0xff]
    %v3261 = vld [vmem:[%s3257 + $0x18] sm:$0xff]
    %v3262 = vld [vmem:[%s3257 + $0x20] sm:$0xff]
    %v3263 = vld [vmem:[%s3257 + $0x28] sm:$0xff]
    %v3264 = vld [vmem:[%s3257 + $0x30] sm:$0xff]
    %v3265 = vld [vmem:[%s3257 + $0x38] sm:$0xff]
    %v3266 = vld [vmem:[%s3257 + $0x40] sm:$0xff]
    %v3267 = vld [vmem:[%s3257 + $0x48] sm:$0xff]
    %v3268 = vld [vmem:[%s3257 + $0x50] sm:$0xff]
    %v3269 = vld [vmem:[%s3257 + $0x58] sm:$0xff]
    %v3270 = vld [vmem:[%s3257 + $0x60] sm:$0xff]
    %v3271 = vld [vmem:[%s3257 + $0x68] sm:$0xff]
    %v3272 = vld [vmem:[%s3257 + $0x70] sm:$0xff]
    %v3273 = vld [vmem:[%s3257 + $0x78] sm:$0xff]
    %v3274 = vld [vmem:[%s3257 + $0x80] sm:$0xff]
    %v3275 = vld [vmem:[%s3257 + $0x88] sm:$0xff]
    %v3276 = vld [vmem:[%s3257 + $0x90] sm:$0xff]
    %v3277 = vld [vmem:[%s3257 + $0x98] sm:$0xff]
    %v3278 = vld [vmem:[%s3257 + $0xa0] sm:$0xff]
    %v3279 = vld [vmem:[%s3257 + $0xa8] sm:$0xff]
    %v3280 = vld [vmem:[%s3257 + $0xb0] sm:$0xff]
    %v3281 = vld [vmem:[%s3257 + $0xb8] sm:$0xff]
    %v3282 = vld [vmem:[%s3257 + $0xc0] sm:$0xff]
    %v3283 = vld [vmem:[%s3257 + $0xc8] sm:$0xff]
    %v3284 = vld [vmem:[%s3257 + $0xd0] sm:$0xff]
    %v3285 = vld [vmem:[%s3257 + $0xd8] sm:$0xff]
    %v3286 = vld [vmem:[%s3257 + $0xe0] sm:$0xff]
    %v3287 = vld [vmem:[%s3257 + $0xe8] sm:$0xff]
    %v3288 = vld [vmem:[%s3257 + $0xf0] sm:$0xff]
    %v3289 = vld [vmem:[%s3257 + $0xf8] sm:$0xff]
    %s3290 = scalar_lea.vmem [#allocation13], 1
    %v3291 = vld [vmem:[%s3290] sm:$0x1]
    %v3293 = vlaneseq
    %v3294 = vshrl.u32 %v3293, 7
    %v3295 = vsub.s32 0, %v3294
    %v3296 = vrot.slane %v3291, %v3295
    %3298 = vmatprep.subr.mxu0 0.0
    %3299 = vmatpush1.msra.mxu0 %v3273
    %3300 = vmatprep.subr.mxu0 0.0
    %3301 = vmatpush1.msra.mxu0 %v3272
    %3302 = vmatprep.subr.mxu0 0.0
    %3303 = vmatpush1.msra.mxu0 %v3271
    %3304 = vmatprep.subr.mxu0 0.0
    %3305 = vmatpush1.msra.mxu0 %v3270
    %3306 = vmatprep.subr.mxu0 0.0
    %3307 = vmatpush1.msra.mxu0 %v3269
    %3308 = vmatprep.subr.mxu0 0.0
    %3309 = vmatpush1.msra.mxu0 %v3268
    %3310 = vmatprep.subr.mxu0 0.0
    %3311 = vmatpush1.msra.mxu0 %v3267
    %3312 = vmatprep.subr.mxu0 0.0
    %3313 = vmatpush1.msra.mxu0 %v3266
    %3314 = vmatprep.subr.mxu0 0.0
    %3315 = vmatpush1.msra.mxu0 %v3265
    %3316 = vmatprep.subr.mxu0 0.0
    %3317 = vmatpush1.msra.mxu0 %v3264
    %3318 = vmatprep.subr.mxu0 0.0
    %3319 = vmatpush1.msra.mxu0 %v3263
    %3320 = vmatprep.subr.mxu0 0.0
    %3321 = vmatpush1.msra.mxu0 %v3262
    %3322 = vmatprep.subr.mxu0 0.0
    %3323 = vmatpush1.msra.mxu0 %v3261
    %3324 = vmatprep.subr.mxu0 0.0
    %3325 = vmatpush1.msra.mxu0 %v3260
    %3326 = vmatprep.subr.mxu0 0.0
    %3327 = vmatpush1.msra.mxu0 %v3259
    %3328 = vmatprep.subr.mxu0 0.0
    %3329 = vmatpush1.msra.mxu0 %v3258
    %3330 = vmatprep.subr.mxu0 0.0
    %3331 = vmatpush2.msra.mxu0 %v3289
    %3332 = vmatprep.subr.mxu0 0.0
    %3333 = vmatpush2.msra.mxu0 %v3288
    %3334 = vmatprep.subr.mxu0 0.0
    %3335 = vmatpush2.msra.mxu0 %v3287
    %3336 = vmatprep.subr.mxu0 0.0
    %3337 = vmatpush2.msra.mxu0 %v3286
    %3338 = vmatprep.subr.mxu0 0.0
    %3339 = vmatpush2.msra.mxu0 %v3285
    %3340 = vmatprep.subr.mxu0 0.0
    %3341 = vmatpush2.msra.mxu0 %v3284
    %3342 = vmatprep.subr.mxu0 0.0
    %3343 = vmatpush2.msra.mxu0 %v3283
    %3344 = vmatprep.subr.mxu0 0.0
    %3345 = vmatpush2.msra.mxu0 %v3282
    %3346 = vmatprep.subr.mxu0 0.0
    %3347 = vmatpush2.msra.mxu0 %v3281
    %3348 = vmatprep.subr.mxu0 0.0
    %3349 = vmatpush2.msra.mxu0 %v3280
    %3350 = vmatprep.subr.mxu0 0.0
    %3351 = vmatpush2.msra.mxu0 %v3279
    %3352 = vmatprep.subr.mxu0 0.0
    %3353 = vmatpush2.msra.mxu0 %v3278
    %3354 = vmatprep.subr.mxu0 0.0
    %3355 = vmatpush2.msra.mxu0 %v3277
    %3356 = vmatprep.subr.mxu0 0.0
    %3357 = vmatpush2.msra.mxu0 %v3276
    %3358 = vmatprep.subr.mxu0 0.0
    %3359 = vmatpush2.msra.mxu0 %v3275
    %3360 = vmatprep.subr.mxu0 0.0
    %3361 = vmatpush2.msra.mxu0 %v3274
    %3362 = vmatprep.mubr.f32.mxu0 %v2159
    %3363 = vmatmul.mubr.f32.gmra.mxu0 %v2158
    %v3364 = vpop.f32.mrf.mxu0
    %v3365 = vadd.f32 %v3296, %v3364
    %v3366 = vpop.f32.mrf.mxu0
    %3367 = vdwg.mxu0
    %v3368 = vmax.f32 %v3365, 0.0
    %s3369 = scalar_lea.vmem [#allocation20], 8
    %3370 = vst [vmem:[%s3369] sm:$0xff] %v3368
    %v3371 = vld [vmem:[#allocation14] sm:$0xff]
    %v3372 = vld [vmem:[#allocation14 + $0x8] sm:$0xff]
    %v3373 = vld [vmem:[#allocation14 + $0x10] sm:$0xff]
    %v3374 = vld [vmem:[#allocation14 + $0x18] sm:$0xff]
    %v3375 = vld [vmem:[#allocation14 + $0x20] sm:$0xff]
    %v3376 = vld [vmem:[#allocation14 + $0x28] sm:$0xff]
    %v3377 = vld [vmem:[#allocation14 + $0x30] sm:$0xff]
    %v3378 = vld [vmem:[#allocation14 + $0x38] sm:$0xff]
    %v3379 = vld [vmem:[#allocation14 + $0x40] sm:$0xff]
    %v3380 = vld [vmem:[#allocation14 + $0x48] sm:$0xff]
    %v3381 = vld [vmem:[#allocation14 + $0x50] sm:$0xff]
    %v3382 = vld [vmem:[#allocation14 + $0x58] sm:$0xff]
    %v3383 = vld [vmem:[#allocation14 + $0x60] sm:$0xff]
    %v3384 = vld [vmem:[#allocation14 + $0x68] sm:$0xff]
    %v3385 = vld [vmem:[#allocation14 + $0x70] sm:$0xff]
    %v3386 = vld [vmem:[#allocation14 + $0x78] sm:$0xff]
    %v3387 = vld [vmem:[#allocation14 + $0x80] sm:$0xff]
    %v3388 = vld [vmem:[#allocation14 + $0x88] sm:$0xff]
    %v3389 = vld [vmem:[#allocation14 + $0x90] sm:$0xff]
    %v3390 = vld [vmem:[#allocation14 + $0x98] sm:$0xff]
    %v3391 = vld [vmem:[#allocation14 + $0xa0] sm:$0xff]
    %v3392 = vld [vmem:[#allocation14 + $0xa8] sm:$0xff]
    %v3393 = vld [vmem:[#allocation14 + $0xb0] sm:$0xff]
    %v3394 = vld [vmem:[#allocation14 + $0xb8] sm:$0xff]
    %v3395 = vld [vmem:[#allocation14 + $0xc0] sm:$0xff]
    %v3396 = vld [vmem:[#allocation14 + $0xc8] sm:$0xff]
    %v3397 = vld [vmem:[#allocation14 + $0xd0] sm:$0xff]
    %v3398 = vld [vmem:[#allocation14 + $0xd8] sm:$0xff]
    %v3399 = vld [vmem:[#allocation14 + $0xe0] sm:$0xff]
    %v3400 = vld [vmem:[#allocation14 + $0xe8] sm:$0xff]
    %v3401 = vld [vmem:[#allocation14 + $0xf0] sm:$0xff]
    %v3402 = vld [vmem:[#allocation14 + $0xf8] sm:$0xff]
    %v3403 = vld [vmem:[#allocation16] sm:$0x1]
    %v3405 = vlaneseq
    %v3406 = vshrl.u32 %v3405, 7
    %v3407 = vsub.s32 0, %v3406
    %v3408 = vrot.slane %v3403, %v3407
    %3410 = vmatprep.subr.mxu0 0.0
    %3411 = vmatpush1.msra.mxu0 %v3386
    %3412 = vmatprep.subr.mxu0 0.0
    %3413 = vmatpush1.msra.mxu0 %v3385
    %3414 = vmatprep.subr.mxu0 0.0
    %3415 = vmatpush1.msra.mxu0 %v3384
    %3416 = vmatprep.subr.mxu0 0.0
    %3417 = vmatpush1.msra.mxu0 %v3383
    %3418 = vmatprep.subr.mxu0 0.0
    %3419 = vmatpush1.msra.mxu0 %v3382
    %3420 = vmatprep.subr.mxu0 0.0
    %3421 = vmatpush1.msra.mxu0 %v3381
    %3422 = vmatprep.subr.mxu0 0.0
    %3423 = vmatpush1.msra.mxu0 %v3380
    %3424 = vmatprep.subr.mxu0 0.0
    %3425 = vmatpush1.msra.mxu0 %v3379
    %3426 = vmatprep.subr.mxu0 0.0
    %3427 = vmatpush1.msra.mxu0 %v3378
    %3428 = vmatprep.subr.mxu0 0.0
    %3429 = vmatpush1.msra.mxu0 %v3377
    %3430 = vmatprep.subr.mxu0 0.0
    %3431 = vmatpush1.msra.mxu0 %v3376
    %3432 = vmatprep.subr.mxu0 0.0
    %3433 = vmatpush1.msra.mxu0 %v3375
    %3434 = vmatprep.subr.mxu0 0.0
    %3435 = vmatpush1.msra.mxu0 %v3374
    %3436 = vmatprep.subr.mxu0 0.0
    %3437 = vmatpush1.msra.mxu0 %v3373
    %3438 = vmatprep.subr.mxu0 0.0
    %3439 = vmatpush1.msra.mxu0 %v3372
    %3440 = vmatprep.subr.mxu0 0.0
    %3441 = vmatpush1.msra.mxu0 %v3371
    %3442 = vmatprep.subr.mxu0 0.0
    %3443 = vmatpush2.msra.mxu0 %v3402
    %3444 = vmatprep.subr.mxu0 0.0
    %3445 = vmatpush2.msra.mxu0 %v3401
    %3446 = vmatprep.subr.mxu0 0.0
    %3447 = vmatpush2.msra.mxu0 %v3400
    %3448 = vmatprep.subr.mxu0 0.0
    %3449 = vmatpush2.msra.mxu0 %v3399
    %3450 = vmatprep.subr.mxu0 0.0
    %3451 = vmatpush2.msra.mxu0 %v3398
    %3452 = vmatprep.subr.mxu0 0.0
    %3453 = vmatpush2.msra.mxu0 %v3397
    %3454 = vmatprep.subr.mxu0 0.0
    %3455 = vmatpush2.msra.mxu0 %v3396
    %3456 = vmatprep.subr.mxu0 0.0
    %3457 = vmatpush2.msra.mxu0 %v3395
    %3458 = vmatprep.subr.mxu0 0.0
    %3459 = vmatpush2.msra.mxu0 %v3394
    %3460 = vmatprep.subr.mxu0 0.0
    %3461 = vmatpush2.msra.mxu0 %v3393
    %3462 = vmatprep.subr.mxu0 0.0
    %3463 = vmatpush2.msra.mxu0 %v3392
    %3464 = vmatprep.subr.mxu0 0.0
    %3465 = vmatpush2.msra.mxu0 %v3391
    %3466 = vmatprep.subr.mxu0 0.0
    %3467 = vmatpush2.msra.mxu0 %v3390
    %3468 = vmatprep.subr.mxu0 0.0
    %3469 = vmatpush2.msra.mxu0 %v3389
    %3470 = vmatprep.subr.mxu0 0.0
    %3471 = vmatpush2.msra.mxu0 %v3388
    %3472 = vmatprep.subr.mxu0 0.0
    %3473 = vmatpush2.msra.mxu0 %v3387
    %3474 = vmatprep.mubr.f32.mxu0 %v1173
    %3475 = vmatmul.mubr.f32.gmra.mxu0 %v1172
    %v3476 = vpop.f32.mrf.mxu0
    %v3477 = vadd.f32 %v3408, %v3476
    %v3478 = vpop.f32.mrf.mxu0
    %3479 = vdwg.mxu0
    %v3480 = vmax.f32 %v3477, 0.0
    %3481 = vst [vmem:[#allocation21] sm:$0xff] %v3480
    %s3482 = scalar_lea.vmem [#allocation14], 256
    %v3483 = vld [vmem:[%s3482] sm:$0xff]
    %v3484 = vld [vmem:[%s3482 + $0x8] sm:$0xff]
    %v3485 = vld [vmem:[%s3482 + $0x10] sm:$0xff]
    %v3486 = vld [vmem:[%s3482 + $0x18] sm:$0xff]
    %v3487 = vld [vmem:[%s3482 + $0x20] sm:$0xff]
    %v3488 = vld [vmem:[%s3482 + $0x28] sm:$0xff]
    %v3489 = vld [vmem:[%s3482 + $0x30] sm:$0xff]
    %v3490 = vld [vmem:[%s3482 + $0x38] sm:$0xff]
    %v3491 = vld [vmem:[%s3482 + $0x40] sm:$0xff]
    %v3492 = vld [vmem:[%s3482 + $0x48] sm:$0xff]
    %v3493 = vld [vmem:[%s3482 + $0x50] sm:$0xff]
    %v3494 = vld [vmem:[%s3482 + $0x58] sm:$0xff]
    %v3495 = vld [vmem:[%s3482 + $0x60] sm:$0xff]
    %v3496 = vld [vmem:[%s3482 + $0x68] sm:$0xff]
    %v3497 = vld [vmem:[%s3482 + $0x70] sm:$0xff]
    %v3498 = vld [vmem:[%s3482 + $0x78] sm:$0xff]
    %v3499 = vld [vmem:[%s3482 + $0x80] sm:$0xff]
    %v3500 = vld [vmem:[%s3482 + $0x88] sm:$0xff]
    %v3501 = vld [vmem:[%s3482 + $0x90] sm:$0xff]
    %v3502 = vld [vmem:[%s3482 + $0x98] sm:$0xff]
    %v3503 = vld [vmem:[%s3482 + $0xa0] sm:$0xff]
    %v3504 = vld [vmem:[%s3482 + $0xa8] sm:$0xff]
    %v3505 = vld [vmem:[%s3482 + $0xb0] sm:$0xff]
    %v3506 = vld [vmem:[%s3482 + $0xb8] sm:$0xff]
    %v3507 = vld [vmem:[%s3482 + $0xc0] sm:$0xff]
    %v3508 = vld [vmem:[%s3482 + $0xc8] sm:$0xff]
    %v3509 = vld [vmem:[%s3482 + $0xd0] sm:$0xff]
    %v3510 = vld [vmem:[%s3482 + $0xd8] sm:$0xff]
    %v3511 = vld [vmem:[%s3482 + $0xe0] sm:$0xff]
    %v3512 = vld [vmem:[%s3482 + $0xe8] sm:$0xff]
    %v3513 = vld [vmem:[%s3482 + $0xf0] sm:$0xff]
    %v3514 = vld [vmem:[%s3482 + $0xf8] sm:$0xff]
    %s3515 = scalar_lea.vmem [#allocation16], 1
    %v3516 = vld [vmem:[%s3515] sm:$0x1]
    %v3518 = vlaneseq
    %v3519 = vshrl.u32 %v3518, 7
    %v3520 = vsub.s32 0, %v3519
    %v3521 = vrot.slane %v3516, %v3520
    %3523 = vmatprep.subr.mxu0 0.0
    %3524 = vmatpush1.msra.mxu0 %v3498
    %3525 = vmatprep.subr.mxu0 0.0
    %3526 = vmatpush1.msra.mxu0 %v3497
    %3527 = vmatprep.subr.mxu0 0.0
    %3528 = vmatpush1.msra.mxu0 %v3496
    %3529 = vmatprep.subr.mxu0 0.0
    %3530 = vmatpush1.msra.mxu0 %v3495
    %3531 = vmatprep.subr.mxu0 0.0
    %3532 = vmatpush1.msra.mxu0 %v3494
    %3533 = vmatprep.subr.mxu0 0.0
    %3534 = vmatpush1.msra.mxu0 %v3493
    %3535 = vmatprep.subr.mxu0 0.0
    %3536 = vmatpush1.msra.mxu0 %v3492
    %3537 = vmatprep.subr.mxu0 0.0
    %3538 = vmatpush1.msra.mxu0 %v3491
    %3539 = vmatprep.subr.mxu0 0.0
    %3540 = vmatpush1.msra.mxu0 %v3490
    %3541 = vmatprep.subr.mxu0 0.0
    %3542 = vmatpush1.msra.mxu0 %v3489
    %3543 = vmatprep.subr.mxu0 0.0
    %3544 = vmatpush1.msra.mxu0 %v3488
    %3545 = vmatprep.subr.mxu0 0.0
    %3546 = vmatpush1.msra.mxu0 %v3487
    %3547 = vmatprep.subr.mxu0 0.0
    %3548 = vmatpush1.msra.mxu0 %v3486
    %3549 = vmatprep.subr.mxu0 0.0
    %3550 = vmatpush1.msra.mxu0 %v3485
    %3551 = vmatprep.subr.mxu0 0.0
    %3552 = vmatpush1.msra.mxu0 %v3484
    %3553 = vmatprep.subr.mxu0 0.0
    %3554 = vmatpush1.msra.mxu0 %v3483
    %3555 = vmatprep.subr.mxu0 0.0
    %3556 = vmatpush2.msra.mxu0 %v3514
    %3557 = vmatprep.subr.mxu0 0.0
    %3558 = vmatpush2.msra.mxu0 %v3513
    %3559 = vmatprep.subr.mxu0 0.0
    %3560 = vmatpush2.msra.mxu0 %v3512
    %3561 = vmatprep.subr.mxu0 0.0
    %3562 = vmatpush2.msra.mxu0 %v3511
    %3563 = vmatprep.subr.mxu0 0.0
    %3564 = vmatpush2.msra.mxu0 %v3510
    %3565 = vmatprep.subr.mxu0 0.0
    %3566 = vmatpush2.msra.mxu0 %v3509
    %3567 = vmatprep.subr.mxu0 0.0
    %3568 = vmatpush2.msra.mxu0 %v3508
    %3569 = vmatprep.subr.mxu0 0.0
    %3570 = vmatpush2.msra.mxu0 %v3507
    %3571 = vmatprep.subr.mxu0 0.0
    %3572 = vmatpush2.msra.mxu0 %v3506
    %3573 = vmatprep.subr.mxu0 0.0
    %3574 = vmatpush2.msra.mxu0 %v3505
    %3575 = vmatprep.subr.mxu0 0.0
    %3576 = vmatpush2.msra.mxu0 %v3504
    %3577 = vmatprep.subr.mxu0 0.0
    %3578 = vmatpush2.msra.mxu0 %v3503
    %3579 = vmatprep.subr.mxu0 0.0
    %3580 = vmatpush2.msra.mxu0 %v3502
    %3581 = vmatprep.subr.mxu0 0.0
    %3582 = vmatpush2.msra.mxu0 %v3501
    %3583 = vmatprep.subr.mxu0 0.0
    %3584 = vmatpush2.msra.mxu0 %v3500
    %3585 = vmatprep.subr.mxu0 0.0
    %3586 = vmatpush2.msra.mxu0 %v3499
    %3587 = vmatprep.mubr.f32.mxu0 %v2652
    %3588 = vmatmul.mubr.f32.gmra.mxu0 %v2651
    %v3589 = vpop.f32.mrf.mxu0
    %v3590 = vadd.f32 %v3521, %v3589
    %v3591 = vpop.f32.mrf.mxu0
    %3592 = vdwg.mxu0
    %v3593 = vmax.f32 %v3590, 0.0
    %s3594 = scalar_lea.vmem [#allocation21], 8
    %3595 = vst [vmem:[%s3594] sm:$0xff] %v3593
    %v3596 = vld [vmem:[#allocation17] sm:$0xff]
    %v3597 = vld [vmem:[#allocation17 + $0x8] sm:$0xff]
    %v3598 = vld [vmem:[#allocation17 + $0x10] sm:$0xff]
    %v3599 = vld [vmem:[#allocation17 + $0x18] sm:$0xff]
    %v3600 = vld [vmem:[#allocation17 + $0x20] sm:$0xff]
    %v3601 = vld [vmem:[#allocation17 + $0x28] sm:$0xff]
    %v3602 = vld [vmem:[#allocation17 + $0x30] sm:$0xff]
    %v3603 = vld [vmem:[#allocation17 + $0x38] sm:$0xff]
    %v3604 = vld [vmem:[#allocation17 + $0x40] sm:$0xff]
    %v3605 = vld [vmem:[#allocation17 + $0x48] sm:$0xff]
    %v3606 = vld [vmem:[#allocation17 + $0x50] sm:$0xff]
    %v3607 = vld [vmem:[#allocation17 + $0x58] sm:$0xff]
    %v3608 = vld [vmem:[#allocation17 + $0x60] sm:$0xff]
    %v3609 = vld [vmem:[#allocation17 + $0x68] sm:$0xff]
    %v3610 = vld [vmem:[#allocation17 + $0x70] sm:$0xff]
    %v3611 = vld [vmem:[#allocation17 + $0x78] sm:$0xff]
    %v3612 = vld [vmem:[#allocation17 + $0x80] sm:$0xff]
    %v3613 = vld [vmem:[#allocation17 + $0x88] sm:$0xff]
    %v3614 = vld [vmem:[#allocation17 + $0x90] sm:$0xff]
    %v3615 = vld [vmem:[#allocation17 + $0x98] sm:$0xff]
    %v3616 = vld [vmem:[#allocation17 + $0xa0] sm:$0xff]
    %v3617 = vld [vmem:[#allocation17 + $0xa8] sm:$0xff]
    %v3618 = vld [vmem:[#allocation17 + $0xb0] sm:$0xff]
    %v3619 = vld [vmem:[#allocation17 + $0xb8] sm:$0xff]
    %v3620 = vld [vmem:[#allocation17 + $0xc0] sm:$0xff]
    %v3621 = vld [vmem:[#allocation17 + $0xc8] sm:$0xff]
    %v3622 = vld [vmem:[#allocation17 + $0xd0] sm:$0xff]
    %v3623 = vld [vmem:[#allocation17 + $0xd8] sm:$0xff]
    %v3624 = vld [vmem:[#allocation17 + $0xe0] sm:$0xff]
    %v3625 = vld [vmem:[#allocation17 + $0xe8] sm:$0xff]
    %v3626 = vld [vmem:[#allocation17 + $0xf0] sm:$0xff]
    %v3627 = vld [vmem:[#allocation17 + $0xf8] sm:$0xff]
    %v3628 = vld [vmem:[#allocation17 + $0x100] sm:$0xff]
    %v3629 = vld [vmem:[#allocation17 + $0x108] sm:$0xff]
    %v3630 = vld [vmem:[#allocation17 + $0x110] sm:$0xff]
    %v3631 = vld [vmem:[#allocation17 + $0x118] sm:$0xff]
    %v3632 = vld [vmem:[#allocation17 + $0x120] sm:$0xff]
    %v3633 = vld [vmem:[#allocation17 + $0x128] sm:$0xff]
    %v3634 = vld [vmem:[#allocation17 + $0x130] sm:$0xff]
    %v3635 = vld [vmem:[#allocation17 + $0x138] sm:$0xff]
    %v3636 = vld [vmem:[#allocation17 + $0x140] sm:$0xff]
    %v3637 = vld [vmem:[#allocation17 + $0x148] sm:$0xff]
    %v3638 = vld [vmem:[#allocation17 + $0x150] sm:$0xff]
    %v3639 = vld [vmem:[#allocation17 + $0x158] sm:$0xff]
    %v3640 = vld [vmem:[#allocation17 + $0x160] sm:$0xff]
    %v3641 = vld [vmem:[#allocation17 + $0x168] sm:$0xff]
    %v3642 = vld [vmem:[#allocation17 + $0x170] sm:$0xff]
    %v3643 = vld [vmem:[#allocation17 + $0x178] sm:$0xff]
    %v3644 = vld [vmem:[#allocation17 + $0x180] sm:$0xff]
    %v3645 = vld [vmem:[#allocation17 + $0x188] sm:$0xff]
    %v3646 = vld [vmem:[#allocation17 + $0x190] sm:$0xff]
    %v3647 = vld [vmem:[#allocation17 + $0x198] sm:$0xff]
    %v3648 = vld [vmem:[#allocation17 + $0x1a0] sm:$0xff]
    %v3649 = vld [vmem:[#allocation17 + $0x1a8] sm:$0xff]
    %v3650 = vld [vmem:[#allocation17 + $0x1b0] sm:$0xff]
    %v3651 = vld [vmem:[#allocation17 + $0x1b8] sm:$0xff]
    %v3652 = vld [vmem:[#allocation17 + $0x1c0] sm:$0xff]
    %v3653 = vld [vmem:[#allocation17 + $0x1c8] sm:$0xff]
    %v3654 = vld [vmem:[#allocation17 + $0x1d0] sm:$0xff]
    %v3655 = vld [vmem:[#allocation17 + $0x1d8] sm:$0xff]
    %v3656 = vld [vmem:[#allocation17 + $0x1e0] sm:$0xff]
    %v3657 = vld [vmem:[#allocation17 + $0x1e8] sm:$0xff]
    %v3658 = vld [vmem:[#allocation17 + $0x1f0] sm:$0xff]
    %v3659 = vld [vmem:[#allocation17 + $0x1f8] sm:$0xff]
    %v3660 = vld [vmem:[#allocation19] sm:$0x3]
    %v3662 = vlaneseq
    %v3663 = vshrl.u32 %v3662, 7
    %v3664 = vsub.s32 0, %v3663
    %v3665 = vrot.slane %v3660, %v3664
    %v3666 = vlaneseq
    %v3667 = vshrl.u32 %v3666, 7
    %v3668 = vsub.s32 1, %v3667
    %v3669 = vrot.slane %v3660, %v3668
    %3672 = vmatprep.subr.mxu0 %v3627
    %3673 = vmatpush1.msra.mxu0 %v3626
    %3674 = vmatprep.subr.mxu0 %v3625
    %3675 = vmatpush1.msra.mxu0 %v3624
    %3676 = vmatprep.subr.mxu0 %v3623
    %3677 = vmatpush1.msra.mxu0 %v3622
    %3678 = vmatprep.subr.mxu0 %v3621
    %3679 = vmatpush1.msra.mxu0 %v3620
    %3680 = vmatprep.subr.mxu0 %v3619
    %3681 = vmatpush1.msra.mxu0 %v3618
    %3682 = vmatprep.subr.mxu0 %v3617
    %3683 = vmatpush1.msra.mxu0 %v3616
    %3684 = vmatprep.subr.mxu0 %v3615
    %3685 = vmatpush1.msra.mxu0 %v3614
    %3686 = vmatprep.subr.mxu0 %v3613
    %3687 = vmatpush1.msra.mxu0 %v3612
    %3688 = vmatprep.subr.mxu0 %v3611
    %3689 = vmatpush1.msra.mxu0 %v3610
    %3690 = vmatprep.subr.mxu0 %v3609
    %3691 = vmatpush1.msra.mxu0 %v3608
    %3692 = vmatprep.subr.mxu0 %v3607
    %3693 = vmatpush1.msra.mxu0 %v3606
    %3694 = vmatprep.subr.mxu0 %v3605
    %3695 = vmatpush1.msra.mxu0 %v3604
    %3696 = vmatprep.subr.mxu0 %v3603
    %3697 = vmatpush1.msra.mxu0 %v3602
    %3698 = vmatprep.subr.mxu0 %v3601
    %3699 = vmatpush1.msra.mxu0 %v3600
    %3700 = vmatprep.subr.mxu0 %v3599
    %3701 = vmatpush1.msra.mxu0 %v3598
    %3702 = vmatprep.subr.mxu0 %v3597
    %3703 = vmatpush1.msra.mxu0 %v3596
    %3704 = vmatprep.subr.mxu0 %v3659
    %3705 = vmatpush2.msra.mxu0 %v3658
    %3706 = vmatprep.subr.mxu0 %v3657
    %3707 = vmatpush2.msra.mxu0 %v3656
    %3708 = vmatprep.subr.mxu0 %v3655
    %3709 = vmatpush2.msra.mxu0 %v3654
    %3710 = vmatprep.subr.mxu0 %v3653
    %3711 = vmatpush2.msra.mxu0 %v3652
    %3712 = vmatprep.subr.mxu0 %v3651
    %3713 = vmatpush2.msra.mxu0 %v3650
    %3714 = vmatprep.subr.mxu0 %v3649
    %3715 = vmatpush2.msra.mxu0 %v3648
    %3716 = vmatprep.subr.mxu0 %v3647
    %3717 = vmatpush2.msra.mxu0 %v3646
    %3718 = vmatprep.subr.mxu0 %v3645
    %3719 = vmatpush2.msra.mxu0 %v3644
    %3720 = vmatprep.subr.mxu0 %v3643
    %3721 = vmatpush2.msra.mxu0 %v3642
    %3722 = vmatprep.subr.mxu0 %v3641
    %3723 = vmatpush2.msra.mxu0 %v3640
    %3724 = vmatprep.subr.mxu0 %v3639
    %3725 = vmatpush2.msra.mxu0 %v3638
    %3726 = vmatprep.subr.mxu0 %v3637
    %3727 = vmatpush2.msra.mxu0 %v3636
    %3728 = vmatprep.subr.mxu0 %v3635
    %3729 = vmatpush2.msra.mxu0 %v3634
    %3730 = vmatprep.subr.mxu0 %v3633
    %3731 = vmatpush2.msra.mxu0 %v3632
    %3732 = vmatprep.subr.mxu0 %v3631
    %3733 = vmatpush2.msra.mxu0 %v3630
    %3734 = vmatprep.subr.mxu0 %v3629
    %3735 = vmatpush2.msra.mxu0 %v3628
    %3736 = vmatprep.mubr.f32.mxu0 %v1666
    %3737 = vmatmul.mubr.f32.gmra.mxu0 %v1665
    %v3738 = vpop.f32.mrf.mxu0
    %v3739 = vadd.f32 %v3665, %v3738
    %v3740 = vpop.f32.mrf.mxu0
    %v3741 = vadd.f32 %v3669, %v3740
    %3742 = vdwg.mxu0
    %v3743 = vmax.f32 %v3739, 0.0
    %v3744 = vmax.f32 %v3741, 0.0
    %3745 = vst [vmem:[#allocation23] sm:$0xff] %v3743
    %3746 = vst [vmem:[#allocation23 + $0x8] sm:$0xff] %v3744
    %s3747 = scalar_lea.vmem [#allocation17], 512
    %v3748 = vld [vmem:[%s3747] sm:$0xff]
    %v3749 = vld [vmem:[%s3747 + $0x8] sm:$0xff]
    %v3750 = vld [vmem:[%s3747 + $0x10] sm:$0xff]
    %v3751 = vld [vmem:[%s3747 + $0x18] sm:$0xff]
    %v3752 = vld [vmem:[%s3747 + $0x20] sm:$0xff]
    %v3753 = vld [vmem:[%s3747 + $0x28] sm:$0xff]
    %v3754 = vld [vmem:[%s3747 + $0x30] sm:$0xff]
    %v3755 = vld [vmem:[%s3747 + $0x38] sm:$0xff]
    %v3756 = vld [vmem:[%s3747 + $0x40] sm:$0xff]
    %v3757 = vld [vmem:[%s3747 + $0x48] sm:$0xff]
    %v3758 = vld [vmem:[%s3747 + $0x50] sm:$0xff]
    %v3759 = vld [vmem:[%s3747 + $0x58] sm:$0xff]
    %v3760 = vld [vmem:[%s3747 + $0x60] sm:$0xff]
    %v3761 = vld [vmem:[%s3747 + $0x68] sm:$0xff]
    %v3762 = vld [vmem:[%s3747 + $0x70] sm:$0xff]
    %v3763 = vld [vmem:[%s3747 + $0x78] sm:$0xff]
    %v3764 = vld [vmem:[%s3747 + $0x80] sm:$0xff]
    %v3765 = vld [vmem:[%s3747 + $0x88] sm:$0xff]
    %v3766 = vld [vmem:[%s3747 + $0x90] sm:$0xff]
    %v3767 = vld [vmem:[%s3747 + $0x98] sm:$0xff]
    %v3768 = vld [vmem:[%s3747 + $0xa0] sm:$0xff]
    %v3769 = vld [vmem:[%s3747 + $0xa8] sm:$0xff]
    %v3770 = vld [vmem:[%s3747 + $0xb0] sm:$0xff]
    %v3771 = vld [vmem:[%s3747 + $0xb8] sm:$0xff]
    %v3772 = vld [vmem:[%s3747 + $0xc0] sm:$0xff]
    %v3773 = vld [vmem:[%s3747 + $0xc8] sm:$0xff]
    %v3774 = vld [vmem:[%s3747 + $0xd0] sm:$0xff]
    %v3775 = vld [vmem:[%s3747 + $0xd8] sm:$0xff]
    %v3776 = vld [vmem:[%s3747 + $0xe0] sm:$0xff]
    %v3777 = vld [vmem:[%s3747 + $0xe8] sm:$0xff]
    %v3778 = vld [vmem:[%s3747 + $0xf0] sm:$0xff]
    %v3779 = vld [vmem:[%s3747 + $0xf8] sm:$0xff]
    %v3780 = vld [vmem:[%s3747 + $0x100] sm:$0xff]
    %v3781 = vld [vmem:[%s3747 + $0x108] sm:$0xff]
    %v3782 = vld [vmem:[%s3747 + $0x110] sm:$0xff]
    %v3783 = vld [vmem:[%s3747 + $0x118] sm:$0xff]
    %v3784 = vld [vmem:[%s3747 + $0x120] sm:$0xff]
    %v3785 = vld [vmem:[%s3747 + $0x128] sm:$0xff]
    %v3786 = vld [vmem:[%s3747 + $0x130] sm:$0xff]
    %v3787 = vld [vmem:[%s3747 + $0x138] sm:$0xff]
    %v3788 = vld [vmem:[%s3747 + $0x140] sm:$0xff]
    %v3789 = vld [vmem:[%s3747 + $0x148] sm:$0xff]
    %v3790 = vld [vmem:[%s3747 + $0x150] sm:$0xff]
    %v3791 = vld [vmem:[%s3747 + $0x158] sm:$0xff]
    %v3792 = vld [vmem:[%s3747 + $0x160] sm:$0xff]
    %v3793 = vld [vmem:[%s3747 + $0x168] sm:$0xff]
    %v3794 = vld [vmem:[%s3747 + $0x170] sm:$0xff]
    %v3795 = vld [vmem:[%s3747 + $0x178] sm:$0xff]
    %v3796 = vld [vmem:[%s3747 + $0x180] sm:$0xff]
    %v3797 = vld [vmem:[%s3747 + $0x188] sm:$0xff]
    %v3798 = vld [vmem:[%s3747 + $0x190] sm:$0xff]
    %v3799 = vld [vmem:[%s3747 + $0x198] sm:$0xff]
    %v3800 = vld [vmem:[%s3747 + $0x1a0] sm:$0xff]
    %v3801 = vld [vmem:[%s3747 + $0x1a8] sm:$0xff]
    %v3802 = vld [vmem:[%s3747 + $0x1b0] sm:$0xff]
    %v3803 = vld [vmem:[%s3747 + $0x1b8] sm:$0xff]
    %v3804 = vld [vmem:[%s3747 + $0x1c0] sm:$0xff]
    %v3805 = vld [vmem:[%s3747 + $0x1c8] sm:$0xff]
    %v3806 = vld [vmem:[%s3747 + $0x1d0] sm:$0xff]
    %v3807 = vld [vmem:[%s3747 + $0x1d8] sm:$0xff]
    %v3808 = vld [vmem:[%s3747 + $0x1e0] sm:$0xff]
    %v3809 = vld [vmem:[%s3747 + $0x1e8] sm:$0xff]
    %v3810 = vld [vmem:[%s3747 + $0x1f0] sm:$0xff]
    %v3811 = vld [vmem:[%s3747 + $0x1f8] sm:$0xff]
    %s3812 = scalar_lea.vmem [#allocation19], 2
    %v3813 = vld [vmem:[%s3812] sm:$0x3]
    %v3815 = vlaneseq
    %v3816 = vshrl.u32 %v3815, 7
    %v3817 = vsub.s32 0, %v3816
    %v3818 = vrot.slane %v3813, %v3817
    %v3819 = vlaneseq
    %v3820 = vshrl.u32 %v3819, 7
    %v3821 = vsub.s32 1, %v3820
    %v3822 = vrot.slane %v3813, %v3821
    %3825 = vmatprep.subr.mxu0 %v3779
    %3826 = vmatpush1.msra.mxu0 %v3778
    %3827 = vmatprep.subr.mxu0 %v3777
    %3828 = vmatpush1.msra.mxu0 %v3776
    %3829 = vmatprep.subr.mxu0 %v3775
    %3830 = vmatpush1.msra.mxu0 %v3774
    %3831 = vmatprep.subr.mxu0 %v3773
    %3832 = vmatpush1.msra.mxu0 %v3772
    %3833 = vmatprep.subr.mxu0 %v3771
    %3834 = vmatpush1.msra.mxu0 %v3770
    %3835 = vmatprep.subr.mxu0 %v3769
    %3836 = vmatpush1.msra.mxu0 %v3768
    %3837 = vmatprep.subr.mxu0 %v3767
    %3838 = vmatpush1.msra.mxu0 %v3766
    %3839 = vmatprep.subr.mxu0 %v3765
    %3840 = vmatpush1.msra.mxu0 %v3764
    %3841 = vmatprep.subr.mxu0 %v3763
    %3842 = vmatpush1.msra.mxu0 %v3762
    %3843 = vmatprep.subr.mxu0 %v3761
    %3844 = vmatpush1.msra.mxu0 %v3760
    %3845 = vmatprep.subr.mxu0 %v3759
    %3846 = vmatpush1.msra.mxu0 %v3758
    %3847 = vmatprep.subr.mxu0 %v3757
    %3848 = vmatpush1.msra.mxu0 %v3756
    %3849 = vmatprep.subr.mxu0 %v3755
    %3850 = vmatpush1.msra.mxu0 %v3754
    %3851 = vmatprep.subr.mxu0 %v3753
    %3852 = vmatpush1.msra.mxu0 %v3752
    %3853 = vmatprep.subr.mxu0 %v3751
    %3854 = vmatpush1.msra.mxu0 %v3750
    %3855 = vmatprep.subr.mxu0 %v3749
    %3856 = vmatpush1.msra.mxu0 %v3748
    %3857 = vmatprep.subr.mxu0 %v3811
    %3858 = vmatpush2.msra.mxu0 %v3810
    %3859 = vmatprep.subr.mxu0 %v3809
    %3860 = vmatpush2.msra.mxu0 %v3808
    %3861 = vmatprep.subr.mxu0 %v3807
    %3862 = vmatpush2.msra.mxu0 %v3806
    %3863 = vmatprep.subr.mxu0 %v3805
    %3864 = vmatpush2.msra.mxu0 %v3804
    %3865 = vmatprep.subr.mxu0 %v3803
    %3866 = vmatpush2.msra.mxu0 %v3802
    %3867 = vmatprep.subr.mxu0 %v3801
    %3868 = vmatpush2.msra.mxu0 %v3800
    %3869 = vmatprep.subr.mxu0 %v3799
    %3870 = vmatpush2.msra.mxu0 %v3798
    %3871 = vmatprep.subr.mxu0 %v3797
    %3872 = vmatpush2.msra.mxu0 %v3796
    %3873 = vmatprep.subr.mxu0 %v3795
    %3874 = vmatpush2.msra.mxu0 %v3794
    %3875 = vmatprep.subr.mxu0 %v3793
    %3876 = vmatpush2.msra.mxu0 %v3792
    %3877 = vmatprep.subr.mxu0 %v3791
    %3878 = vmatpush2.msra.mxu0 %v3790
    %3879 = vmatprep.subr.mxu0 %v3789
    %3880 = vmatpush2.msra.mxu0 %v3788
    %3881 = vmatprep.subr.mxu0 %v3787
    %3882 = vmatpush2.msra.mxu0 %v3786
    %3883 = vmatprep.subr.mxu0 %v3785
    %3884 = vmatpush2.msra.mxu0 %v3784
    %3885 = vmatprep.subr.mxu0 %v3783
    %3886 = vmatpush2.msra.mxu0 %v3782
    %3887 = vmatprep.subr.mxu0 %v3781
    %3888 = vmatpush2.msra.mxu0 %v3780
    %3889 = vmatprep.mubr.f32.mxu0 %v3145
    %3890 = vmatmul.mubr.f32.gmra.mxu0 %v3144
    %v3891 = vpop.f32.mrf.mxu0
    %v3892 = vadd.f32 %v3818, %v3891
    %v3893 = vpop.f32.mrf.mxu0
    %v3894 = vadd.f32 %v3822, %v3893
    %3895 = vdwg.mxu0
    %v3896 = vmax.f32 %v3892, 0.0
    %v3897 = vmax.f32 %v3894, 0.0
    %s3898 = scalar_lea.vmem [#allocation23], 16
    %3899 = vst [vmem:[%s3898] sm:$0xff] %v3896
    %3900 = vst [vmem:[%s3898 + $0x8] sm:$0xff] %v3897
    // Predicated region
    $region90: #{tpu_custom_call.1} parent=1 // pred_check
      _
    $region91: #{tpu_custom_call.1} parent=1 // pred_check_branch
      %3902 = sbr.rel (0) target = $region93
    $region92: #{tpu_custom_call.1} parent=1 // pred_region
      %s3904 = ssub.s32 256, 256
      %3905 = vsyncadd [#allocation4], %s3904
      %s3906 = sshll.u32 [#allocation20], 4
      %s3907 = int_to_ptr.vmem [resolvable:$true] %s3906
      %3912 = dma.vmem_to_hbm [thread:$0]  %s3907, 256, %s11, [#allocation4], 128, 128, 8
    $region93: #{tpu_custom_call.1} parent=1 // pred_fallthru
      _
    // Predicated region
    $region94: #{tpu_custom_call.1} parent=1 // pred_check
      _
    $region95: #{tpu_custom_call.1} parent=1 // pred_check_branch
      %3914 = sbr.rel (0) target = $region97
    $region96: #{tpu_custom_call.1} parent=1 // pred_region
      %s3916 = ssub.s32 256, 256
      %3917 = vsyncadd [#allocation22], %s3916
      %s3918 = sshll.u32 [#allocation21], 4
      %s3919 = int_to_ptr.vmem [resolvable:$true] %s3918
      %3924 = dma.vmem_to_hbm [thread:$0]  %s3919, 256, %s12, [#allocation22], 128, 128, 8
    $region97: #{tpu_custom_call.1} parent=1 // pred_fallthru
      _
    // Predicated region
    $region98: #{tpu_custom_call.1} parent=1 // pred_check
      _
    $region99: #{tpu_custom_call.1} parent=1 // pred_check_branch
      %3926 = sbr.rel (0) target = $region101
    $region100: #{tpu_custom_call.1} parent=1 // pred_region
      %s3928 = ssub.s32 512, 512
      %3929 = vsyncadd [#allocation22], %s3928
      %s3930 = sshll.u32 [#allocation23], 4
      %s3931 = int_to_ptr.vmem [resolvable:$true] %s3930
      %3936 = dma.vmem_to_hbm [thread:$0]  %s3931, 512, %s13, [#allocation22], 256, 256, 16
    $region101: #{tpu_custom_call.1} parent=1 // pred_fallthru
      _
    // Predicated region
    $region102: #{tpu_custom_call.1} parent=1 // pred_check
      _
    $region103: #{tpu_custom_call.1} parent=1 // pred_check_branch
      %3938 = sbr.rel (0) target = $region105
    $region104: #{tpu_custom_call.1} parent=1 // pred_region
      %3939 = dma.done [#allocation4], 256
    $region105: #{tpu_custom_call.1} parent=1 // pred_fallthru
      _
    // Predicated region
    $region106: #{tpu_custom_call.1} parent=1 // pred_check
      _
    $region107: #{tpu_custom_call.1} parent=1 // pred_check_branch
      %3941 = sbr.rel (0) target = $region109
    $region108: #{tpu_custom_call.1} parent=1 // pred_region
      %3942 = dma.done [#allocation22], 256
    $region109: #{tpu_custom_call.1} parent=1 // pred_fallthru
      _
    // Predicated region
    $region110: #{tpu_custom_call.1} parent=1 // pred_check
      _
    $region111: #{tpu_custom_call.1} parent=1 // pred_check_branch
      %3944 = sbr.rel (0) target = $region113
    $region112: #{tpu_custom_call.1} parent=1 // pred_region
      %3945 = dma.done [#allocation22], 512
    $region113: #{tpu_custom_call.1} parent=1 // pred_fallthru
      _
    %3946 = vsyncpa [#allocation3], 1
    %3947 = vsyncpa [#allocation6], 1
    %3948 = vsyncpa [#allocation9], 1
    %3949 = vsyncpa [#allocation12], 1
    %3950 = vsyncpa [#allocation15], 1
    %3951 = vsyncpa [#allocation18], 1
    %3952 = vsyncpa [#allocation4], 1
    %3953 = vsyncpa [#allocation22], 1

</llo_original>
